<compile_context>
chip_gen: v7x
topology: tpu7x:2x2x1
jax: 0.10.0
libtpu: 0.0.40
codegen_flags: <defaults>
</compile_context>

<pallas_src>
import functools

import jax
import jax.numpy as jnp
from jax.experimental import pallas as pl
from jax.experimental.pallas import tpu as pltpu


# ---------------------------------------------------------------------------
# In-kernel helpers (f32 VPU math)
# ---------------------------------------------------------------------------
def _layernorm(x, g, b, eps):
    mean = jnp.mean(x, axis=-1, keepdims=True)
    xc = x - mean
    var = jnp.mean(xc * xc, axis=-1, keepdims=True)
    return xc * jax.lax.rsqrt(var + eps) * g + b


def _bf16_matmul(x_f32, w_bf16, b_f32):
    """bf16 MXU operands, f32 accumulation, f32 bias add."""
    return jnp.dot(x_f32.astype(jnp.bfloat16), w_bf16,
                   preferred_element_type=jnp.float32) + b_f32


# ---------------------------------------------------------------------------
# Fused DINOv2 encoder kernel (grid = (depth,))
# ---------------------------------------------------------------------------
def _dino_encoder_kernel(
        # constant-over-grid inputs
        patches_ref,        # (B*S_pad, CPPp) bf16, rows laid out as token slots
        patch_w_ref,        # (CPPp, D)       bf16, zero rows beyond real CPP
        pos_base_ref,       # (B*S_pad, D)    f32, cls+pos / pos+conv_bias / 0
        # per-depth stacked weights (leading depth dim squeezed by BlockSpec)
        ln1_g_ref, ln1_b_ref,
        qkv_w_ref, qkv_b_ref,          # attention scale pre-folded into q part
        proj_w_ref, proj_b_ref, ls1_ref,
        ln2_g_ref, ln2_b_ref,
        w12_w_ref, w12_b_ref,
        w3_w_ref, w3_b_ref, ls2_ref,
        # constant final-norm params
        norm_g_ref, norm_b_ref,
        # output
        o_ref,              # (B, D) f32 normalized CLS embeddings
        # scratch
        resid_ref,          # (B*S_pad, D) f32 residual stream, VMEM-resident
        attn_ref,           # (B*S_pad, D) f32 per-head attention staging
        *, B, S, S_pad, num_heads, eps):
    D = resid_ref.shape[1]
    Dh = D // num_heads
    d_idx = pl.program_id(0)

    # ---- block 0: fused patch embed + cls token + position embedding ----
    @pl.when(d_idx == 0)
    def _init():
        emb = jnp.dot(patches_ref[...], patch_w_ref[...],
                      preferred_element_type=jnp.float32)        # (M, D)
        # cls slot / padding rows of `patches` are zero, so one add finishes it
        resid_ref[...] = emb + pos_base_ref[...]

    # ---- LN1 -> fused QKV projection (full flattened batch) ----
    x = resid_ref[...]                                           # (M, D) f32
    h1 = _layernorm(x, ln1_g_ref[...], ln1_b_ref[...], eps)
    qkv = _bf16_matmul(h1, qkv_w_ref[...], qkv_b_ref[...])       # (M, 3D) f32

    # ---- multi-head self-attention ----
    # Padded key columns (>= S real tokens) masked to a large negative value.
    kmask = jax.lax.broadcasted_iota(jnp.int32, (S_pad, S_pad), 1) < S
    neg = jnp.float32(-1e30)
    for b in range(B):
        r0 = b * S_pad
        for hd in range(num_heads):
            c = hd * Dh
            q = qkv[r0:r0 + S_pad, c:c + Dh].astype(jnp.bfloat16)
            k = qkv[r0:r0 + S_pad, D + c:D + c + Dh].astype(jnp.bfloat16)
            v = qkv[r0:r0 + S_pad, 2 * D + c:2 * D + c + Dh].astype(jnp.bfloat16)
            s = jax.lax.dot_general(q, k, (((1,), (1,)), ((), ())),
                                    preferred_element_type=jnp.float32)  # (Sp,Sp)
            s = jnp.where(kmask, s, neg)
            s = s - jnp.max(s, axis=-1, keepdims=True)
            p = jnp.exp(s)
            p = p * pl.reciprocal(jnp.sum(p, axis=-1, keepdims=True), approx=True)
            o_h = jnp.dot(p.astype(jnp.bfloat16), v,
                          preferred_element_type=jnp.float32)    # (Sp, Dh)
            # stream head result straight into VMEM scratch (no concat / vreg pile-up)
            attn_ref[r0:r0 + S_pad, c:c + Dh] = o_h

    # ---- output projection + LayerScale + residual ----
    attn = _bf16_matmul(attn_ref[...], proj_w_ref[...], proj_b_ref[...])
    x = x + ls1_ref[...] * attn

    # ---- LN2 -> SwiGLU MLP + LayerScale + residual ----
    h2 = _layernorm(x, ln2_g_ref[...], ln2_b_ref[...], eps)
    x12 = _bf16_matmul(h2, w12_w_ref[...], w12_b_ref[...])       # (M, 2*Hd)
    hid = x12.shape[-1] // 2
    gate = x12[:, :hid]
    up = x12[:, hid:]
    swiglu = (gate / (1.0 + jnp.exp(-gate))) * up                # SiLU, f32 VPU/EUP
    mlp = _bf16_matmul(swiglu, w3_w_ref[...], w3_b_ref[...])     # (M, D)
    x = x + ls2_ref[...] * mlp
    resid_ref[...] = x

    # ---- last block: fused final LayerNorm, CLS rows only ----
    @pl.when(d_idx == pl.num_programs(0) - 1)
    def _final():
        g = norm_g_ref[...]
        bt = norm_b_ref[...]
        for b in range(B):
            cls_row = x[b * S_pad:b * S_pad + 1, :]              # (1, D)
            o_ref[pl.ds(b, 1), :] = _layernorm(cls_row, g, bt, eps)


# ---------------------------------------------------------------------------
# pallas_call wrapper
# ---------------------------------------------------------------------------
def dino_encoder(patches, pos_base, params, cfg, B):
    D = cfg.embed_dim
    depth = cfg.depth
    S_pad = cfg.seq_pad
    S = (cfg.img_size // cfg.patch_size) ** 2 + 1
    CPPp = cfg.cpp_pad
    hid = cfg.swiglu_hidden
    two_hid = 2 * hid
    M = B * S_pad

    def const(shape):
        return pl.BlockSpec(shape, lambda d: (0, 0))

    def stacked(r, c):
        # leading depth dim selected by the grid index and squeezed away
        return pl.BlockSpec((None, r, c), lambda d: (d, 0, 0))

    kernel = functools.partial(_dino_encoder_kernel, B=B, S=S, S_pad=S_pad,
                               num_heads=cfg.num_heads, eps=cfg.eps)

    return pl.pallas_call(
        kernel,
        out_shape=jax.ShapeDtypeStruct((B, D), jnp.float32),
        grid=(depth,),
        in_specs=[
            const((M, CPPp)),                    # patches (token-slot layout)
            const((CPPp, D)),                    # patch_w
            const((M, D)),                       # pos_base
            stacked(1, D), stacked(1, D),        # ln1 g/b
            stacked(D, 3 * D), stacked(1, 3 * D),  # qkv w/b
            stacked(D, D), stacked(1, D),        # proj w/b
            stacked(1, D),                       # ls1 gamma
            stacked(1, D), stacked(1, D),        # ln2 g/b
            stacked(D, two_hid), stacked(1, two_hid),  # w12 w/b
            stacked(hid, D), stacked(1, D),      # w3 w/b
            stacked(1, D),                       # ls2 gamma
            const((1, D)), const((1, D)),        # final norm g/b
        ],
        out_specs=pl.BlockSpec((B, D), lambda d: (0, 0)),
        scratch_shapes=[pltpu.VMEM((M, D), jnp.float32),   # residual stream
                        pltpu.VMEM((M, D), jnp.float32)],  # attention staging
        compiler_params=pltpu.CompilerParams(
            dimension_semantics=("arbitrary",)),
    )(patches, params["patch_w"], pos_base,
      params["ln1_g"], params["ln1_b"],
      params["qkv_w"], params["qkv_b"],
      params["proj_w"], params["proj_b"], params["ls1"],
      params["ln2_g"], params["ln2_b"],
      params["w12_w"], params["w12_b"],
      params["w3_w"], params["w3_b"], params["ls2"],
      params["norm_g"], params["norm_b"])


# ---------------------------------------------------------------------------
# Config / synthetic frozen parameters / forward
# ---------------------------------------------------------------------------
class DinoConfig:
    img_size = 16
    patch_size = 4
    in_chans = 3
    embed_dim = 128        # latent_dim of the synthetic encoder (real vitg14: 1536)
    depth = 2              # real vitg14: 40
    num_heads = 4          # real vitg14: 24
    swiglu_hidden = 256    # lane-dense stand-in for the real SwiGLU hidden dim
    eps = 1e-6
    seq_pad = 24           # 17 tokens padded to a multiple of 8 sublanes
    cpp_pad = 128          # 48 conv-patch features zero-padded to 128 lanes


def init_params(cfg, key):
    """Deterministic synthetic stand-in for the frozen DINOv2 checkpoint.

    Frozen-weight folds done once at init:
      * attention scale 1/sqrt(Dh) folded into the q columns of qkv_w / qkv_b,
      * conv bias + position embedding + cls token folded into pos_base,
      * conv-patch weight zero-padded to a lane-dense feature dim,
      * matmul weights pre-cast to bf16, per-block weights stacked over depth.
    """
    # TODO(synk): real DINOv2 weights come from torch.hub; synthetic here.
    D = cfg.embed_dim
    P = cfg.patch_size
    C = cfg.in_chans
    H = cfg.num_heads
    Dh = D // H
    hid = cfg.swiglu_hidden
    depth = cfg.depth
    Np = (cfg.img_size // P) ** 2
    S = Np + 1
    S_pad = cfg.seq_pad
    CPP = C * P * P
    CPPp = cfg.cpp_pad

    ks = iter(jax.random.split(key, 12))

    def nrm(shape, scale=0.02):
        return scale * jax.random.normal(next(ks), shape, dtype=jnp.float32)

    # patch embed (conv as matmul), zero rows beyond the real feature dim
    patch_w = jnp.pad(nrm((CPP, D)), ((0, CPPp - CPP), (0, 0)))
    patch_b = nrm((1, D))
    cls_tok = nrm((1, D))
    pos = nrm((S, D))

    # pos_base: row 0 = cls + pos[0]; rows 1..Np = pos[1:] + conv bias; pads = 0
    pos_base = jnp.zeros((S_pad, D), jnp.float32)
    pos_base = pos_base.at[0:1, :].set(cls_tok + pos[0:1, :])
    pos_base = pos_base.at[1:S, :].set(pos[1:, :] + patch_b)

    # fused QKV with the attention scale folded into the q block
    scale = 1.0 / (Dh ** 0.5)
    qkv_w = nrm((depth, D, 3 * D))
    qkv_w = qkv_w.at[:, :, :D].multiply(scale)
    qkv_b = nrm((depth, 1, 3 * D))
    qkv_b = qkv_b.at[:, :, :D].multiply(scale)

    return {
        "patch_w": patch_w.astype(jnp.bfloat16),
        "pos_base": pos_base,
        "ln1_g": jnp.ones((depth, 1, D), jnp.float32),
        "ln1_b": jnp.zeros((depth, 1, D), jnp.float32),
        "qkv_w": qkv_w.astype(jnp.bfloat16),
        "qkv_b": qkv_b,
        "proj_w": nrm((depth, D, D)).astype(jnp.bfloat16),
        "proj_b": jnp.zeros((depth, 1, D), jnp.float32),
        "ls1": nrm((depth, 1, D), scale=0.1),
        "ln2_g": jnp.ones((depth, 1, D), jnp.float32),
        "ln2_b": jnp.zeros((depth, 1, D), jnp.float32),
        "w12_w": nrm((depth, D, 2 * hid)).astype(jnp.bfloat16),
        "w12_b": jnp.zeros((depth, 1, 2 * hid), jnp.float32),
        "w3_w": nrm((depth, hid, D)).astype(jnp.bfloat16),
        "w3_b": jnp.zeros((depth, 1, D), jnp.float32),
        "ls2": nrm((depth, 1, D), scale=0.1),
        "norm_g": jnp.ones((1, D), jnp.float32),
        "norm_b": jnp.zeros((1, D), jnp.float32),
    }


def extract_patches_nchw(x, patch):
    """x: (B, C, H, W) NCHW -> (B, n_patches, C*patch*patch), conv-weight order."""
    B, C, H, W = x.shape
    gh, gw = H // patch, W // patch
    x = x.reshape(B, C, gh, patch, gw, patch)
    x = jnp.transpose(x, (0, 2, 4, 1, 3, 5))          # (B, gh, gw, C, p, p)
    return x.reshape(B, gh * gw, C * patch * patch)


def dinov2_forward(params, x, cfg):
    """DINOv2 encoder forward: NCHW image -> (B, embed_dim) CLS embedding."""
    B = x.shape[0]
    P = cfg.patch_size
    Np = (cfg.img_size // P) ** 2
    CPP = cfg.in_chans * P * P
    S_pad = cfg.seq_pad
    CPPp = cfg.cpp_pad

    # layout glue (pure XLA): patch extraction, feature / token-slot padding.
    patches = extract_patches_nchw(x.astype(jnp.float32), P)      # (B, Np, CPP)
    # row 0 = cls slot (zeros), rows 1..Np = patches, rows Np+1.. = padding
    patches = jnp.pad(patches, ((0, 0), (1, S_pad - 1 - Np), (0, CPPp - CPP)))
    patches = patches.reshape(B * S_pad, CPPp).astype(jnp.bfloat16)

    pos_base = jnp.tile(params["pos_base"], (B, 1))                # (B*S_pad, D)

    return dino_encoder(patches, pos_base, params, cfg, B)


# ---------------------------------------------------------------------------
if __name__ == "__main__":
    cfg = DinoConfig()
    key = jax.random.PRNGKey(0)
    pkey, xkey = jax.random.split(key)

    params = init_params(cfg, pkey)

    # input image batch, NCHW like the PyTorch module
    x = jax.random.normal(xkey, (2, cfg.in_chans, cfg.img_size, cfg.img_size),
                          dtype=jnp.float32)

    fwd = jax.jit(lambda p, inp: dinov2_forward(p, inp, cfg))
    out = jax.block_until_ready(fwd(params, x))

    assert out.shape == (2, cfg.embed_dim)
    assert bool(jnp.all(jnp.isfinite(out)))
    print("KERNEL_OK")
</pallas_src>

<mosaic_0001>
module attributes {stable_mosaic.version = 11 : i64} {
  func.func @_dino_encoder_kernel(%arg0: i32, %arg1: memref<48x128xbf16, #tpu.memory_space<vmem>>, %arg2: memref<128x128xbf16, #tpu.memory_space<vmem>>, %arg3: memref<48x128xf32, #tpu.memory_space<vmem>>, %arg4: memref<1x1x128xf32, #tpu.memory_space<vmem>>, %arg5: memref<1x1x128xf32, #tpu.memory_space<vmem>>, %arg6: memref<1x128x384xbf16, #tpu.memory_space<vmem>>, %arg7: memref<1x1x384xf32, #tpu.memory_space<vmem>>, %arg8: memref<1x128x128xbf16, #tpu.memory_space<vmem>>, %arg9: memref<1x1x128xf32, #tpu.memory_space<vmem>>, %arg10: memref<1x1x128xf32, #tpu.memory_space<vmem>>, %arg11: memref<1x1x128xf32, #tpu.memory_space<vmem>>, %arg12: memref<1x1x128xf32, #tpu.memory_space<vmem>>, %arg13: memref<1x128x512xbf16, #tpu.memory_space<vmem>>, %arg14: memref<1x1x512xf32, #tpu.memory_space<vmem>>, %arg15: memref<1x256x128xbf16, #tpu.memory_space<vmem>>, %arg16: memref<1x1x128xf32, #tpu.memory_space<vmem>>, %arg17: memref<1x1x128xf32, #tpu.memory_space<vmem>>, %arg18: memref<1x128xf32, #tpu.memory_space<vmem>>, %arg19: memref<1x128xf32, #tpu.memory_space<vmem>>, %arg20: memref<2x128xf32, #tpu.memory_space<vmem>>, %arg21: memref<48x128xf32, #tpu.memory_space<vmem>>, %arg22: memref<48x128xf32, #tpu.memory_space<vmem>>) attributes {dimension_semantics = [#tpu.dimension_semantics<arbitrary>], iteration_bounds = array<i64: 2>, scalar_prefetch = 0 : i64, scratch_operands = 2 : i64, tpu.core_type = #tpu.core_type<tc>, window_params = [{pipeline_mode = #tpu.pipeline_mode<synchronous>, transform_indices = @transform_0, window_bounds = array<i64: 48, 128>}, {pipeline_mode = #tpu.pipeline_mode<synchronous>, transform_indices = @transform_1, window_bounds = array<i64: 128, 128>}, {pipeline_mode = #tpu.pipeline_mode<synchronous>, transform_indices = @transform_2, window_bounds = array<i64: 48, 128>}, {transform_indices = @transform_3, window_bounds = array<i64: 1, 1, 128>}, {transform_indices = @transform_4, window_bounds = array<i64: 1, 1, 128>}, {transform_indices = @transform_5, window_bounds = array<i64: 1, 128, 384>}, {transform_indices = @transform_6, window_bounds = array<i64: 1, 1, 384>}, {transform_indices = @transform_7, window_bounds = array<i64: 1, 128, 128>}, {transform_indices = @transform_8, window_bounds = array<i64: 1, 1, 128>}, {transform_indices = @transform_9, window_bounds = array<i64: 1, 1, 128>}, {transform_indices = @transform_10, window_bounds = array<i64: 1, 1, 128>}, {transform_indices = @transform_11, window_bounds = array<i64: 1, 1, 128>}, {transform_indices = @transform_12, window_bounds = array<i64: 1, 128, 512>}, {transform_indices = @transform_13, window_bounds = array<i64: 1, 1, 512>}, {transform_indices = @transform_14, window_bounds = array<i64: 1, 256, 128>}, {transform_indices = @transform_15, window_bounds = array<i64: 1, 1, 128>}, {transform_indices = @transform_16, window_bounds = array<i64: 1, 1, 128>}, {pipeline_mode = #tpu.pipeline_mode<synchronous>, transform_indices = @transform_17, window_bounds = array<i64: 1, 128>}, {pipeline_mode = #tpu.pipeline_mode<synchronous>, transform_indices = @transform_18, window_bounds = array<i64: 1, 128>}, {pipeline_mode = #tpu.pipeline_mode<synchronous>, transform_indices = @transform_19, window_bounds = array<i64: 2, 128>}]} {
    %c0_i32 = arith.constant 0 : i32
    %0 = arith.cmpi eq, %arg0, %c0_i32 : i32
    %1 = arith.extui %0 : i1 to i32
    %c0_i32_0 = arith.constant 0 : i32
    %2 = arith.cmpi ne, %1, %c0_i32_0 : i32
    scf.if %2 {
      %c0_116 = arith.constant 0 : index
      %c0_117 = arith.constant 0 : index
      %287 = vector.load %arg1[%c0_116, %c0_117] : memref<48x128xbf16, #tpu.memory_space<vmem>>, vector<48x128xbf16>
      %c0_118 = arith.constant 0 : index
      %c0_119 = arith.constant 0 : index
      %288 = vector.load %arg2[%c0_118, %c0_119] : memref<128x128xbf16, #tpu.memory_space<vmem>>, vector<128x128xbf16>
      %cst_120 = arith.constant dense<0.000000e+00> : vector<48x128xf32>
      %289 = tpu.matmul %287, %288, %cst_120 {dimension_numbers = #tpu.dot_dimension_numbers<[1], [0], [0], [1], [0, 0, 1, 1], [], []>} : vector<48x128xbf16>, vector<128x128xbf16>, vector<48x128xf32> -> vector<48x128xf32>
      %c0_121 = arith.constant 0 : index
      %c0_122 = arith.constant 0 : index
      %290 = vector.load %arg3[%c0_121, %c0_122] : memref<48x128xf32, #tpu.memory_space<vmem>>, vector<48x128xf32>
      %291 = arith.addf %289, %290 : vector<48x128xf32>
      %c0_123 = arith.constant 0 : index
      %c0_124 = arith.constant 0 : index
      %292 = vector.load %arg21[%c0_123, %c0_124] : memref<48x128xf32, #tpu.memory_space<vmem>>, vector<48x128xf32>
      tpu.vector_store %arg21[%c0_123, %c0_124], %291 {strides = array<i32>} : memref<48x128xf32, #tpu.memory_space<vmem>>, vector<48x128xf32>,
    } else {
    }
    %c0 = arith.constant 0 : index
    %c0_1 = arith.constant 0 : index
    %3 = vector.load %arg21[%c0, %c0_1] : memref<48x128xf32, #tpu.memory_space<vmem>>, vector<48x128xf32>
    %c0_2 = arith.constant 0 : index
    %c0_3 = arith.constant 0 : index
    %c0_4 = arith.constant 0 : index
    %4 = vector.load %arg4[%c0_2, %c0_3, %c0_4] : memref<1x1x128xf32, #tpu.memory_space<vmem>>, vector<1x1x128xf32>
    %5 = vector.shape_cast %4 : vector<1x1x128xf32> to vector<1x128xf32>
    %c0_5 = arith.constant 0 : index
    %c0_6 = arith.constant 0 : index
    %c0_7 = arith.constant 0 : index
    %6 = vector.load %arg5[%c0_5, %c0_6, %c0_7] : memref<1x1x128xf32, #tpu.memory_space<vmem>>, vector<1x1x128xf32>
    %7 = vector.shape_cast %6 : vector<1x1x128xf32> to vector<1x128xf32>
    %cst = arith.constant dense<0.000000e+00> : vector<48xf32>
    %8 = vector.multi_reduction <add>, %3, %cst [1] : vector<48x128xf32> to vector<48xf32>
    %9 = vector.shape_cast %8 : vector<48xf32> to vector<48x1xf32>
    %cst_8 = arith.constant 1.280000e+02 : f32
    %10 = vector.broadcast %cst_8 : f32 to vector<48x1xf32>
    %11 = arith.divf %9, %10 : vector<48x1xf32>
    %12 = vector.broadcast %11 : vector<48x1xf32> to vector<48x128xf32>
    %13 = arith.subf %3, %12 : vector<48x128xf32>
    %14 = arith.mulf %13, %13 : vector<48x128xf32>
    %cst_9 = arith.constant dense<0.000000e+00> : vector<48xf32>
    %15 = vector.multi_reduction <add>, %14, %cst_9 [1] : vector<48x128xf32> to vector<48xf32>
    %16 = vector.shape_cast %15 : vector<48xf32> to vector<48x1xf32>
    %cst_10 = arith.constant 1.280000e+02 : f32
    %17 = vector.broadcast %cst_10 : f32 to vector<48x1xf32>
    %18 = arith.divf %16, %17 : vector<48x1xf32>
    %cst_11 = arith.constant 9.99999997E-7 : f32
    %19 = vector.broadcast %cst_11 : f32 to vector<48x1xf32>
    %20 = arith.addf %18, %19 : vector<48x1xf32>
    %21 = math.rsqrt %20 : vector<48x1xf32>
    %22 = vector.broadcast %21 : vector<48x1xf32> to vector<48x128xf32>
    %23 = arith.mulf %13, %22 : vector<48x128xf32>
    %24 = vector.broadcast %5 : vector<1x128xf32> to vector<48x128xf32>
    %25 = arith.mulf %23, %24 : vector<48x128xf32>
    %26 = vector.broadcast %7 : vector<1x128xf32> to vector<48x128xf32>
    %27 = arith.addf %25, %26 : vector<48x128xf32>
    %c0_12 = arith.constant 0 : index
    %c0_13 = arith.constant 0 : index
    %c0_14 = arith.constant 0 : index
    %28 = vector.load %arg6[%c0_12, %c0_13, %c0_14] : memref<1x128x384xbf16, #tpu.memory_space<vmem>>, vector<1x128x384xbf16>
    %29 = vector.shape_cast %28 : vector<1x128x384xbf16> to vector<128x384xbf16>
    %c0_15 = arith.constant 0 : index
    %c0_16 = arith.constant 0 : index
    %c0_17 = arith.constant 0 : index
    %30 = vector.load %arg7[%c0_15, %c0_16, %c0_17] : memref<1x1x384xf32, #tpu.memory_space<vmem>>, vector<1x1x384xf32>
    %31 = vector.shape_cast %30 : vector<1x1x384xf32> to vector<1x384xf32>
    %32 = arith.truncf %27 : vector<48x128xf32> to vector<48x128xbf16>
    %cst_18 = arith.constant dense<0.000000e+00> : vector<48x384xf32>
    %33 = tpu.matmul %32, %29, %cst_18 {dimension_numbers = #tpu.dot_dimension_numbers<[1], [0], [0], [1], [0, 0, 1, 1], [], []>} : vector<48x128xbf16>, vector<128x384xbf16>, vector<48x384xf32> -> vector<48x384xf32>
    %34 = vector.broadcast %31 : vector<1x384xf32> to vector<48x384xf32>
    %35 = arith.addf %33, %34 : vector<48x384xf32>
    %36 = tpu.iota {dimensions = array<i32: 1>} : vector<24x24xi32>
    %c17_i32 = arith.constant 17 : i32
    %37 = vector.broadcast %c17_i32 : i32 to vector<24x24xi32>
    %38 = arith.cmpi slt, %36, %37 : vector<24x24xi32>
    %39 = vector.extract_strided_slice %35 {offsets = [0, 0], sizes = [24, 32], strides = [1, 1]} : vector<48x384xf32> to vector<24x32xf32>
    %40 = arith.truncf %39 : vector<24x32xf32> to vector<24x32xbf16>
    %41 = vector.extract_strided_slice %35 {offsets = [0, 128], sizes = [24, 32], strides = [1, 1]} : vector<48x384xf32> to vector<24x32xf32>
    %42 = arith.truncf %41 : vector<24x32xf32> to vector<24x32xbf16>
    %43 = vector.extract_strided_slice %35 {offsets = [0, 256], sizes = [24, 32], strides = [1, 1]} : vector<48x384xf32> to vector<24x32xf32>
    %44 = arith.truncf %43 : vector<24x32xf32> to vector<24x32xbf16>
    %cst_19 = arith.constant dense<0.000000e+00> : vector<24x24xf32>
    %45 = tpu.matmul %40, %42, %cst_19 {dimension_numbers = #tpu.dot_dimension_numbers<[1], [1], [0], [0], [0, 0, 1, 0], [], []>} : vector<24x32xbf16>, vector<24x32xbf16>, vector<24x24xf32> -> vector<24x24xf32>
    %cst_20 = arith.constant -1.000000e+30 : f32
    %46 = vector.broadcast %cst_20 : f32 to vector<24x24xf32>
    %47 = arith.select %38, %45, %46 : vector<24x24xi1>, vector<24x24xf32>
    %cst_21 = arith.constant dense<0xFF800000> : vector<24xf32>
    %48 = vector.multi_reduction <maximumf>, %47, %cst_21 [1] : vector<24x24xf32> to vector<24xf32>
    %49 = vector.shape_cast %48 : vector<24xf32> to vector<24x1xf32>
    %50 = vector.broadcast %49 : vector<24x1xf32> to vector<24x24xf32>
    %51 = arith.subf %47, %50 : vector<24x24xf32>
    %52 = math.exp %51 : vector<24x24xf32>
    %cst_22 = arith.constant dense<0.000000e+00> : vector<24xf32>
    %53 = vector.multi_reduction <add>, %52, %cst_22 [1] : vector<24x24xf32> to vector<24xf32>
    %54 = vector.shape_cast %53 : vector<24xf32> to vector<24x1xf32>
    %55 = tpu.reciprocal %54 {approx = true} : vector<24x1xf32> -> vector<24x1xf32>
    %56 = vector.broadcast %55 : vector<24x1xf32> to vector<24x24xf32>
    %57 = arith.mulf %52, %56 : vector<24x24xf32>
    %58 = arith.truncf %57 : vector<24x24xf32> to vector<24x24xbf16>
    %cst_23 = arith.constant dense<0.000000e+00> : vector<24x32xf32>
    %59 = tpu.matmul %58, %44, %cst_23 {dimension_numbers = #tpu.dot_dimension_numbers<[1], [0], [0], [1], [0, 0, 1, 1], [], []>} : vector<24x24xbf16>, vector<24x32xbf16>, vector<24x32xf32> -> vector<24x32xf32>
    %c0_24 = arith.constant 0 : index
    %c0_25 = arith.constant 0 : index
    %60 = vector.load %arg22[%c0_24, %c0_25] : memref<48x128xf32, #tpu.memory_space<vmem>>, vector<24x32xf32>
    tpu.vector_store %arg22[%c0_24, %c0_25], %59 {strides = array<i32>} : memref<48x128xf32, #tpu.memory_space<vmem>>, vector<24x32xf32>,
    %61 = vector.extract_strided_slice %35 {offsets = [0, 32], sizes = [24, 32], strides = [1, 1]} : vector<48x384xf32> to vector<24x32xf32>
    %62 = arith.truncf %61 : vector<24x32xf32> to vector<24x32xbf16>
    %63 = vector.extract_strided_slice %35 {offsets = [0, 160], sizes = [24, 32], strides = [1, 1]} : vector<48x384xf32> to vector<24x32xf32>
    %64 = arith.truncf %63 : vector<24x32xf32> to vector<24x32xbf16>
    %65 = vector.extract_strided_slice %35 {offsets = [0, 288], sizes = [24, 32], strides = [1, 1]} : vector<48x384xf32> to vector<24x32xf32>
    %66 = arith.truncf %65 : vector<24x32xf32> to vector<24x32xbf16>
    %cst_26 = arith.constant dense<0.000000e+00> : vector<24x24xf32>
    %67 = tpu.matmul %62, %64, %cst_26 {dimension_numbers = #tpu.dot_dimension_numbers<[1], [1], [0], [0], [0, 0, 1, 0], [], []>} : vector<24x32xbf16>, vector<24x32xbf16>, vector<24x24xf32> -> vector<24x24xf32>
    %cst_27 = arith.constant -1.000000e+30 : f32
    %68 = vector.broadcast %cst_27 : f32 to vector<24x24xf32>
    %69 = arith.select %38, %67, %68 : vector<24x24xi1>, vector<24x24xf32>
    %cst_28 = arith.constant dense<0xFF800000> : vector<24xf32>
    %70 = vector.multi_reduction <maximumf>, %69, %cst_28 [1] : vector<24x24xf32> to vector<24xf32>
    %71 = vector.shape_cast %70 : vector<24xf32> to vector<24x1xf32>
    %72 = vector.broadcast %71 : vector<24x1xf32> to vector<24x24xf32>
    %73 = arith.subf %69, %72 : vector<24x24xf32>
    %74 = math.exp %73 : vector<24x24xf32>
    %cst_29 = arith.constant dense<0.000000e+00> : vector<24xf32>
    %75 = vector.multi_reduction <add>, %74, %cst_29 [1] : vector<24x24xf32> to vector<24xf32>
    %76 = vector.shape_cast %75 : vector<24xf32> to vector<24x1xf32>
    %77 = tpu.reciprocal %76 {approx = true} : vector<24x1xf32> -> vector<24x1xf32>
    %78 = vector.broadcast %77 : vector<24x1xf32> to vector<24x24xf32>
    %79 = arith.mulf %74, %78 : vector<24x24xf32>
    %80 = arith.truncf %79 : vector<24x24xf32> to vector<24x24xbf16>
    %cst_30 = arith.constant dense<0.000000e+00> : vector<24x32xf32>
    %81 = tpu.matmul %80, %66, %cst_30 {dimension_numbers = #tpu.dot_dimension_numbers<[1], [0], [0], [1], [0, 0, 1, 1], [], []>} : vector<24x24xbf16>, vector<24x32xbf16>, vector<24x32xf32> -> vector<24x32xf32>
    %c0_31 = arith.constant 0 : index
    %c32 = arith.constant 32 : index
    %82 = vector.load %arg22[%c0_31, %c32] : memref<48x128xf32, #tpu.memory_space<vmem>>, vector<24x32xf32>
    tpu.vector_store %arg22[%c0_31, %c32], %81 {strides = array<i32>} : memref<48x128xf32, #tpu.memory_space<vmem>>, vector<24x32xf32>,
    %83 = vector.extract_strided_slice %35 {offsets = [0, 64], sizes = [24, 32], strides = [1, 1]} : vector<48x384xf32> to vector<24x32xf32>
    %84 = arith.truncf %83 : vector<24x32xf32> to vector<24x32xbf16>
    %85 = vector.extract_strided_slice %35 {offsets = [0, 192], sizes = [24, 32], strides = [1, 1]} : vector<48x384xf32> to vector<24x32xf32>
    %86 = arith.truncf %85 : vector<24x32xf32> to vector<24x32xbf16>
    %87 = vector.extract_strided_slice %35 {offsets = [0, 320], sizes = [24, 32], strides = [1, 1]} : vector<48x384xf32> to vector<24x32xf32>
    %88 = arith.truncf %87 : vector<24x32xf32> to vector<24x32xbf16>
    %cst_32 = arith.constant dense<0.000000e+00> : vector<24x24xf32>
    %89 = tpu.matmul %84, %86, %cst_32 {dimension_numbers = #tpu.dot_dimension_numbers<[1], [1], [0], [0], [0, 0, 1, 0], [], []>} : vector<24x32xbf16>, vector<24x32xbf16>, vector<24x24xf32> -> vector<24x24xf32>
    %cst_33 = arith.constant -1.000000e+30 : f32
    %90 = vector.broadcast %cst_33 : f32 to vector<24x24xf32>
    %91 = arith.select %38, %89, %90 : vector<24x24xi1>, vector<24x24xf32>
    %cst_34 = arith.constant dense<0xFF800000> : vector<24xf32>
    %92 = vector.multi_reduction <maximumf>, %91, %cst_34 [1] : vector<24x24xf32> to vector<24xf32>
    %93 = vector.shape_cast %92 : vector<24xf32> to vector<24x1xf32>
    %94 = vector.broadcast %93 : vector<24x1xf32> to vector<24x24xf32>
    %95 = arith.subf %91, %94 : vector<24x24xf32>
    %96 = math.exp %95 : vector<24x24xf32>
    %cst_35 = arith.constant dense<0.000000e+00> : vector<24xf32>
    %97 = vector.multi_reduction <add>, %96, %cst_35 [1] : vector<24x24xf32> to vector<24xf32>
    %98 = vector.shape_cast %97 : vector<24xf32> to vector<24x1xf32>
    %99 = tpu.reciprocal %98 {approx = true} : vector<24x1xf32> -> vector<24x1xf32>
    %100 = vector.broadcast %99 : vector<24x1xf32> to vector<24x24xf32>
    %101 = arith.mulf %96, %100 : vector<24x24xf32>
    %102 = arith.truncf %101 : vector<24x24xf32> to vector<24x24xbf16>
    %cst_36 = arith.constant dense<0.000000e+00> : vector<24x32xf32>
    %103 = tpu.matmul %102, %88, %cst_36 {dimension_numbers = #tpu.dot_dimension_numbers<[1], [0], [0], [1], [0, 0, 1, 1], [], []>} : vector<24x24xbf16>, vector<24x32xbf16>, vector<24x32xf32> -> vector<24x32xf32>
    %c0_37 = arith.constant 0 : index
    %c64 = arith.constant 64 : index
    %104 = vector.load %arg22[%c0_37, %c64] : memref<48x128xf32, #tpu.memory_space<vmem>>, vector<24x32xf32>
    tpu.vector_store %arg22[%c0_37, %c64], %103 {strides = array<i32>} : memref<48x128xf32, #tpu.memory_space<vmem>>, vector<24x32xf32>,
    %105 = vector.extract_strided_slice %35 {offsets = [0, 96], sizes = [24, 32], strides = [1, 1]} : vector<48x384xf32> to vector<24x32xf32>
    %106 = arith.truncf %105 : vector<24x32xf32> to vector<24x32xbf16>
    %107 = vector.extract_strided_slice %35 {offsets = [0, 224], sizes = [24, 32], strides = [1, 1]} : vector<48x384xf32> to vector<24x32xf32>
    %108 = arith.truncf %107 : vector<24x32xf32> to vector<24x32xbf16>
    %109 = vector.extract_strided_slice %35 {offsets = [0, 352], sizes = [24, 32], strides = [1, 1]} : vector<48x384xf32> to vector<24x32xf32>
    %110 = arith.truncf %109 : vector<24x32xf32> to vector<24x32xbf16>
    %cst_38 = arith.constant dense<0.000000e+00> : vector<24x24xf32>
    %111 = tpu.matmul %106, %108, %cst_38 {dimension_numbers = #tpu.dot_dimension_numbers<[1], [1], [0], [0], [0, 0, 1, 0], [], []>} : vector<24x32xbf16>, vector<24x32xbf16>, vector<24x24xf32> -> vector<24x24xf32>
    %cst_39 = arith.constant -1.000000e+30 : f32
    %112 = vector.broadcast %cst_39 : f32 to vector<24x24xf32>
    %113 = arith.select %38, %111, %112 : vector<24x24xi1>, vector<24x24xf32>
    %cst_40 = arith.constant dense<0xFF800000> : vector<24xf32>
    %114 = vector.multi_reduction <maximumf>, %113, %cst_40 [1] : vector<24x24xf32> to vector<24xf32>
    %115 = vector.shape_cast %114 : vector<24xf32> to vector<24x1xf32>
    %116 = vector.broadcast %115 : vector<24x1xf32> to vector<24x24xf32>
    %117 = arith.subf %113, %116 : vector<24x24xf32>
    %118 = math.exp %117 : vector<24x24xf32>
    %cst_41 = arith.constant dense<0.000000e+00> : vector<24xf32>
    %119 = vector.multi_reduction <add>, %118, %cst_41 [1] : vector<24x24xf32> to vector<24xf32>
    %120 = vector.shape_cast %119 : vector<24xf32> to vector<24x1xf32>
    %121 = tpu.reciprocal %120 {approx = true} : vector<24x1xf32> -> vector<24x1xf32>
    %122 = vector.broadcast %121 : vector<24x1xf32> to vector<24x24xf32>
    %123 = arith.mulf %118, %122 : vector<24x24xf32>
    %124 = arith.truncf %123 : vector<24x24xf32> to vector<24x24xbf16>
    %cst_42 = arith.constant dense<0.000000e+00> : vector<24x32xf32>
    %125 = tpu.matmul %124, %110, %cst_42 {dimension_numbers = #tpu.dot_dimension_numbers<[1], [0], [0], [1], [0, 0, 1, 1], [], []>} : vector<24x24xbf16>, vector<24x32xbf16>, vector<24x32xf32> -> vector<24x32xf32>
    %c0_43 = arith.constant 0 : index
    %c96 = arith.constant 96 : index
    %126 = vector.load %arg22[%c0_43, %c96] : memref<48x128xf32, #tpu.memory_space<vmem>>, vector<24x32xf32>
    tpu.vector_store %arg22[%c0_43, %c96], %125 {strides = array<i32>} : memref<48x128xf32, #tpu.memory_space<vmem>>, vector<24x32xf32>,
    %127 = vector.extract_strided_slice %35 {offsets = [24, 0], sizes = [24, 32], strides = [1, 1]} : vector<48x384xf32> to vector<24x32xf32>
    %128 = arith.truncf %127 : vector<24x32xf32> to vector<24x32xbf16>
    %129 = vector.extract_strided_slice %35 {offsets = [24, 128], sizes = [24, 32], strides = [1, 1]} : vector<48x384xf32> to vector<24x32xf32>
    %130 = arith.truncf %129 : vector<24x32xf32> to vector<24x32xbf16>
    %131 = vector.extract_strided_slice %35 {offsets = [24, 256], sizes = [24, 32], strides = [1, 1]} : vector<48x384xf32> to vector<24x32xf32>
    %132 = arith.truncf %131 : vector<24x32xf32> to vector<24x32xbf16>
    %cst_44 = arith.constant dense<0.000000e+00> : vector<24x24xf32>
    %133 = tpu.matmul %128, %130, %cst_44 {dimension_numbers = #tpu.dot_dimension_numbers<[1], [1], [0], [0], [0, 0, 1, 0], [], []>} : vector<24x32xbf16>, vector<24x32xbf16>, vector<24x24xf32> -> vector<24x24xf32>
    %cst_45 = arith.constant -1.000000e+30 : f32
    %134 = vector.broadcast %cst_45 : f32 to vector<24x24xf32>
    %135 = arith.select %38, %133, %134 : vector<24x24xi1>, vector<24x24xf32>
    %cst_46 = arith.constant dense<0xFF800000> : vector<24xf32>
    %136 = vector.multi_reduction <maximumf>, %135, %cst_46 [1] : vector<24x24xf32> to vector<24xf32>
    %137 = vector.shape_cast %136 : vector<24xf32> to vector<24x1xf32>
    %138 = vector.broadcast %137 : vector<24x1xf32> to vector<24x24xf32>
    %139 = arith.subf %135, %138 : vector<24x24xf32>
    %140 = math.exp %139 : vector<24x24xf32>
    %cst_47 = arith.constant dense<0.000000e+00> : vector<24xf32>
    %141 = vector.multi_reduction <add>, %140, %cst_47 [1] : vector<24x24xf32> to vector<24xf32>
    %142 = vector.shape_cast %141 : vector<24xf32> to vector<24x1xf32>
    %143 = tpu.reciprocal %142 {approx = true} : vector<24x1xf32> -> vector<24x1xf32>
    %144 = vector.broadcast %143 : vector<24x1xf32> to vector<24x24xf32>
    %145 = arith.mulf %140, %144 : vector<24x24xf32>
    %146 = arith.truncf %145 : vector<24x24xf32> to vector<24x24xbf16>
    %cst_48 = arith.constant dense<0.000000e+00> : vector<24x32xf32>
    %147 = tpu.matmul %146, %132, %cst_48 {dimension_numbers = #tpu.dot_dimension_numbers<[1], [0], [0], [1], [0, 0, 1, 1], [], []>} : vector<24x24xbf16>, vector<24x32xbf16>, vector<24x32xf32> -> vector<24x32xf32>
    %c24 = arith.constant 24 : index
    %c0_49 = arith.constant 0 : index
    %148 = vector.load %arg22[%c24, %c0_49] : memref<48x128xf32, #tpu.memory_space<vmem>>, vector<24x32xf32>
    tpu.vector_store %arg22[%c24, %c0_49], %147 {strides = array<i32>} : memref<48x128xf32, #tpu.memory_space<vmem>>, vector<24x32xf32>,
    %149 = vector.extract_strided_slice %35 {offsets = [24, 32], sizes = [24, 32], strides = [1, 1]} : vector<48x384xf32> to vector<24x32xf32>
    %150 = arith.truncf %149 : vector<24x32xf32> to vector<24x32xbf16>
    %151 = vector.extract_strided_slice %35 {offsets = [24, 160], sizes = [24, 32], strides = [1, 1]} : vector<48x384xf32> to vector<24x32xf32>
    %152 = arith.truncf %151 : vector<24x32xf32> to vector<24x32xbf16>
    %153 = vector.extract_strided_slice %35 {offsets = [24, 288], sizes = [24, 32], strides = [1, 1]} : vector<48x384xf32> to vector<24x32xf32>
    %154 = arith.truncf %153 : vector<24x32xf32> to vector<24x32xbf16>
    %cst_50 = arith.constant dense<0.000000e+00> : vector<24x24xf32>
    %155 = tpu.matmul %150, %152, %cst_50 {dimension_numbers = #tpu.dot_dimension_numbers<[1], [1], [0], [0], [0, 0, 1, 0], [], []>} : vector<24x32xbf16>, vector<24x32xbf16>, vector<24x24xf32> -> vector<24x24xf32>
    %cst_51 = arith.constant -1.000000e+30 : f32
    %156 = vector.broadcast %cst_51 : f32 to vector<24x24xf32>
    %157 = arith.select %38, %155, %156 : vector<24x24xi1>, vector<24x24xf32>
    %cst_52 = arith.constant dense<0xFF800000> : vector<24xf32>
    %158 = vector.multi_reduction <maximumf>, %157, %cst_52 [1] : vector<24x24xf32> to vector<24xf32>
    %159 = vector.shape_cast %158 : vector<24xf32> to vector<24x1xf32>
    %160 = vector.broadcast %159 : vector<24x1xf32> to vector<24x24xf32>
    %161 = arith.subf %157, %160 : vector<24x24xf32>
    %162 = math.exp %161 : vector<24x24xf32>
    %cst_53 = arith.constant dense<0.000000e+00> : vector<24xf32>
    %163 = vector.multi_reduction <add>, %162, %cst_53 [1] : vector<24x24xf32> to vector<24xf32>
    %164 = vector.shape_cast %163 : vector<24xf32> to vector<24x1xf32>
    %165 = tpu.reciprocal %164 {approx = true} : vector<24x1xf32> -> vector<24x1xf32>
    %166 = vector.broadcast %165 : vector<24x1xf32> to vector<24x24xf32>
    %167 = arith.mulf %162, %166 : vector<24x24xf32>
    %168 = arith.truncf %167 : vector<24x24xf32> to vector<24x24xbf16>
    %cst_54 = arith.constant dense<0.000000e+00> : vector<24x32xf32>
    %169 = tpu.matmul %168, %154, %cst_54 {dimension_numbers = #tpu.dot_dimension_numbers<[1], [0], [0], [1], [0, 0, 1, 1], [], []>} : vector<24x24xbf16>, vector<24x32xbf16>, vector<24x32xf32> -> vector<24x32xf32>
    %c24_55 = arith.constant 24 : index
    %c32_56 = arith.constant 32 : index
    %170 = vector.load %arg22[%c24_55, %c32_56] : memref<48x128xf32, #tpu.memory_space<vmem>>, vector<24x32xf32>
    tpu.vector_store %arg22[%c24_55, %c32_56], %169 {strides = array<i32>} : memref<48x128xf32, #tpu.memory_space<vmem>>, vector<24x32xf32>,
    %171 = vector.extract_strided_slice %35 {offsets = [24, 64], sizes = [24, 32], strides = [1, 1]} : vector<48x384xf32> to vector<24x32xf32>
    %172 = arith.truncf %171 : vector<24x32xf32> to vector<24x32xbf16>
    %173 = vector.extract_strided_slice %35 {offsets = [24, 192], sizes = [24, 32], strides = [1, 1]} : vector<48x384xf32> to vector<24x32xf32>
    %174 = arith.truncf %173 : vector<24x32xf32> to vector<24x32xbf16>
    %175 = vector.extract_strided_slice %35 {offsets = [24, 320], sizes = [24, 32], strides = [1, 1]} : vector<48x384xf32> to vector<24x32xf32>
    %176 = arith.truncf %175 : vector<24x32xf32> to vector<24x32xbf16>
    %cst_57 = arith.constant dense<0.000000e+00> : vector<24x24xf32>
    %177 = tpu.matmul %172, %174, %cst_57 {dimension_numbers = #tpu.dot_dimension_numbers<[1], [1], [0], [0], [0, 0, 1, 0], [], []>} : vector<24x32xbf16>, vector<24x32xbf16>, vector<24x24xf32> -> vector<24x24xf32>
    %cst_58 = arith.constant -1.000000e+30 : f32
    %178 = vector.broadcast %cst_58 : f32 to vector<24x24xf32>
    %179 = arith.select %38, %177, %178 : vector<24x24xi1>, vector<24x24xf32>
    %cst_59 = arith.constant dense<0xFF800000> : vector<24xf32>
    %180 = vector.multi_reduction <maximumf>, %179, %cst_59 [1] : vector<24x24xf32> to vector<24xf32>
    %181 = vector.shape_cast %180 : vector<24xf32> to vector<24x1xf32>
    %182 = vector.broadcast %181 : vector<24x1xf32> to vector<24x24xf32>
    %183 = arith.subf %179, %182 : vector<24x24xf32>
    %184 = math.exp %183 : vector<24x24xf32>
    %cst_60 = arith.constant dense<0.000000e+00> : vector<24xf32>
    %185 = vector.multi_reduction <add>, %184, %cst_60 [1] : vector<24x24xf32> to vector<24xf32>
    %186 = vector.shape_cast %185 : vector<24xf32> to vector<24x1xf32>
    %187 = tpu.reciprocal %186 {approx = true} : vector<24x1xf32> -> vector<24x1xf32>
    %188 = vector.broadcast %187 : vector<24x1xf32> to vector<24x24xf32>
    %189 = arith.mulf %184, %188 : vector<24x24xf32>
    %190 = arith.truncf %189 : vector<24x24xf32> to vector<24x24xbf16>
    %cst_61 = arith.constant dense<0.000000e+00> : vector<24x32xf32>
    %191 = tpu.matmul %190, %176, %cst_61 {dimension_numbers = #tpu.dot_dimension_numbers<[1], [0], [0], [1], [0, 0, 1, 1], [], []>} : vector<24x24xbf16>, vector<24x32xbf16>, vector<24x32xf32> -> vector<24x32xf32>
    %c24_62 = arith.constant 24 : index
    %c64_63 = arith.constant 64 : index
    %192 = vector.load %arg22[%c24_62, %c64_63] : memref<48x128xf32, #tpu.memory_space<vmem>>, vector<24x32xf32>
    tpu.vector_store %arg22[%c24_62, %c64_63], %191 {strides = array<i32>} : memref<48x128xf32, #tpu.memory_space<vmem>>, vector<24x32xf32>,
    %193 = vector.extract_strided_slice %35 {offsets = [24, 96], sizes = [24, 32], strides = [1, 1]} : vector<48x384xf32> to vector<24x32xf32>
    %194 = arith.truncf %193 : vector<24x32xf32> to vector<24x32xbf16>
    %195 = vector.extract_strided_slice %35 {offsets = [24, 224], sizes = [24, 32], strides = [1, 1]} : vector<48x384xf32> to vector<24x32xf32>
    %196 = arith.truncf %195 : vector<24x32xf32> to vector<24x32xbf16>
    %197 = vector.extract_strided_slice %35 {offsets = [24, 352], sizes = [24, 32], strides = [1, 1]} : vector<48x384xf32> to vector<24x32xf32>
    %198 = arith.truncf %197 : vector<24x32xf32> to vector<24x32xbf16>
    %cst_64 = arith.constant dense<0.000000e+00> : vector<24x24xf32>
    %199 = tpu.matmul %194, %196, %cst_64 {dimension_numbers = #tpu.dot_dimension_numbers<[1], [1], [0], [0], [0, 0, 1, 0], [], []>} : vector<24x32xbf16>, vector<24x32xbf16>, vector<24x24xf32> -> vector<24x24xf32>
    %cst_65 = arith.constant -1.000000e+30 : f32
    %200 = vector.broadcast %cst_65 : f32 to vector<24x24xf32>
    %201 = arith.select %38, %199, %200 : vector<24x24xi1>, vector<24x24xf32>
    %cst_66 = arith.constant dense<0xFF800000> : vector<24xf32>
    %202 = vector.multi_reduction <maximumf>, %201, %cst_66 [1] : vector<24x24xf32> to vector<24xf32>
    %203 = vector.shape_cast %202 : vector<24xf32> to vector<24x1xf32>
    %204 = vector.broadcast %203 : vector<24x1xf32> to vector<24x24xf32>
    %205 = arith.subf %201, %204 : vector<24x24xf32>
    %206 = math.exp %205 : vector<24x24xf32>
    %cst_67 = arith.constant dense<0.000000e+00> : vector<24xf32>
    %207 = vector.multi_reduction <add>, %206, %cst_67 [1] : vector<24x24xf32> to vector<24xf32>
    %208 = vector.shape_cast %207 : vector<24xf32> to vector<24x1xf32>
    %209 = tpu.reciprocal %208 {approx = true} : vector<24x1xf32> -> vector<24x1xf32>
    %210 = vector.broadcast %209 : vector<24x1xf32> to vector<24x24xf32>
    %211 = arith.mulf %206, %210 : vector<24x24xf32>
    %212 = arith.truncf %211 : vector<24x24xf32> to vector<24x24xbf16>
    %cst_68 = arith.constant dense<0.000000e+00> : vector<24x32xf32>
    %213 = tpu.matmul %212, %198, %cst_68 {dimension_numbers = #tpu.dot_dimension_numbers<[1], [0], [0], [1], [0, 0, 1, 1], [], []>} : vector<24x24xbf16>, vector<24x32xbf16>, vector<24x32xf32> -> vector<24x32xf32>
    %c24_69 = arith.constant 24 : index
    %c96_70 = arith.constant 96 : index
    %214 = vector.load %arg22[%c24_69, %c96_70] : memref<48x128xf32, #tpu.memory_space<vmem>>, vector<24x32xf32>
    tpu.vector_store %arg22[%c24_69, %c96_70], %213 {strides = array<i32>} : memref<48x128xf32, #tpu.memory_space<vmem>>, vector<24x32xf32>,
    %c0_71 = arith.constant 0 : index
    %c0_72 = arith.constant 0 : index
    %215 = vector.load %arg22[%c0_71, %c0_72] : memref<48x128xf32, #tpu.memory_space<vmem>>, vector<48x128xf32>
    %c0_73 = arith.constant 0 : index
    %c0_74 = arith.constant 0 : index
    %c0_75 = arith.constant 0 : index
    %216 = vector.load %arg8[%c0_73, %c0_74, %c0_75] : memref<1x128x128xbf16, #tpu.memory_space<vmem>>, vector<1x128x128xbf16>
    %217 = vector.shape_cast %216 : vector<1x128x128xbf16> to vector<128x128xbf16>
    %c0_76 = arith.constant 0 : index
    %c0_77 = arith.constant 0 : index
    %c0_78 = arith.constant 0 : index
    %218 = vector.load %arg9[%c0_76, %c0_77, %c0_78] : memref<1x1x128xf32, #tpu.memory_space<vmem>>, vector<1x1x128xf32>
    %219 = vector.shape_cast %218 : vector<1x1x128xf32> to vector<1x128xf32>
    %220 = arith.truncf %215 : vector<48x128xf32> to vector<48x128xbf16>
    %cst_79 = arith.constant dense<0.000000e+00> : vector<48x128xf32>
    %221 = tpu.matmul %220, %217, %cst_79 {dimension_numbers = #tpu.dot_dimension_numbers<[1], [0], [0], [1], [0, 0, 1, 1], [], []>} : vector<48x128xbf16>, vector<128x128xbf16>, vector<48x128xf32> -> vector<48x128xf32>
    %222 = vector.broadcast %219 : vector<1x128xf32> to vector<48x128xf32>
    %223 = arith.addf %221, %222 : vector<48x128xf32>
    %c0_80 = arith.constant 0 : index
    %c0_81 = arith.constant 0 : index
    %c0_82 = arith.constant 0 : index
    %224 = vector.load %arg10[%c0_80, %c0_81, %c0_82] : memref<1x1x128xf32, #tpu.memory_space<vmem>>, vector<1x1x128xf32>
    %225 = vector.shape_cast %224 : vector<1x1x128xf32> to vector<1x128xf32>
    %226 = vector.broadcast %225 : vector<1x128xf32> to vector<48x128xf32>
    %227 = arith.mulf %226, %223 : vector<48x128xf32>
    %228 = arith.addf %3, %227 : vector<48x128xf32>
    %c0_83 = arith.constant 0 : index
    %c0_84 = arith.constant 0 : index
    %c0_85 = arith.constant 0 : index
    %229 = vector.load %arg11[%c0_83, %c0_84, %c0_85] : memref<1x1x128xf32, #tpu.memory_space<vmem>>, vector<1x1x128xf32>
    %230 = vector.shape_cast %229 : vector<1x1x128xf32> to vector<1x128xf32>
    %c0_86 = arith.constant 0 : index
    %c0_87 = arith.constant 0 : index
    %c0_88 = arith.constant 0 : index
    %231 = vector.load %arg12[%c0_86, %c0_87, %c0_88] : memref<1x1x128xf32, #tpu.memory_space<vmem>>, vector<1x1x128xf32>
    %232 = vector.shape_cast %231 : vector<1x1x128xf32> to vector<1x128xf32>
    %cst_89 = arith.constant dense<0.000000e+00> : vector<48xf32>
    %233 = vector.multi_reduction <add>, %228, %cst_89 [1] : vector<48x128xf32> to vector<48xf32>
    %234 = vector.shape_cast %233 : vector<48xf32> to vector<48x1xf32>
    %cst_90 = arith.constant 1.280000e+02 : f32
    %235 = vector.broadcast %cst_90 : f32 to vector<48x1xf32>
    %236 = arith.divf %234, %235 : vector<48x1xf32>
    %237 = vector.broadcast %236 : vector<48x1xf32> to vector<48x128xf32>
    %238 = arith.subf %228, %237 : vector<48x128xf32>
    %239 = arith.mulf %238, %238 : vector<48x128xf32>
    %cst_91 = arith.constant dense<0.000000e+00> : vector<48xf32>
    %240 = vector.multi_reduction <add>, %239, %cst_91 [1] : vector<48x128xf32> to vector<48xf32>
    %241 = vector.shape_cast %240 : vector<48xf32> to vector<48x1xf32>
    %cst_92 = arith.constant 1.280000e+02 : f32
    %242 = vector.broadcast %cst_92 : f32 to vector<48x1xf32>
    %243 = arith.divf %241, %242 : vector<48x1xf32>
    %cst_93 = arith.constant 9.99999997E-7 : f32
    %244 = vector.broadcast %cst_93 : f32 to vector<48x1xf32>
    %245 = arith.addf %243, %244 : vector<48x1xf32>
    %246 = math.rsqrt %245 : vector<48x1xf32>
    %247 = vector.broadcast %246 : vector<48x1xf32> to vector<48x128xf32>
    %248 = arith.mulf %238, %247 : vector<48x128xf32>
    %249 = vector.broadcast %230 : vector<1x128xf32> to vector<48x128xf32>
    %250 = arith.mulf %248, %249 : vector<48x128xf32>
    %251 = vector.broadcast %232 : vector<1x128xf32> to vector<48x128xf32>
    %252 = arith.addf %250, %251 : vector<48x128xf32>
    %c0_94 = arith.constant 0 : index
    %c0_95 = arith.constant 0 : index
    %c0_96 = arith.constant 0 : index
    %253 = vector.load %arg13[%c0_94, %c0_95, %c0_96] : memref<1x128x512xbf16, #tpu.memory_space<vmem>>, vector<1x128x512xbf16>
    %254 = vector.shape_cast %253 : vector<1x128x512xbf16> to vector<128x512xbf16>
    %c0_97 = arith.constant 0 : index
    %c0_98 = arith.constant 0 : index
    %c0_99 = arith.constant 0 : index
    %255 = vector.load %arg14[%c0_97, %c0_98, %c0_99] : memref<1x1x512xf32, #tpu.memory_space<vmem>>, vector<1x1x512xf32>
    %256 = vector.shape_cast %255 : vector<1x1x512xf32> to vector<1x512xf32>
    %257 = arith.truncf %252 : vector<48x128xf32> to vector<48x128xbf16>
    %cst_100 = arith.constant dense<0.000000e+00> : vector<48x512xf32>
    %258 = tpu.matmul %257, %254, %cst_100 {dimension_numbers = #tpu.dot_dimension_numbers<[1], [0], [0], [1], [0, 0, 1, 1], [], []>} : vector<48x128xbf16>, vector<128x512xbf16>, vector<48x512xf32> -> vector<48x512xf32>
    %259 = vector.broadcast %256 : vector<1x512xf32> to vector<48x512xf32>
    %260 = arith.addf %258, %259 : vector<48x512xf32>
    %261 = vector.extract_strided_slice %260 {offsets = [0, 0], sizes = [48, 256], strides = [1, 1]} : vector<48x512xf32> to vector<48x256xf32>
    %262 = vector.extract_strided_slice %260 {offsets = [0, 256], sizes = [48, 256], strides = [1, 1]} : vector<48x512xf32> to vector<48x256xf32>
    %cst_101 = arith.constant 0.000000e+00 : f32
    %263 = vector.broadcast %cst_101 : f32 to vector<48x256xf32>
    %264 = arith.subf %263, %261 : vector<48x256xf32>
    %265 = math.exp %264 : vector<48x256xf32>
    %cst_102 = arith.constant 1.000000e+00 : f32
    %266 = vector.broadcast %cst_102 : f32 to vector<48x256xf32>
    %267 = arith.addf %266, %265 : vector<48x256xf32>
    %268 = arith.divf %261, %267 : vector<48x256xf32>
    %269 = arith.mulf %268, %262 : vector<48x256xf32>
    %c0_103 = arith.constant 0 : index
    %c0_104 = arith.constant 0 : index
    %c0_105 = arith.constant 0 : index
    %270 = vector.load %arg15[%c0_103, %c0_104, %c0_105] : memref<1x256x128xbf16, #tpu.memory_space<vmem>>, vector<1x256x128xbf16>
    %271 = vector.shape_cast %270 : vector<1x256x128xbf16> to vector<256x128xbf16>
    %c0_106 = arith.constant 0 : index
    %c0_107 = arith.constant 0 : index
    %c0_108 = arith.constant 0 : index
    %272 = vector.load %arg16[%c0_106, %c0_107, %c0_108] : memref<1x1x128xf32, #tpu.memory_space<vmem>>, vector<1x1x128xf32>
    %273 = vector.shape_cast %272 : vector<1x1x128xf32> to vector<1x128xf32>
    %274 = arith.truncf %269 : vector<48x256xf32> to vector<48x256xbf16>
    %cst_109 = arith.constant dense<0.000000e+00> : vector<48x128xf32>
    %275 = tpu.matmul %274, %271, %cst_109 {dimension_numbers = #tpu.dot_dimension_numbers<[1], [0], [0], [1], [0, 0, 1, 1], [], []>} : vector<48x256xbf16>, vector<256x128xbf16>, vector<48x128xf32> -> vector<48x128xf32>
    %276 = vector.broadcast %273 : vector<1x128xf32> to vector<48x128xf32>
    %277 = arith.addf %275, %276 : vector<48x128xf32>
    %c0_110 = arith.constant 0 : index
    %c0_111 = arith.constant 0 : index
    %c0_112 = arith.constant 0 : index
    %278 = vector.load %arg17[%c0_110, %c0_111, %c0_112] : memref<1x1x128xf32, #tpu.memory_space<vmem>>, vector<1x1x128xf32>
    %279 = vector.shape_cast %278 : vector<1x1x128xf32> to vector<1x128xf32>
    %280 = vector.broadcast %279 : vector<1x128xf32> to vector<48x128xf32>
    %281 = arith.mulf %280, %277 : vector<48x128xf32>
    %282 = arith.addf %228, %281 : vector<48x128xf32>
    %c0_113 = arith.constant 0 : index
    %c0_114 = arith.constant 0 : index
    %283 = vector.load %arg21[%c0_113, %c0_114] : memref<48x128xf32, #tpu.memory_space<vmem>>, vector<48x128xf32>
    tpu.vector_store %arg21[%c0_113, %c0_114], %282 {strides = array<i32>} : memref<48x128xf32, #tpu.memory_space<vmem>>, vector<48x128xf32>,
    %c1_i32 = arith.constant 1 : i32
    %284 = arith.cmpi eq, %arg0, %c1_i32 : i32
    %285 = arith.extui %284 : i1 to i32
    %c0_i32_115 = arith.constant 0 : i32
    %286 = arith.cmpi ne, %285, %c0_i32_115 : i32
    scf.if %286 {
      %c0_116 = arith.constant 0 : index
      %c0_117 = arith.constant 0 : index
      %287 = vector.load %arg18[%c0_116, %c0_117] : memref<1x128xf32, #tpu.memory_space<vmem>>, vector<1x128xf32>
      %c0_118 = arith.constant 0 : index
      %c0_119 = arith.constant 0 : index
      %288 = vector.load %arg19[%c0_118, %c0_119] : memref<1x128xf32, #tpu.memory_space<vmem>>, vector<1x128xf32>
      %289 = vector.extract_strided_slice %282 {offsets = [0, 0], sizes = [1, 128], strides = [1, 1]} : vector<48x128xf32> to vector<1x128xf32>
      %cst_120 = arith.constant dense<0.000000e+00> : vector<1xf32>
      %290 = vector.multi_reduction <add>, %289, %cst_120 [1] : vector<1x128xf32> to vector<1xf32>
      %291 = vector.shape_cast %290 : vector<1xf32> to vector<1x1xf32>
      %cst_121 = arith.constant 1.280000e+02 : f32
      %292 = vector.broadcast %cst_121 : f32 to vector<1x1xf32>
      %293 = arith.divf %291, %292 : vector<1x1xf32>
      %294 = vector.broadcast %293 : vector<1x1xf32> to vector<1x128xf32>
      %295 = arith.subf %289, %294 : vector<1x128xf32>
      %296 = arith.mulf %295, %295 : vector<1x128xf32>
      %cst_122 = arith.constant dense<0.000000e+00> : vector<1xf32>
      %297 = vector.multi_reduction <add>, %296, %cst_122 [1] : vector<1x128xf32> to vector<1xf32>
      %298 = vector.shape_cast %297 : vector<1xf32> to vector<1x1xf32>
      %cst_123 = arith.constant 1.280000e+02 : f32
      %299 = vector.broadcast %cst_123 : f32 to vector<1x1xf32>
      %300 = arith.divf %298, %299 : vector<1x1xf32>
      %cst_124 = arith.constant 9.99999997E-7 : f32
      %301 = vector.broadcast %cst_124 : f32 to vector<1x1xf32>
      %302 = arith.addf %300, %301 : vector<1x1xf32>
      %303 = math.rsqrt %302 : vector<1x1xf32>
      %304 = vector.broadcast %303 : vector<1x1xf32> to vector<1x128xf32>
      %305 = arith.mulf %295, %304 : vector<1x128xf32>
      %306 = arith.mulf %305, %287 : vector<1x128xf32>
      %307 = arith.addf %306, %288 : vector<1x128xf32>
      %c0_125 = arith.constant 0 : index
      %c0_126 = arith.constant 0 : index
      %308 = vector.load %arg20[%c0_125, %c0_126] : memref<2x128xf32, #tpu.memory_space<vmem>>, vector<1x128xf32>
      tpu.vector_store %arg20[%c0_125, %c0_126], %307 {strides = array<i32>} : memref<2x128xf32, #tpu.memory_space<vmem>>, vector<1x128xf32>,
      %309 = vector.extract_strided_slice %282 {offsets = [24, 0], sizes = [1, 128], strides = [1, 1]} : vector<48x128xf32> to vector<1x128xf32>
      %cst_127 = arith.constant dense<0.000000e+00> : vector<1xf32>
      %310 = vector.multi_reduction <add>, %309, %cst_127 [1] : vector<1x128xf32> to vector<1xf32>
      %311 = vector.shape_cast %310 : vector<1xf32> to vector<1x1xf32>
      %cst_128 = arith.constant 1.280000e+02 : f32
      %312 = vector.broadcast %cst_128 : f32 to vector<1x1xf32>
      %313 = arith.divf %311, %312 : vector<1x1xf32>
      %314 = vector.broadcast %313 : vector<1x1xf32> to vector<1x128xf32>
      %315 = arith.subf %309, %314 : vector<1x128xf32>
      %316 = arith.mulf %315, %315 : vector<1x128xf32>
      %cst_129 = arith.constant dense<0.000000e+00> : vector<1xf32>
      %317 = vector.multi_reduction <add>, %316, %cst_129 [1] : vector<1x128xf32> to vector<1xf32>
      %318 = vector.shape_cast %317 : vector<1xf32> to vector<1x1xf32>
      %cst_130 = arith.constant 1.280000e+02 : f32
      %319 = vector.broadcast %cst_130 : f32 to vector<1x1xf32>
      %320 = arith.divf %318, %319 : vector<1x1xf32>
      %cst_131 = arith.constant 9.99999997E-7 : f32
      %321 = vector.broadcast %cst_131 : f32 to vector<1x1xf32>
      %322 = arith.addf %320, %321 : vector<1x1xf32>
      %323 = math.rsqrt %322 : vector<1x1xf32>
      %324 = vector.broadcast %323 : vector<1x1xf32> to vector<1x128xf32>
      %325 = arith.mulf %315, %324 : vector<1x128xf32>
      %326 = arith.mulf %325, %287 : vector<1x128xf32>
      %327 = arith.addf %326, %288 : vector<1x128xf32>
      %c1 = arith.constant 1 : index
      %c0_132 = arith.constant 0 : index
      %328 = vector.load %arg20[%c1, %c0_132] : memref<2x128xf32, #tpu.memory_space<vmem>>, vector<1x128xf32>
      tpu.vector_store %arg20[%c1, %c0_132], %327 {strides = array<i32>} : memref<2x128xf32, #tpu.memory_space<vmem>>, vector<1x128xf32>,
    } else {
    }
    return
  }
  func.func @transform_0(%arg0: i32) -> (i32, i32) {
    %c0_i32 = arith.constant 0 : i32
    %c0_i32_0 = arith.constant 0 : i32
    %c0_i32_1 = arith.constant 0 : i32
    return %c0_i32, %c0_i32_0 : i32, i32
  }
  func.func @transform_1(%arg0: i32) -> (i32, i32) {
    %c0_i32 = arith.constant 0 : i32
    %c0_i32_0 = arith.constant 0 : i32
    %c0_i32_1 = arith.constant 0 : i32
    return %c0_i32, %c0_i32_0 : i32, i32
  }
  func.func @transform_2(%arg0: i32) -> (i32, i32) {
    %c0_i32 = arith.constant 0 : i32
    %c0_i32_0 = arith.constant 0 : i32
    %c0_i32_1 = arith.constant 0 : i32
    return %c0_i32, %c0_i32_0 : i32, i32
  }
  func.func @transform_3(%arg0: i32) -> (i32, i32, i32) {
    %c0_i32 = arith.constant 0 : i32
    %c0_i32_0 = arith.constant 0 : i32
    %c0_i32_1 = arith.constant 0 : i32
    return %arg0, %c0_i32, %c0_i32_0 : i32, i32, i32
  }
  func.func @transform_4(%arg0: i32) -> (i32, i32, i32) {
    %c0_i32 = arith.constant 0 : i32
    %c0_i32_0 = arith.constant 0 : i32
    %c0_i32_1 = arith.constant 0 : i32
    return %arg0, %c0_i32, %c0_i32_0 : i32, i32, i32
  }
  func.func @transform_5(%arg0: i32) -> (i32, i32, i32) {
    %c0_i32 = arith.constant 0 : i32
    %c0_i32_0 = arith.constant 0 : i32
    %c0_i32_1 = arith.constant 0 : i32
    return %arg0, %c0_i32, %c0_i32_0 : i32, i32, i32
  }
  func.func @transform_6(%arg0: i32) -> (i32, i32, i32) {
    %c0_i32 = arith.constant 0 : i32
    %c0_i32_0 = arith.constant 0 : i32
    %c0_i32_1 = arith.constant 0 : i32
    return %arg0, %c0_i32, %c0_i32_0 : i32, i32, i32
  }
  func.func @transform_7(%arg0: i32) -> (i32, i32, i32) {
    %c0_i32 = arith.constant 0 : i32
    %c0_i32_0 = arith.constant 0 : i32
    %c0_i32_1 = arith.constant 0 : i32
    return %arg0, %c0_i32, %c0_i32_0 : i32, i32, i32
  }
  func.func @transform_8(%arg0: i32) -> (i32, i32, i32) {
    %c0_i32 = arith.constant 0 : i32
    %c0_i32_0 = arith.constant 0 : i32
    %c0_i32_1 = arith.constant 0 : i32
    return %arg0, %c0_i32, %c0_i32_0 : i32, i32, i32
  }
  func.func @transform_9(%arg0: i32) -> (i32, i32, i32) {
    %c0_i32 = arith.constant 0 : i32
    %c0_i32_0 = arith.constant 0 : i32
    %c0_i32_1 = arith.constant 0 : i32
    return %arg0, %c0_i32, %c0_i32_0 : i32, i32, i32
  }
  func.func @transform_10(%arg0: i32) -> (i32, i32, i32) {
    %c0_i32 = arith.constant 0 : i32
    %c0_i32_0 = arith.constant 0 : i32
    %c0_i32_1 = arith.constant 0 : i32
    return %arg0, %c0_i32, %c0_i32_0 : i32, i32, i32
  }
  func.func @transform_11(%arg0: i32) -> (i32, i32, i32) {
    %c0_i32 = arith.constant 0 : i32
    %c0_i32_0 = arith.constant 0 : i32
    %c0_i32_1 = arith.constant 0 : i32
    return %arg0, %c0_i32, %c0_i32_0 : i32, i32, i32
  }
  func.func @transform_12(%arg0: i32) -> (i32, i32, i32) {
    %c0_i32 = arith.constant 0 : i32
    %c0_i32_0 = arith.constant 0 : i32
    %c0_i32_1 = arith.constant 0 : i32
    return %arg0, %c0_i32, %c0_i32_0 : i32, i32, i32
  }
  func.func @transform_13(%arg0: i32) -> (i32, i32, i32) {
    %c0_i32 = arith.constant 0 : i32
    %c0_i32_0 = arith.constant 0 : i32
    %c0_i32_1 = arith.constant 0 : i32
    return %arg0, %c0_i32, %c0_i32_0 : i32, i32, i32
  }
  func.func @transform_14(%arg0: i32) -> (i32, i32, i32) {
    %c0_i32 = arith.constant 0 : i32
    %c0_i32_0 = arith.constant 0 : i32
    %c0_i32_1 = arith.constant 0 : i32
    return %arg0, %c0_i32, %c0_i32_0 : i32, i32, i32
  }
  func.func @transform_15(%arg0: i32) -> (i32, i32, i32) {
    %c0_i32 = arith.constant 0 : i32
    %c0_i32_0 = arith.constant 0 : i32
    %c0_i32_1 = arith.constant 0 : i32
    return %arg0, %c0_i32, %c0_i32_0 : i32, i32, i32
  }
  func.func @transform_16(%arg0: i32) -> (i32, i32, i32) {
    %c0_i32 = arith.constant 0 : i32
    %c0_i32_0 = arith.constant 0 : i32
    %c0_i32_1 = arith.constant 0 : i32
    return %arg0, %c0_i32, %c0_i32_0 : i32, i32, i32
  }
  func.func @transform_17(%arg0: i32) -> (i32, i32) {
    %c0_i32 = arith.constant 0 : i32
    %c0_i32_0 = arith.constant 0 : i32
    %c0_i32_1 = arith.constant 0 : i32
    return %c0_i32, %c0_i32_0 : i32, i32
  }
  func.func @transform_18(%arg0: i32) -> (i32, i32) {
    %c0_i32 = arith.constant 0 : i32
    %c0_i32_0 = arith.constant 0 : i32
    %c0_i32_1 = arith.constant 0 : i32
    return %c0_i32, %c0_i32_0 : i32, i32
  }
  func.func @transform_19(%arg0: i32) -> (i32, i32) {
    %c0_i32 = arith.constant 0 : i32
    %c0_i32_0 = arith.constant 0 : i32
    %c0_i32_1 = arith.constant 0 : i32
    return %c0_i32, %c0_i32_0 : i32, i32
  }
}

</mosaic_0001>

<llo_original>
// kernel: _lambda_.1
$region0: #{_lambda_.1}
  #allocation0 [shape = 'u32[]', space=smem, size = 0x4, offset = 0x4, fixed_abs, tag = 'smem constant byte address 0x4 - core index']
  #allocation1 [shape = 'u32[144,128]{1,0:T(1,128)}', space=vmem, size = 0x12000, scoped, tag = 'internal scratch']
  #allocation2 [shape = 'f32[48,128]{1,0:T(8,128)}', space=vmem, size = 0x6000, scoped, tag = 'scratch operand']
  #allocation3 [shape = 'f32[48,128]{1,0:T(8,128)}', space=vmem, size = 0x6000, scoped, tag = 'scratch operand']
  %s0 = inlined_call_operand.vmem [shape: bf16[48,128], index: 0, kind: input, shape index: {}]
  %s1 = inlined_call_operand.vmem [shape: bf16[128,128], index: 1, kind: input, shape index: {}]
  %s2 = inlined_call_operand.vmem [shape: f32[48,128], index: 2, kind: input, shape index: {}]
  %s3 = inlined_call_operand.vmem [shape: f32[2,1,128], index: 3, kind: input, shape index: {}]
  %s4 = inlined_call_operand.vmem [shape: f32[2,1,128], index: 4, kind: input, shape index: {}]
  %s5 = inlined_call_operand.vmem [shape: bf16[2,128,384], index: 5, kind: input, shape index: {}]
  %s6 = inlined_call_operand.hbm [shape: f32[2,1,384], index: 6, kind: input, shape index: {}]
  %s7 = inlined_call_operand.vmem [shape: bf16[2,128,128], index: 7, kind: input, shape index: {}]
  %s8 = inlined_call_operand.hbm [shape: f32[2,1,128], index: 8, kind: input, shape index: {}]
  %s9 = inlined_call_operand.vmem [shape: f32[2,1,128], index: 9, kind: input, shape index: {}]
  %s10 = inlined_call_operand.vmem [shape: f32[2,1,128], index: 10, kind: input, shape index: {}]
  %s11 = inlined_call_operand.vmem [shape: f32[2,1,128], index: 11, kind: input, shape index: {}]
  %s12 = inlined_call_operand.vmem [shape: bf16[2,128,512], index: 12, kind: input, shape index: {}]
  %s13 = inlined_call_operand.vmem [shape: f32[2,1,512], index: 13, kind: input, shape index: {}]
  %s14 = inlined_call_operand.hbm [shape: bf16[2,256,128], index: 14, kind: input, shape index: {}]
  %s15 = inlined_call_operand.hbm [shape: f32[2,1,128], index: 15, kind: input, shape index: {}]
  %s16 = inlined_call_operand.hbm [shape: f32[2,1,128], index: 16, kind: input, shape index: {}]
  %s17 = inlined_call_operand.vmem [shape: f32[1,128], index: 17, kind: input, shape index: {}]
  %s18 = inlined_call_operand.hbm [shape: f32[1,128], index: 18, kind: input, shape index: {}]
  %s19 = inlined_call_operand.hbm [shape: f32[2,128], index: 19, kind: output, shape index: {}]
  %s20 = sld [smem:[#allocation0]]
  $region141: #{_lambda_.1} parent=0
    _
  %s22 = ssub.s32 1, %s20
  %s23 = scalar_select 0, %s22, %s20
  $region1: #{_lambda_.1} parent=0
    #allocation4 [shape = 'u8[3072]{0}', space=vmem, size = 0xc00, scoped, tag = 'input window, operand 6']
    #allocation5 [shape = 's32[2]{0}', space=sflag, size = 0x8, scoped, tag = 'scoped memory for _lambda_.1']
    #allocation6 [shape = 's32[2]{0}', space=sflag, size = 0x8, scoped, tag = 'scoped memory for _lambda_.1']
    #allocation7 [shape = 'u8[1024]{0}', space=vmem, size = 0x400, scoped, tag = 'input window, operand 8']
    #allocation8 [shape = 's32[2]{0}', space=sflag, size = 0x8, scoped, tag = 'scoped memory for _lambda_.1']
    #allocation9 [shape = 'u8[131072]{0}', space=vmem, size = 0x20000, scoped, tag = 'input window, operand 14']
    #allocation10 [shape = 'u8[1024]{0}', space=vmem, size = 0x400, scoped, tag = 'input window, operand 15']
    #allocation11 [shape = 's32[2]{0}', space=sflag, size = 0x8, scoped, tag = 'scoped memory for _lambda_.1']
    #allocation12 [shape = 'u8[1024]{0}', space=vmem, size = 0x400, scoped, tag = 'input window, operand 16']
    #allocation13 [shape = 'u8[512]{0}', space=vmem, size = 0x400, scoped, tag = 'input window, operand 18, single buffered']
    #allocation14 [shape = 's32[1]{0}', space=sflag, size = 0x4, scoped, tag = 'scoped memory for _lambda_.1']
    #allocation15 [shape = 'u8[1024]{0}', space=vmem, size = 0x400, scoped, tag = 'output window, operand 0, single buffered']
    %24 = vsyncpa [#allocation5], 0
    %s25 = scalar_lea.sflag [#allocation5], 1
    %26 = vsyncpa %s25, 0
    %27 = vsyncpa [#allocation8], 0
    %s28 = scalar_lea.sflag [#allocation8], 1
    %29 = vsyncpa %s28, 0
    %30 = vsyncpa [#allocation11], 0
    %s31 = scalar_lea.sflag [#allocation11], 1
    %32 = vsyncpa %s31, 0
    %33 = vsyncpa [#allocation14], 0
    %34 = vsyncpa [#allocation6], 0
    loop: start=0, step=1, limit=4
    $region2: #{_lambda_.1} parent=1 // loop_pre_header
      _
    $region3: #{_lambda_.1} parent=1 // loop_header
      %s36 = sphi 0, %s40
      %p37 = scmp.ge.s32.totalorder %s36, 4
      %s44 = sphi 0, %s44
      %s46 = sphi 0, %s44
      %s47 = sphi 0, %s46
      %s61 = sphi 0, %s47
      %s65 = sphi 0, %s65
      %s67 = sphi 0, %s65
      %s68 = sphi 0, %s67
      %s82 = sphi 0, %s68
      %s86 = sphi 0, %s86
      %s88 = sphi 0, %s86
      %s89 = sphi 0, %s88
      %s103 = sphi 0, %s89
      %s109 = sphi 0, %s111
      %s112 = sphi 0, %s109
      %s113 = sphi 0, %s112
      %s129 = sphi 0, %s113
      %s135 = sphi 0, %s137
      %s138 = sphi 0, %s135
      %s139 = sphi 0, %s138
      %s155 = sphi 0, %s139
      %s161 = sphi 0, %s163
      %s164 = sphi 0, %s161
      %s165 = sphi 0, %s164
      %s181 = sphi 0, %s165
      %s187 = sphi 0, %s189
      %s190 = sphi 0, %s187
      %s191 = sphi 0, %s190
      %s207 = sphi 0, %s191
      %s213 = sphi 0, %s215
      %s216 = sphi 0, %s213
      %s217 = sphi 0, %s216
      %s233 = sphi 0, %s217
      %s239 = sphi 0, %s241
      %s242 = sphi 0, %s239
      %s243 = sphi 0, %s242
      %s259 = sphi 0, %s243
      %s265 = sphi 0, %s267
      %s268 = sphi 0, %s265
      %s269 = sphi 0, %s268
      %s285 = sphi 0, %s269
      %s291 = sphi 0, %s293
      %s294 = sphi 0, %s291
      %s295 = sphi 0, %s294
      %s311 = sphi 0, %s295
      %s317 = sphi 0, %s319
      %s320 = sphi 0, %s317
      %s321 = sphi 0, %s320
      %s337 = sphi 0, %s321
      %s343 = sphi 0, %s345
      %s346 = sphi 0, %s343
      %s347 = sphi 0, %s346
      %s363 = sphi 0, %s347
      %s369 = sphi 0, %s371
      %s372 = sphi 0, %s369
      %s373 = sphi 0, %s372
      %s389 = sphi 0, %s373
      %s395 = sphi 0, %s397
      %s398 = sphi 0, %s395
      %s399 = sphi 0, %s398
      %s415 = sphi 0, %s399
      %s421 = sphi 0, %s423
      %s424 = sphi 0, %s421
      %s425 = sphi 0, %s424
      %s441 = sphi 0, %s425
      %s447 = sphi 0, %s449
      %s450 = sphi 0, %s447
      %s451 = sphi 0, %s450
      %s467 = sphi 0, %s451
      %s471 = sphi 0, %s471
      %s473 = sphi 0, %s471
      %s474 = sphi 0, %s473
      %s488 = sphi 0, %s474
      %s492 = sphi 0, %s492
      %s494 = sphi 0, %s492
      %s495 = sphi 0, %s494
      %s509 = sphi 0, %s495
      %s513 = sphi 0, %s513
      %s515 = sphi 0, %s513
      %s516 = sphi 0, %s515
      %s530 = sphi 0, %s516
    $region4: #{_lambda_.1} parent=1 // loop_header_branch
      %39 = sbr.rel (%p37) target = $region8
    $region5: #{_lambda_.1} parent=1 // loop_body
      %s41 = ssub.s32 %s36, 1
      %s42 = ssub.s32 %s36, 2
      %s43 = sadd.s32 %s36, 1
      %s45 = sadd.s32 %s44, 1
      %p48 = scmp.eq.s32.totalorder %s36, 1
      %p49 = scmp.ne.s32.totalorder %s44, %s46
      %p50 = scmp.eq.s32.totalorder %s36, 0
      %p51 = por %p49, %p50
      %p52 = scmp.ne.s32.totalorder %s44, %s46
      %p53 = scmp.eq.s32.totalorder %s41, 1
      %p54 = por %p52, %p53
      %p55 = scmp.ne.s32.totalorder %s46, %s47
      %p56 = scmp.eq.s32.totalorder %s41, 0
      %p57 = por %p55, %p56
      %p58 = scmp.ne.s32.totalorder %s46, %s47
      %p59 = scmp.eq.s32.totalorder %s42, 1
      %p60 = por %p58, %p59
      %p62 = scmp.ne.s32.totalorder %s47, %s61
      %p63 = scmp.eq.s32.totalorder %s42, 0
      %p64 = por %p62, %p63
      %s66 = sadd.s32 %s65, 1
      %p69 = scmp.eq.s32.totalorder %s36, 1
      %p70 = scmp.ne.s32.totalorder %s65, %s67
      %p71 = scmp.eq.s32.totalorder %s36, 0
      %p72 = por %p70, %p71
      %p73 = scmp.ne.s32.totalorder %s65, %s67
      %p74 = scmp.eq.s32.totalorder %s41, 1
      %p75 = por %p73, %p74
      %p76 = scmp.ne.s32.totalorder %s67, %s68
      %p77 = scmp.eq.s32.totalorder %s41, 0
      %p78 = por %p76, %p77
      %p79 = scmp.ne.s32.totalorder %s67, %s68
      %p80 = scmp.eq.s32.totalorder %s42, 1
      %p81 = por %p79, %p80
      %p83 = scmp.ne.s32.totalorder %s68, %s82
      %p84 = scmp.eq.s32.totalorder %s42, 0
      %p85 = por %p83, %p84
      %s87 = sadd.s32 %s86, 1
      %p90 = scmp.eq.s32.totalorder %s36, 1
      %p91 = scmp.ne.s32.totalorder %s86, %s88
      %p92 = scmp.eq.s32.totalorder %s36, 0
      %p93 = por %p91, %p92
      %p94 = scmp.ne.s32.totalorder %s86, %s88
      %p95 = scmp.eq.s32.totalorder %s41, 1
      %p96 = por %p94, %p95
      %p97 = scmp.ne.s32.totalorder %s88, %s89
      %p98 = scmp.eq.s32.totalorder %s41, 0
      %p99 = por %p97, %p98
      %p100 = scmp.ne.s32.totalorder %s88, %s89
      %p101 = scmp.eq.s32.totalorder %s42, 1
      %p102 = por %p100, %p101
      %p104 = scmp.ne.s32.totalorder %s89, %s103
      %p105 = scmp.eq.s32.totalorder %s42, 0
      %p106 = por %p104, %p105
      %s107 = ssub.s32 %s36, %s43
      %p108 = scmp.eq.s32.totalorder %s107, 0
      %s110 = sadd.s32 %s109, 1
      %s111 = scalar_select %p108, %s109, %s110
      %p114 = pneg %p108
      %p115 = scmp.eq.s32.totalorder %s36, 1
      %p116 = por %p114, %p115
      %p117 = scmp.ne.s32.totalorder %s109, %s112
      %p118 = scmp.eq.s32.totalorder %s36, 0
      %p119 = por %p117, %p118
      %p120 = scmp.ne.s32.totalorder %s109, %s112
      %p121 = scmp.eq.s32.totalorder %s41, 1
      %p122 = por %p120, %p121
      %p123 = scmp.ne.s32.totalorder %s112, %s113
      %p124 = scmp.eq.s32.totalorder %s41, 0
      %p125 = por %p123, %p124
      %p126 = scmp.ne.s32.totalorder %s112, %s113
      %p127 = scmp.eq.s32.totalorder %s42, 1
      %p128 = por %p126, %p127
      %p130 = scmp.ne.s32.totalorder %s113, %s129
      %p131 = scmp.eq.s32.totalorder %s42, 0
      %p132 = por %p130, %p131
      %s133 = ssub.s32 %s36, %s43
      %p134 = scmp.eq.s32.totalorder %s133, 0
      %s136 = sadd.s32 %s135, 1
      %s137 = scalar_select %p134, %s135, %s136
      %p140 = pneg %p134
      %p141 = scmp.eq.s32.totalorder %s36, 1
      %p142 = por %p140, %p141
      %p143 = scmp.ne.s32.totalorder %s135, %s138
      %p144 = scmp.eq.s32.totalorder %s36, 0
      %p145 = por %p143, %p144
      %p146 = scmp.ne.s32.totalorder %s135, %s138
      %p147 = scmp.eq.s32.totalorder %s41, 1
      %p148 = por %p146, %p147
      %p149 = scmp.ne.s32.totalorder %s138, %s139
      %p150 = scmp.eq.s32.totalorder %s41, 0
      %p151 = por %p149, %p150
      %p152 = scmp.ne.s32.totalorder %s138, %s139
      %p153 = scmp.eq.s32.totalorder %s42, 1
      %p154 = por %p152, %p153
      %p156 = scmp.ne.s32.totalorder %s139, %s155
      %p157 = scmp.eq.s32.totalorder %s42, 0
      %p158 = por %p156, %p157
      %s159 = ssub.s32 %s36, %s43
      %p160 = scmp.eq.s32.totalorder %s159, 0
      %s162 = sadd.s32 %s161, 1
      %s163 = scalar_select %p160, %s161, %s162
      %p166 = pneg %p160
      %p167 = scmp.eq.s32.totalorder %s36, 1
      %p168 = por %p166, %p167
      %p169 = scmp.ne.s32.totalorder %s161, %s164
      %p170 = scmp.eq.s32.totalorder %s36, 0
      %p171 = por %p169, %p170
      %p172 = scmp.ne.s32.totalorder %s161, %s164
      %p173 = scmp.eq.s32.totalorder %s41, 1
      %p174 = por %p172, %p173
      %p175 = scmp.ne.s32.totalorder %s164, %s165
      %p176 = scmp.eq.s32.totalorder %s41, 0
      %p177 = por %p175, %p176
      %p178 = scmp.ne.s32.totalorder %s164, %s165
      %p179 = scmp.eq.s32.totalorder %s42, 1
      %p180 = por %p178, %p179
      %p182 = scmp.ne.s32.totalorder %s165, %s181
      %p183 = scmp.eq.s32.totalorder %s42, 0
      %p184 = por %p182, %p183
      %s185 = ssub.s32 %s36, %s43
      %p186 = scmp.eq.s32.totalorder %s185, 0
      %s188 = sadd.s32 %s187, 1
      %s189 = scalar_select %p186, %s187, %s188
      %p192 = pneg %p186
      %p193 = scmp.eq.s32.totalorder %s36, 1
      %p194 = por %p192, %p193
      %p195 = scmp.ne.s32.totalorder %s187, %s190
      %p196 = scmp.eq.s32.totalorder %s36, 0
      %p197 = por %p195, %p196
      %p198 = scmp.ne.s32.totalorder %s187, %s190
      %p199 = scmp.eq.s32.totalorder %s41, 1
      %p200 = por %p198, %p199
      %p201 = scmp.ne.s32.totalorder %s190, %s191
      %p202 = scmp.eq.s32.totalorder %s41, 0
      %p203 = por %p201, %p202
      %p204 = scmp.ne.s32.totalorder %s190, %s191
      %p205 = scmp.eq.s32.totalorder %s42, 1
      %p206 = por %p204, %p205
      %p208 = scmp.ne.s32.totalorder %s191, %s207
      %p209 = scmp.eq.s32.totalorder %s42, 0
      %p210 = por %p208, %p209
      %s211 = ssub.s32 %s36, %s43
      %p212 = scmp.eq.s32.totalorder %s211, 0
      %s214 = sadd.s32 %s213, 1
      %s215 = scalar_select %p212, %s213, %s214
      %p218 = pneg %p212
      %p219 = scmp.eq.s32.totalorder %s36, 1
      %p220 = por %p218, %p219
      %p221 = scmp.ne.s32.totalorder %s213, %s216
      %p222 = scmp.eq.s32.totalorder %s36, 0
      %p223 = por %p221, %p222
      %p224 = scmp.ne.s32.totalorder %s213, %s216
      %p225 = scmp.eq.s32.totalorder %s41, 1
      %p226 = por %p224, %p225
      %p227 = scmp.ne.s32.totalorder %s216, %s217
      %p228 = scmp.eq.s32.totalorder %s41, 0
      %p229 = por %p227, %p228
      %p230 = scmp.ne.s32.totalorder %s216, %s217
      %p231 = scmp.eq.s32.totalorder %s42, 1
      %p232 = por %p230, %p231
      %p234 = scmp.ne.s32.totalorder %s217, %s233
      %p235 = scmp.eq.s32.totalorder %s42, 0
      %p236 = por %p234, %p235
      %s237 = ssub.s32 %s36, %s43
      %p238 = scmp.eq.s32.totalorder %s237, 0
      %s240 = sadd.s32 %s239, 1
      %s241 = scalar_select %p238, %s239, %s240
      %p244 = pneg %p238
      %p245 = scmp.eq.s32.totalorder %s36, 1
      %p246 = por %p244, %p245
      %p247 = scmp.ne.s32.totalorder %s239, %s242
      %p248 = scmp.eq.s32.totalorder %s36, 0
      %p249 = por %p247, %p248
      %p250 = scmp.ne.s32.totalorder %s239, %s242
      %p251 = scmp.eq.s32.totalorder %s41, 1
      %p252 = por %p250, %p251
      %p253 = scmp.ne.s32.totalorder %s242, %s243
      %p254 = scmp.eq.s32.totalorder %s41, 0
      %p255 = por %p253, %p254
      %p256 = scmp.ne.s32.totalorder %s242, %s243
      %p257 = scmp.eq.s32.totalorder %s42, 1
      %p258 = por %p256, %p257
      %p260 = scmp.ne.s32.totalorder %s243, %s259
      %p261 = scmp.eq.s32.totalorder %s42, 0
      %p262 = por %p260, %p261
      %s263 = ssub.s32 %s36, %s43
      %p264 = scmp.eq.s32.totalorder %s263, 0
      %s266 = sadd.s32 %s265, 1
      %s267 = scalar_select %p264, %s265, %s266
      %p270 = pneg %p264
      %p271 = scmp.eq.s32.totalorder %s36, 1
      %p272 = por %p270, %p271
      %p273 = scmp.ne.s32.totalorder %s265, %s268
      %p274 = scmp.eq.s32.totalorder %s36, 0
      %p275 = por %p273, %p274
      %p276 = scmp.ne.s32.totalorder %s265, %s268
      %p277 = scmp.eq.s32.totalorder %s41, 1
      %p278 = por %p276, %p277
      %p279 = scmp.ne.s32.totalorder %s268, %s269
      %p280 = scmp.eq.s32.totalorder %s41, 0
      %p281 = por %p279, %p280
      %p282 = scmp.ne.s32.totalorder %s268, %s269
      %p283 = scmp.eq.s32.totalorder %s42, 1
      %p284 = por %p282, %p283
      %p286 = scmp.ne.s32.totalorder %s269, %s285
      %p287 = scmp.eq.s32.totalorder %s42, 0
      %p288 = por %p286, %p287
      %s289 = ssub.s32 %s36, %s43
      %p290 = scmp.eq.s32.totalorder %s289, 0
      %s292 = sadd.s32 %s291, 1
      %s293 = scalar_select %p290, %s291, %s292
      %p296 = pneg %p290
      %p297 = scmp.eq.s32.totalorder %s36, 1
      %p298 = por %p296, %p297
      %p299 = scmp.ne.s32.totalorder %s291, %s294
      %p300 = scmp.eq.s32.totalorder %s36, 0
      %p301 = por %p299, %p300
      %p302 = scmp.ne.s32.totalorder %s291, %s294
      %p303 = scmp.eq.s32.totalorder %s41, 1
      %p304 = por %p302, %p303
      %p305 = scmp.ne.s32.totalorder %s294, %s295
      %p306 = scmp.eq.s32.totalorder %s41, 0
      %p307 = por %p305, %p306
      %p308 = scmp.ne.s32.totalorder %s294, %s295
      %p309 = scmp.eq.s32.totalorder %s42, 1
      %p310 = por %p308, %p309
      %p312 = scmp.ne.s32.totalorder %s295, %s311
      %p313 = scmp.eq.s32.totalorder %s42, 0
      %p314 = por %p312, %p313
      %s315 = ssub.s32 %s36, %s43
      %p316 = scmp.eq.s32.totalorder %s315, 0
      %s318 = sadd.s32 %s317, 1
      %s319 = scalar_select %p316, %s317, %s318
      %p322 = pneg %p316
      %p323 = scmp.eq.s32.totalorder %s36, 1
      %p324 = por %p322, %p323
      %p325 = scmp.ne.s32.totalorder %s317, %s320
      %p326 = scmp.eq.s32.totalorder %s36, 0
      %p327 = por %p325, %p326
      %p328 = scmp.ne.s32.totalorder %s317, %s320
      %p329 = scmp.eq.s32.totalorder %s41, 1
      %p330 = por %p328, %p329
      %p331 = scmp.ne.s32.totalorder %s320, %s321
      %p332 = scmp.eq.s32.totalorder %s41, 0
      %p333 = por %p331, %p332
      %p334 = scmp.ne.s32.totalorder %s320, %s321
      %p335 = scmp.eq.s32.totalorder %s42, 1
      %p336 = por %p334, %p335
      %p338 = scmp.ne.s32.totalorder %s321, %s337
      %p339 = scmp.eq.s32.totalorder %s42, 0
      %p340 = por %p338, %p339
      %s341 = ssub.s32 %s36, %s43
      %p342 = scmp.eq.s32.totalorder %s341, 0
      %s344 = sadd.s32 %s343, 1
      %s345 = scalar_select %p342, %s343, %s344
      %p348 = pneg %p342
      %p349 = scmp.eq.s32.totalorder %s36, 1
      %p350 = por %p348, %p349
      %p351 = scmp.ne.s32.totalorder %s343, %s346
      %p352 = scmp.eq.s32.totalorder %s36, 0
      %p353 = por %p351, %p352
      %p354 = scmp.ne.s32.totalorder %s343, %s346
      %p355 = scmp.eq.s32.totalorder %s41, 1
      %p356 = por %p354, %p355
      %p357 = scmp.ne.s32.totalorder %s346, %s347
      %p358 = scmp.eq.s32.totalorder %s41, 0
      %p359 = por %p357, %p358
      %p360 = scmp.ne.s32.totalorder %s346, %s347
      %p361 = scmp.eq.s32.totalorder %s42, 1
      %p362 = por %p360, %p361
      %p364 = scmp.ne.s32.totalorder %s347, %s363
      %p365 = scmp.eq.s32.totalorder %s42, 0
      %p366 = por %p364, %p365
      %s367 = ssub.s32 %s36, %s43
      %p368 = scmp.eq.s32.totalorder %s367, 0
      %s370 = sadd.s32 %s369, 1
      %s371 = scalar_select %p368, %s369, %s370
      %p374 = pneg %p368
      %p375 = scmp.eq.s32.totalorder %s36, 1
      %p376 = por %p374, %p375
      %p377 = scmp.ne.s32.totalorder %s369, %s372
      %p378 = scmp.eq.s32.totalorder %s36, 0
      %p379 = por %p377, %p378
      %p380 = scmp.ne.s32.totalorder %s369, %s372
      %p381 = scmp.eq.s32.totalorder %s41, 1
      %p382 = por %p380, %p381
      %p383 = scmp.ne.s32.totalorder %s372, %s373
      %p384 = scmp.eq.s32.totalorder %s41, 0
      %p385 = por %p383, %p384
      %p386 = scmp.ne.s32.totalorder %s372, %s373
      %p387 = scmp.eq.s32.totalorder %s42, 1
      %p388 = por %p386, %p387
      %p390 = scmp.ne.s32.totalorder %s373, %s389
      %p391 = scmp.eq.s32.totalorder %s42, 0
      %p392 = por %p390, %p391
      %s393 = ssub.s32 %s36, %s43
      %p394 = scmp.eq.s32.totalorder %s393, 0
      %s396 = sadd.s32 %s395, 1
      %s397 = scalar_select %p394, %s395, %s396
      %p400 = pneg %p394
      %p401 = scmp.eq.s32.totalorder %s36, 1
      %p402 = por %p400, %p401
      %p403 = scmp.ne.s32.totalorder %s395, %s398
      %p404 = scmp.eq.s32.totalorder %s36, 0
      %p405 = por %p403, %p404
      %p406 = scmp.ne.s32.totalorder %s395, %s398
      %p407 = scmp.eq.s32.totalorder %s41, 1
      %p408 = por %p406, %p407
      %p409 = scmp.ne.s32.totalorder %s398, %s399
      %p410 = scmp.eq.s32.totalorder %s41, 0
      %p411 = por %p409, %p410
      %p412 = scmp.ne.s32.totalorder %s398, %s399
      %p413 = scmp.eq.s32.totalorder %s42, 1
      %p414 = por %p412, %p413
      %p416 = scmp.ne.s32.totalorder %s399, %s415
      %p417 = scmp.eq.s32.totalorder %s42, 0
      %p418 = por %p416, %p417
      %s419 = ssub.s32 %s36, %s43
      %p420 = scmp.eq.s32.totalorder %s419, 0
      %s422 = sadd.s32 %s421, 1
      %s423 = scalar_select %p420, %s421, %s422
      %p426 = pneg %p420
      %p427 = scmp.eq.s32.totalorder %s36, 1
      %p428 = por %p426, %p427
      %p429 = scmp.ne.s32.totalorder %s421, %s424
      %p430 = scmp.eq.s32.totalorder %s36, 0
      %p431 = por %p429, %p430
      %p432 = scmp.ne.s32.totalorder %s421, %s424
      %p433 = scmp.eq.s32.totalorder %s41, 1
      %p434 = por %p432, %p433
      %p435 = scmp.ne.s32.totalorder %s424, %s425
      %p436 = scmp.eq.s32.totalorder %s41, 0
      %p437 = por %p435, %p436
      %p438 = scmp.ne.s32.totalorder %s424, %s425
      %p439 = scmp.eq.s32.totalorder %s42, 1
      %p440 = por %p438, %p439
      %p442 = scmp.ne.s32.totalorder %s425, %s441
      %p443 = scmp.eq.s32.totalorder %s42, 0
      %p444 = por %p442, %p443
      %s445 = ssub.s32 %s36, %s43
      %p446 = scmp.eq.s32.totalorder %s445, 0
      %s448 = sadd.s32 %s447, 1
      %s449 = scalar_select %p446, %s447, %s448
      %p452 = pneg %p446
      %p453 = scmp.eq.s32.totalorder %s36, 1
      %p454 = por %p452, %p453
      %p455 = scmp.ne.s32.totalorder %s447, %s450
      %p456 = scmp.eq.s32.totalorder %s36, 0
      %p457 = por %p455, %p456
      %p458 = scmp.ne.s32.totalorder %s447, %s450
      %p459 = scmp.eq.s32.totalorder %s41, 1
      %p460 = por %p458, %p459
      %p461 = scmp.ne.s32.totalorder %s450, %s451
      %p462 = scmp.eq.s32.totalorder %s41, 0
      %p463 = por %p461, %p462
      %p464 = scmp.ne.s32.totalorder %s450, %s451
      %p465 = scmp.eq.s32.totalorder %s42, 1
      %p466 = por %p464, %p465
      %p468 = scmp.ne.s32.totalorder %s451, %s467
      %p469 = scmp.eq.s32.totalorder %s42, 0
      %p470 = por %p468, %p469
      %s472 = sadd.s32 %s471, 1
      %p475 = scmp.eq.s32.totalorder %s36, 1
      %p476 = scmp.ne.s32.totalorder %s471, %s473
      %p477 = scmp.eq.s32.totalorder %s36, 0
      %p478 = por %p476, %p477
      %p479 = scmp.ne.s32.totalorder %s471, %s473
      %p480 = scmp.eq.s32.totalorder %s41, 1
      %p481 = por %p479, %p480
      %p482 = scmp.ne.s32.totalorder %s473, %s474
      %p483 = scmp.eq.s32.totalorder %s41, 0
      %p484 = por %p482, %p483
      %p485 = scmp.ne.s32.totalorder %s473, %s474
      %p486 = scmp.eq.s32.totalorder %s42, 1
      %p487 = por %p485, %p486
      %p489 = scmp.ne.s32.totalorder %s474, %s488
      %p490 = scmp.eq.s32.totalorder %s42, 0
      %p491 = por %p489, %p490
      %s493 = sadd.s32 %s492, 1
      %p496 = scmp.eq.s32.totalorder %s36, 1
      %p497 = scmp.ne.s32.totalorder %s492, %s494
      %p498 = scmp.eq.s32.totalorder %s36, 0
      %p499 = por %p497, %p498
      %p500 = scmp.ne.s32.totalorder %s492, %s494
      %p501 = scmp.eq.s32.totalorder %s41, 1
      %p502 = por %p500, %p501
      %p503 = scmp.ne.s32.totalorder %s494, %s495
      %p504 = scmp.eq.s32.totalorder %s41, 0
      %p505 = por %p503, %p504
      %p506 = scmp.ne.s32.totalorder %s494, %s495
      %p507 = scmp.eq.s32.totalorder %s42, 1
      %p508 = por %p506, %p507
      %p510 = scmp.ne.s32.totalorder %s495, %s509
      %p511 = scmp.eq.s32.totalorder %s42, 0
      %p512 = por %p510, %p511
      %s514 = sadd.s32 %s513, 1
      %p517 = scmp.eq.s32.totalorder %s36, 1
      %p518 = scmp.ne.s32.totalorder %s513, %s515
      %p519 = scmp.eq.s32.totalorder %s36, 0
      %p520 = por %p518, %p519
      %p521 = scmp.ne.s32.totalorder %s513, %s515
      %p522 = scmp.eq.s32.totalorder %s41, 1
      %p523 = por %p521, %p522
      %p524 = scmp.ne.s32.totalorder %s515, %s516
      %p525 = scmp.eq.s32.totalorder %s41, 0
      %p526 = por %p524, %p525
      %p527 = scmp.ne.s32.totalorder %s515, %s516
      %p528 = scmp.eq.s32.totalorder %s42, 1
      %p529 = por %p527, %p528
      %p531 = scmp.ne.s32.totalorder %s516, %s530
      %p532 = scmp.eq.s32.totalorder %s42, 0
      %p533 = por %p531, %p532
      %p534 = scmp.le.s32.totalorder 1, %s36
      %p535 = scmp.lt.s32.totalorder %s36, 3
      %p536 = pnand %p534, %p535
      %p537 = pneg %p536
      // Predicated region
      $region9: #{_lambda_.1} parent=5 // pred_check
        _
      $region10: #{_lambda_.1} parent=5 // pred_check_branch
        %539 = sbr.rel (%p536) target = $region12
      $region11: #{_lambda_.1} parent=5 // pred_region
        %s540 = ssub.s32 %s36, 1
        // Predicated region
        $region13: #{_lambda_.1} parent=11 // pred_check
          %p541 = pneg %p57
        $region14: #{_lambda_.1} parent=11 // pred_check_branch
          %543 = sbr.rel (%p541) target = $region16
        $region15: #{_lambda_.1} parent=11 // pred_region
          _
        $region16: #{_lambda_.1} parent=11 // pred_fallthru
          _
        // Predicated region
        $region17: #{_lambda_.1} parent=11 // pred_check
          %p544 = pneg %p78
        $region18: #{_lambda_.1} parent=11 // pred_check_branch
          %546 = sbr.rel (%p544) target = $region20
        $region19: #{_lambda_.1} parent=11 // pred_region
          _
        $region20: #{_lambda_.1} parent=11 // pred_fallthru
          _
        // Predicated region
        $region21: #{_lambda_.1} parent=11 // pred_check
          %p547 = pneg %p99
        $region22: #{_lambda_.1} parent=11 // pred_check_branch
          %549 = sbr.rel (%p547) target = $region24
        $region23: #{_lambda_.1} parent=11 // pred_region
          _
        $region24: #{_lambda_.1} parent=11 // pred_fallthru
          _
        // Predicated region
        $region25: #{_lambda_.1} parent=11 // pred_check
          %p550 = pneg %p484
        $region26: #{_lambda_.1} parent=11 // pred_check_branch
          %552 = sbr.rel (%p550) target = $region28
        $region27: #{_lambda_.1} parent=11 // pred_region
          _
        $region28: #{_lambda_.1} parent=11 // pred_fallthru
          _
        // Predicated region
        $region29: #{_lambda_.1} parent=11 // pred_check
          %p553 = pneg %p505
        $region30: #{_lambda_.1} parent=11 // pred_check_branch
          %555 = sbr.rel (%p553) target = $region32
        $region31: #{_lambda_.1} parent=11 // pred_region
          %s557 = ssub.s32 16, 16
          %558 = vsyncadd [#allocation14], %s557
          %s560 = sshll.u32 [#allocation13], 4
          %s561 = int_to_ptr.vmem [resolvable:$true] %s560
          %563 = dma.hbm_to_vmem [thread:$0]  %s18, 16, %s561, [#allocation14]
        $region32: #{_lambda_.1} parent=11 // pred_fallthru
          _
      $region12: #{_lambda_.1} parent=5 // pred_fallthru
        _
      %p564 = scmp.lt.s32.totalorder %s36, 2
      // Predicated region
      $region33: #{_lambda_.1} parent=5 // pred_check
        %p565 = pneg %p564
      $region34: #{_lambda_.1} parent=5 // pred_check_branch
        %567 = sbr.rel (%p565) target = $region36
      $region35: #{_lambda_.1} parent=5 // pred_region
        // Predicated region
        $region37: #{_lambda_.1} parent=35 // pred_check
          %p568 = pneg %p119
        $region38: #{_lambda_.1} parent=35 // pred_check_branch
          %570 = sbr.rel (%p568) target = $region40
        $region39: #{_lambda_.1} parent=35 // pred_region
          %p571 = scmp.lt.s32.totalorder %s36, 1
          %s572 = scalar_select %p571, %s36, 1
          %s573 = scalar_lea.vmem %s3, %s572
        $region40: #{_lambda_.1} parent=35 // pred_fallthru
          _
        // Predicated region
        $region41: #{_lambda_.1} parent=35 // pred_check
          %p574 = pneg %p145
        $region42: #{_lambda_.1} parent=35 // pred_check_branch
          %576 = sbr.rel (%p574) target = $region44
        $region43: #{_lambda_.1} parent=35 // pred_region
          %p577 = scmp.lt.s32.totalorder %s36, 1
          %s578 = scalar_select %p577, %s36, 1
          %s579 = scalar_lea.vmem %s4, %s578
        $region44: #{_lambda_.1} parent=35 // pred_fallthru
          _
        // Predicated region
        $region45: #{_lambda_.1} parent=35 // pred_check
          %p580 = pneg %p171
        $region46: #{_lambda_.1} parent=35 // pred_check_branch
          %582 = sbr.rel (%p580) target = $region48
        $region47: #{_lambda_.1} parent=35 // pred_region
          %p583 = scmp.lt.s32.totalorder %s36, 1
          %s584 = scalar_select %p583, %s36, 1
          %s585 = smul.addr %s584, 48
          %s586 = smul.addr %s585, 4
          %s587 = scalar_lea.vmem %s5, %s586
        $region48: #{_lambda_.1} parent=35 // pred_fallthru
          _
        // Predicated region
        $region49: #{_lambda_.1} parent=35 // pred_check
          %p588 = pneg %p197
        $region50: #{_lambda_.1} parent=35 // pred_check_branch
          %590 = sbr.rel (%p588) target = $region52
        $region51: #{_lambda_.1} parent=35 // pred_region
          %s591 = sand.u32 %s187, 1
          %s592 = scalar_lea.sflag [#allocation5], %s591
          %s593 = sand.u32 %s187, 1
          %s594 = smul.addr %s593, 3
          %s595 = scalar_lea.vmem [#allocation4], %s594
          %s597 = ssub.s32 48, 48
          %598 = vsyncadd %s592, %s597
          %s599 = smul.addr %s36, 3
          %s600 = smul.addr %s599, 16
          %s601 = scalar_lea.hbm %s6, %s600
          %s603 = sshll.u32 %s595, 4
          %s604 = int_to_ptr.vmem [resolvable:$true] %s603
          %606 = dma.hbm_to_vmem [thread:$0]  %s601, 48, %s604, %s592
        $region52: #{_lambda_.1} parent=35 // pred_fallthru
          _
        // Predicated region
        $region53: #{_lambda_.1} parent=35 // pred_check
          %p607 = pneg %p223
        $region54: #{_lambda_.1} parent=35 // pred_check_branch
          %609 = sbr.rel (%p607) target = $region56
        $region55: #{_lambda_.1} parent=35 // pred_region
          %p610 = scmp.lt.s32.totalorder %s36, 1
          %s611 = scalar_select %p610, %s36, 1
          %s612 = smul.addr %s611, 16
          %s613 = smul.addr %s612, 4
          %s614 = scalar_lea.vmem %s7, %s613
        $region56: #{_lambda_.1} parent=35 // pred_fallthru
          _
        // Predicated region
        $region57: #{_lambda_.1} parent=35 // pred_check
          %p615 = pneg %p249
        $region58: #{_lambda_.1} parent=35 // pred_check_branch
          %617 = sbr.rel (%p615) target = $region60
        $region59: #{_lambda_.1} parent=35 // pred_region
          %s618 = sand.u32 %s36, 1
          %s619 = scalar_lea.sflag [#allocation8], %s618
          %s620 = sand.u32 %s239, 1
          %s621 = scalar_lea.vmem [#allocation7], %s620
          %s623 = ssub.s32 16, 16
          %624 = vsyncadd %s619, %s623
          %s625 = smul.addr %s36, 16
          %s626 = scalar_lea.hbm %s8, %s625
          %s628 = sshll.u32 %s621, 4
          %s629 = int_to_ptr.vmem [resolvable:$true] %s628
          %631 = dma.hbm_to_vmem [thread:$0]  %s626, 16, %s629, %s619
        $region60: #{_lambda_.1} parent=35 // pred_fallthru
          _
        // Predicated region
        $region61: #{_lambda_.1} parent=35 // pred_check
          %p632 = pneg %p275
        $region62: #{_lambda_.1} parent=35 // pred_check_branch
          %634 = sbr.rel (%p632) target = $region64
        $region63: #{_lambda_.1} parent=35 // pred_region
          %p635 = scmp.lt.s32.totalorder %s36, 1
          %s636 = scalar_select %p635, %s36, 1
          %s637 = scalar_lea.vmem %s9, %s636
        $region64: #{_lambda_.1} parent=35 // pred_fallthru
          _
        // Predicated region
        $region65: #{_lambda_.1} parent=35 // pred_check
          %p638 = pneg %p301
        $region66: #{_lambda_.1} parent=35 // pred_check_branch
          %640 = sbr.rel (%p638) target = $region68
        $region67: #{_lambda_.1} parent=35 // pred_region
          %p641 = scmp.lt.s32.totalorder %s36, 1
          %s642 = scalar_select %p641, %s36, 1
          %s643 = scalar_lea.vmem %s10, %s642
        $region68: #{_lambda_.1} parent=35 // pred_fallthru
          _
        // Predicated region
        $region69: #{_lambda_.1} parent=35 // pred_check
          %p644 = pneg %p327
        $region70: #{_lambda_.1} parent=35 // pred_check_branch
          %646 = sbr.rel (%p644) target = $region72
        $region71: #{_lambda_.1} parent=35 // pred_region
          %p647 = scmp.lt.s32.totalorder %s36, 1
          %s648 = scalar_select %p647, %s36, 1
          %s649 = scalar_lea.vmem %s11, %s648
        $region72: #{_lambda_.1} parent=35 // pred_fallthru
          _
        // Predicated region
        $region73: #{_lambda_.1} parent=35 // pred_check
          %p650 = pneg %p353
        $region74: #{_lambda_.1} parent=35 // pred_check_branch
          %652 = sbr.rel (%p650) target = $region76
        $region75: #{_lambda_.1} parent=35 // pred_region
          %p653 = scmp.lt.s32.totalorder %s36, 1
          %s654 = scalar_select %p653, %s36, 1
          %s655 = smul.addr %s654, 64
          %s656 = smul.addr %s655, 4
          %s657 = scalar_lea.vmem %s12, %s656
        $region76: #{_lambda_.1} parent=35 // pred_fallthru
          _
        // Predicated region
        $region77: #{_lambda_.1} parent=35 // pred_check
          %p658 = pneg %p379
        $region78: #{_lambda_.1} parent=35 // pred_check_branch
          %660 = sbr.rel (%p658) target = $region80
        $region79: #{_lambda_.1} parent=35 // pred_region
          %p661 = scmp.lt.s32.totalorder %s36, 1
          %s662 = scalar_select %p661, %s36, 1
          %s663 = smul.addr %s662, 4
          %s664 = scalar_lea.vmem %s13, %s663
        $region80: #{_lambda_.1} parent=35 // pred_fallthru
          _
        // Predicated region
        $region81: #{_lambda_.1} parent=35 // pred_check
          %p665 = pneg %p405
        $region82: #{_lambda_.1} parent=35 // pred_check_branch
          %667 = sbr.rel (%p665) target = $region84
        $region83: #{_lambda_.1} parent=35 // pred_region
          %s668 = sand.u32 %s36, 1
          %s669 = scalar_lea.sflag [#allocation8], %s668
          %s670 = sand.u32 %s395, 1
          %s671 = smul.addr %s670, 128
          %s672 = scalar_lea.vmem [#allocation9], %s671
          %s674 = ssub.s32 2048, 2048
          %675 = vsyncadd %s669, %s674
          %s676 = smul.addr %s36, 32
          %s677 = smul.addr %s676, 64
          %s678 = scalar_lea.hbm %s14, %s677
          %s679 = sshll.u32 %s672, 4
          %s680 = int_to_ptr.vmem [resolvable:$true] %s679
          %685 = dma.hbm_to_vmem [thread:$0]  %s678, 2048, %s680, %s669, 64, 64, 4
        $region84: #{_lambda_.1} parent=35 // pred_fallthru
          _
        // Predicated region
        $region85: #{_lambda_.1} parent=35 // pred_check
          %p686 = pneg %p431
        $region86: #{_lambda_.1} parent=35 // pred_check_branch
          %688 = sbr.rel (%p686) target = $region88
        $region87: #{_lambda_.1} parent=35 // pred_region
          %s689 = sand.u32 %s36, 1
          %s690 = scalar_lea.sflag [#allocation11], %s689
          %s691 = sand.u32 %s421, 1
          %s692 = scalar_lea.vmem [#allocation10], %s691
          %s694 = ssub.s32 16, 16
          %695 = vsyncadd %s690, %s694
          %s696 = smul.addr %s36, 16
          %s697 = scalar_lea.hbm %s15, %s696
          %s699 = sshll.u32 %s692, 4
          %s700 = int_to_ptr.vmem [resolvable:$true] %s699
          %702 = dma.hbm_to_vmem [thread:$0]  %s697, 16, %s700, %s690
        $region88: #{_lambda_.1} parent=35 // pred_fallthru
          _
        // Predicated region
        $region89: #{_lambda_.1} parent=35 // pred_check
          %p703 = pneg %p457
        $region90: #{_lambda_.1} parent=35 // pred_check_branch
          %705 = sbr.rel (%p703) target = $region92
        $region91: #{_lambda_.1} parent=35 // pred_region
          %s706 = sand.u32 %s36, 1
          %s707 = scalar_lea.sflag [#allocation11], %s706
          %s708 = sand.u32 %s447, 1
          %s709 = scalar_lea.vmem [#allocation12], %s708
          %s711 = ssub.s32 16, 16
          %712 = vsyncadd %s707, %s711
          %s713 = smul.addr %s36, 16
          %s714 = scalar_lea.hbm %s16, %s713
          %s716 = sshll.u32 %s709, 4
          %s717 = int_to_ptr.vmem [resolvable:$true] %s716
          %719 = dma.hbm_to_vmem [thread:$0]  %s714, 16, %s717, %s707
        $region92: #{_lambda_.1} parent=35 // pred_fallthru
          _
      $region36: #{_lambda_.1} parent=5 // pred_fallthru
        _
      %p720 = scmp.le.s32.totalorder 1, %s36
      %p721 = scmp.lt.s32.totalorder %s36, 3
      %p722 = pnand %p720, %p721
      %p723 = pneg %p722
      // Predicated region
      $region93: #{_lambda_.1} parent=5 // pred_check
        _
      $region94: #{_lambda_.1} parent=5 // pred_check_branch
        %725 = sbr.rel (%p722) target = $region96
      $region95: #{_lambda_.1} parent=5 // pred_region
        %s726 = ssub.s32 %s36, 1
        %s727 = sand.u32 %s190, 1
        %s728 = scalar_lea.sflag [#allocation5], %s727
        %s729 = sand.u32 %s190, 1
        %s730 = smul.addr %s729, 3
        %s731 = scalar_lea.vmem [#allocation4], %s730
        // Predicated region
        $region97: #{_lambda_.1} parent=95 // pred_check
          %p732 = pneg %p203
        $region98: #{_lambda_.1} parent=95 // pred_check_branch
          %734 = sbr.rel (%p732) target = $region100
        $region99: #{_lambda_.1} parent=95 // pred_region
          %735 = dma.done %s728, 48
        $region100: #{_lambda_.1} parent=95 // pred_fallthru
          _
        %s736 = sand.u32 %s41, 1
        %s737 = scalar_lea.sflag [#allocation8], %s736
        %s738 = sand.u32 %s242, 1
        %s739 = scalar_lea.vmem [#allocation7], %s738
        // Predicated region
        $region101: #{_lambda_.1} parent=95 // pred_check
          %p740 = pneg %p255
        $region102: #{_lambda_.1} parent=95 // pred_check_branch
          %742 = sbr.rel (%p740) target = $region104
        $region103: #{_lambda_.1} parent=95 // pred_region
          %743 = dma.done %s737, 16
        $region104: #{_lambda_.1} parent=95 // pred_fallthru
          _
        %s744 = sand.u32 %s41, 1
        %s745 = scalar_lea.sflag [#allocation8], %s744
        %s746 = sand.u32 %s398, 1
        %s747 = smul.addr %s746, 128
        %s748 = scalar_lea.vmem [#allocation9], %s747
        // Predicated region
        $region105: #{_lambda_.1} parent=95 // pred_check
          %p749 = pneg %p411
        $region106: #{_lambda_.1} parent=95 // pred_check_branch
          %751 = sbr.rel (%p749) target = $region108
        $region107: #{_lambda_.1} parent=95 // pred_region
          %752 = dma.done %s745, 2048
        $region108: #{_lambda_.1} parent=95 // pred_fallthru
          _
        %s753 = sand.u32 %s41, 1
        %s754 = scalar_lea.sflag [#allocation11], %s753
        %s755 = sand.u32 %s424, 1
        %s756 = scalar_lea.vmem [#allocation10], %s755
        // Predicated region
        $region109: #{_lambda_.1} parent=95 // pred_check
          %p757 = pneg %p437
        $region110: #{_lambda_.1} parent=95 // pred_check_branch
          %759 = sbr.rel (%p757) target = $region112
        $region111: #{_lambda_.1} parent=95 // pred_region
          %760 = dma.done %s754, 16
        $region112: #{_lambda_.1} parent=95 // pred_fallthru
          _
        %s761 = sand.u32 %s41, 1
        %s762 = scalar_lea.sflag [#allocation11], %s761
        %s763 = sand.u32 %s450, 1
        %s764 = scalar_lea.vmem [#allocation12], %s763
        // Predicated region
        $region113: #{_lambda_.1} parent=95 // pred_check
          %p765 = pneg %p463
        $region114: #{_lambda_.1} parent=95 // pred_check_branch
          %767 = sbr.rel (%p765) target = $region116
        $region115: #{_lambda_.1} parent=95 // pred_region
          %768 = dma.done %s762, 16
        $region116: #{_lambda_.1} parent=95 // pred_fallthru
          _
        // Predicated region
        $region117: #{_lambda_.1} parent=95 // pred_check
          %p769 = pneg %p505
        $region118: #{_lambda_.1} parent=95 // pred_check_branch
          %771 = sbr.rel (%p769) target = $region120
        $region119: #{_lambda_.1} parent=95 // pred_region
          %772 = dma.done [#allocation14], 16
        $region120: #{_lambda_.1} parent=95 // pred_fallthru
          _
        %p773 = pneg %p57
        %p774 = pneg %p54
        %p775 = pneg %p78
        %p776 = pneg %p75
        %p777 = pneg %p99
        %p778 = pneg %p96
        %p779 = scmp.lt.s32.totalorder %s41, 1
        %s780 = scalar_select %p779, %s41, 1
        %s781 = scalar_lea.vmem %s3, %s780
        %p782 = pneg %p125
        %p783 = pneg %p122
        %p784 = scmp.lt.s32.totalorder %s41, 1
        %s785 = scalar_select %p784, %s41, 1
        %s786 = scalar_lea.vmem %s4, %s785
        %p787 = pneg %p151
        %p788 = pneg %p148
        %p789 = scmp.lt.s32.totalorder %s41, 1
        %s790 = scalar_select %p789, %s41, 1
        %s791 = smul.addr %s790, 48
        %s792 = smul.addr %s791, 4
        %s793 = scalar_lea.vmem %s5, %s792
        %p794 = pneg %p177
        %p795 = pneg %p174
        %s796 = sand.u32 %s190, 1
        %s797 = scalar_lea.sflag [#allocation5], %s796
        %s798 = sand.u32 %s190, 1
        %s799 = smul.addr %s798, 3
        %s800 = scalar_lea.vmem [#allocation4], %s799
        %p801 = pneg %p203
        %p802 = pneg %p200
        %p803 = scmp.lt.s32.totalorder %s41, 1
        %s804 = scalar_select %p803, %s41, 1
        %s805 = smul.addr %s804, 16
        %s806 = smul.addr %s805, 4
        %s807 = scalar_lea.vmem %s7, %s806
        %p808 = pneg %p229
        %p809 = pneg %p226
        %s810 = sand.u32 %s41, 1
        %s811 = scalar_lea.sflag [#allocation8], %s810
        %s812 = sand.u32 %s242, 1
        %s813 = scalar_lea.vmem [#allocation7], %s812
        %p814 = pneg %p255
        %p815 = pneg %p252
        %p816 = scmp.lt.s32.totalorder %s41, 1
        %s817 = scalar_select %p816, %s41, 1
        %s818 = scalar_lea.vmem %s9, %s817
        %p819 = pneg %p281
        %p820 = pneg %p278
        %p821 = scmp.lt.s32.totalorder %s41, 1
        %s822 = scalar_select %p821, %s41, 1
        %s823 = scalar_lea.vmem %s10, %s822
        %p824 = pneg %p307
        %p825 = pneg %p304
        %p826 = scmp.lt.s32.totalorder %s41, 1
        %s827 = scalar_select %p826, %s41, 1
        %s828 = scalar_lea.vmem %s11, %s827
        %p829 = pneg %p333
        %p830 = pneg %p330
        %p831 = scmp.lt.s32.totalorder %s41, 1
        %s832 = scalar_select %p831, %s41, 1
        %s833 = smul.addr %s832, 64
        %s834 = smul.addr %s833, 4
        %s835 = scalar_lea.vmem %s12, %s834
        %p836 = pneg %p359
        %p837 = pneg %p356
        %p838 = scmp.lt.s32.totalorder %s41, 1
        %s839 = scalar_select %p838, %s41, 1
        %s840 = smul.addr %s839, 4
        %s841 = scalar_lea.vmem %s13, %s840
        %p842 = pneg %p385
        %p843 = pneg %p382
        %s844 = sand.u32 %s41, 1
        %s845 = scalar_lea.sflag [#allocation8], %s844
        %s846 = sand.u32 %s398, 1
        %s847 = smul.addr %s846, 128
        %s848 = scalar_lea.vmem [#allocation9], %s847
        %p849 = pneg %p411
        %p850 = pneg %p408
        %s851 = sand.u32 %s41, 1
        %s852 = scalar_lea.sflag [#allocation11], %s851
        %s853 = sand.u32 %s424, 1
        %s854 = scalar_lea.vmem [#allocation10], %s853
        %p855 = pneg %p437
        %p856 = pneg %p434
        %s857 = sand.u32 %s41, 1
        %s858 = scalar_lea.sflag [#allocation11], %s857
        %s859 = sand.u32 %s450, 1
        %s860 = scalar_lea.vmem [#allocation12], %s859
        %p861 = pneg %p463
        %p862 = pneg %p460
        %p863 = pneg %p484
        %p864 = pneg %p481
        %p865 = pneg %p505
        %p866 = pneg %p502
        %p867 = pneg %p526
        %p868 = pneg %p523
        %p869 = scmp.lt.s32.totalorder %s41, 1
        %s870 = scalar_select %p869, %s41, 1
        %s871 = scalar_lea.vmem %s3, %s870
        %p872 = scmp.lt.s32.totalorder %s41, 1
        %s873 = scalar_select %p872, %s41, 1
        %s874 = scalar_lea.vmem %s4, %s873
        %p875 = scmp.lt.s32.totalorder %s41, 1
        %s876 = scalar_select %p875, %s41, 1
        %s877 = smul.addr %s876, 48
        %s878 = smul.addr %s877, 4
        %s879 = scalar_lea.vmem %s5, %s878
        %p880 = scmp.lt.s32.totalorder %s41, 1
        %s881 = scalar_select %p880, %s41, 1
        %s882 = smul.addr %s881, 16
        %s883 = smul.addr %s882, 4
        %s884 = scalar_lea.vmem %s7, %s883
        %p885 = scmp.lt.s32.totalorder %s41, 1
        %s886 = scalar_select %p885, %s41, 1
        %s887 = scalar_lea.vmem %s9, %s886
        %p888 = scmp.lt.s32.totalorder %s41, 1
        %s889 = scalar_select %p888, %s41, 1
        %s890 = scalar_lea.vmem %s10, %s889
        %p891 = scmp.lt.s32.totalorder %s41, 1
        %s892 = scalar_select %p891, %s41, 1
        %s893 = scalar_lea.vmem %s11, %s892
        %p894 = scmp.lt.s32.totalorder %s41, 1
        %s895 = scalar_select %p894, %s41, 1
        %s896 = smul.addr %s895, 64
        %s897 = smul.addr %s896, 4
        %s898 = scalar_lea.vmem %s12, %s897
        %p899 = scmp.lt.s32.totalorder %s41, 1
        %s900 = scalar_select %p899, %s41, 1
        %s901 = smul.addr %s900, 4
        %s902 = scalar_lea.vmem %s13, %s901
        %p904 = scmp.eq.s32.totalorder %s41, 0
        // Predicated region
        $region121: #{_lambda_.1} parent=95 // pred_check
          %p905 = pneg %p904
        $region122: #{_lambda_.1} parent=95 // pred_check_branch
          %907 = sbr.rel (%p905) target = $region124
        $region123: #{_lambda_.1} parent=95 // pred_region
          %v908 = vld [vmem:[%s0] sm:$0xf]
          %v909 = vld [vmem:[%s0 + $0x4] sm:$0xf]
          %v910 = vld [vmem:[%s0 + $0x8] sm:$0xf]
          %v911 = vld [vmem:[%s0 + $0xc] sm:$0xf]
          %v912 = vld [vmem:[%s0 + $0x10] sm:$0xf]
          %v913 = vld [vmem:[%s0 + $0x14] sm:$0xf]
          %v914 = vld [vmem:[%s1] sm:$0xf]
          %v915 = vld [vmem:[%s1 + $0x4] sm:$0xf]
          %v916 = vld [vmem:[%s1 + $0x8] sm:$0xf]
          %v917 = vld [vmem:[%s1 + $0xc] sm:$0xf]
          %v918 = vld [vmem:[%s1 + $0x10] sm:$0xf]
          %v919 = vld [vmem:[%s1 + $0x14] sm:$0xf]
          %v920 = vld [vmem:[%s1 + $0x18] sm:$0xf]
          %v921 = vld [vmem:[%s1 + $0x1c] sm:$0xf]
          %v922 = vld [vmem:[%s1 + $0x20] sm:$0xf]
          %v923 = vld [vmem:[%s1 + $0x24] sm:$0xf]
          %v924 = vld [vmem:[%s1 + $0x28] sm:$0xf]
          %v925 = vld [vmem:[%s1 + $0x2c] sm:$0xf]
          %v926 = vld [vmem:[%s1 + $0x30] sm:$0xf]
          %v927 = vld [vmem:[%s1 + $0x34] sm:$0xf]
          %v928 = vld [vmem:[%s1 + $0x38] sm:$0xf]
          %v929 = vld [vmem:[%s1 + $0x3c] sm:$0xf]
          %v930 = vld [vmem:[%s2] sm:$0xff]
          %v931 = vld [vmem:[%s2 + $0x8] sm:$0xff]
          %v932 = vld [vmem:[%s2 + $0x10] sm:$0xff]
          %v933 = vld [vmem:[%s2 + $0x18] sm:$0xff]
          %v934 = vld [vmem:[%s2 + $0x20] sm:$0xff]
          %v935 = vld [vmem:[%s2 + $0x28] sm:$0xff]
          %v942 = vunpack.c.l.b16 %v908
          %v943 = vunpack.c.l.b16 %v909
          %v944 = vunpack.c.l.b16 %v910
          %v945 = vunpack.c.l.b16 %v911
          %v946 = vunpack.c.l.b16 %v912
          %v947 = vunpack.c.l.b16 %v913
          %v948 = vpack.c.b16 %v943, %v942
          %v949 = vpack.c.b16 %v945, %v944
          %v950 = vpack.c.b16 %v947, %v946
          %v970 = vunpack.c.l.b16 %v914
          %v971 = vunpack.c.l.b16 %v915
          %v972 = vunpack.c.l.b16 %v916
          %v973 = vunpack.c.l.b16 %v917
          %v974 = vunpack.c.l.b16 %v918
          %v975 = vunpack.c.l.b16 %v919
          %v976 = vunpack.c.l.b16 %v920
          %v977 = vunpack.c.l.b16 %v921
          %v978 = vunpack.c.l.b16 %v922
          %v979 = vunpack.c.l.b16 %v923
          %v980 = vunpack.c.l.b16 %v924
          %v981 = vunpack.c.l.b16 %v925
          %v982 = vunpack.c.l.b16 %v926
          %v983 = vunpack.c.l.b16 %v927
          %v984 = vunpack.c.l.b16 %v928
          %v985 = vunpack.c.l.b16 %v929
          %v986 = vpack.c.b16 %v971, %v970
          %v987 = vpack.c.b16 %v973, %v972
          %v988 = vpack.c.b16 %v975, %v974
          %v989 = vpack.c.b16 %v977, %v976
          %v990 = vpack.c.b16 %v979, %v978
          %v991 = vpack.c.b16 %v981, %v980
          %v992 = vpack.c.b16 %v983, %v982
          %v993 = vpack.c.b16 %v985, %v984
          %1002 = vmatprep.subr.bf16.mxu0 0
          %1003 = vmatpush1.bf16.msra.mxu0 %v986
          %1004 = vmatprep.subr.bf16.mxu0 0
          %1005 = vmatpush1.bf16.msra.mxu0 %v987
          %1006 = vmatprep.subr.bf16.mxu0 0
          %1007 = vmatpush1.bf16.msra.mxu0 %v988
          %1008 = vmatprep.subr.bf16.mxu0 0
          %1009 = vmatpush1.bf16.msra.mxu0 %v989
          %1010 = vmatprep.subr.bf16.mxu0 0
          %1011 = vmatpush1.bf16.msra.mxu0 %v990
          %1012 = vmatprep.subr.bf16.mxu0 0
          %1013 = vmatpush1.bf16.msra.mxu0 %v991
          %1014 = vmatprep.subr.bf16.mxu0 0
          %1015 = vmatpush1.bf16.msra.mxu0 %v992
          %1016 = vmatprep.subr.bf16.mxu0 0
          %1017 = vmatpush1.bf16.msra.mxu0 %v993
          %1018 = vmatprep.subr.bf16.mxu0 0
          %1019 = vmatpush1.bf16.msra.mxu0 0
          %1020 = vmatprep.subr.bf16.mxu0 0
          %1021 = vmatpush1.bf16.msra.mxu0 0
          %1022 = vmatprep.subr.bf16.mxu0 0
          %1023 = vmatpush1.bf16.msra.mxu0 0
          %1024 = vmatprep.subr.bf16.mxu0 0
          %1025 = vmatpush1.bf16.msra.mxu0 0
          %1026 = vmatprep.subr.bf16.mxu0 0
          %1027 = vmatpush1.bf16.msra.mxu0 0
          %1028 = vmatprep.subr.bf16.mxu0 0
          %1029 = vmatpush1.bf16.msra.mxu0 0
          %1030 = vmatprep.subr.bf16.mxu0 0
          %1031 = vmatpush1.bf16.msra.mxu0 0
          %1032 = vmatprep.subr.bf16.mxu0 0
          %1033 = vmatpush1.bf16.msra.mxu0 0
          %1034 = vmatprep.mubr.bf16.mxu0 0
          %1035 = vmatmul.mubr.bf16.gmra.mrb[0].mxu0 %v948
          %v1036 = vpop.f32.mrb[0].mxu0
          %v1037 = vadd.f32 %v930, %v1036
          %v1038 = vpop.f32.mrb[0].mxu0
          %v1039 = vpop.f32.mrb[0].mxu0
          %v1040 = vadd.f32 %v931, %v1039
          %v1041 = vpop.f32.mrb[0].mxu0
          %1042 = vmatprep.mubr.bf16.mxu0 0
          %1043 = vmatmul.mubr.bf16.gmra.mrb[0].mxu0 %v949
          %v1044 = vpop.f32.mrb[0].mxu0
          %v1045 = vadd.f32 %v932, %v1044
          %v1046 = vpop.f32.mrb[0].mxu0
          %v1047 = vpop.f32.mrb[0].mxu0
          %v1048 = vadd.f32 %v933, %v1047
          %v1049 = vpop.f32.mrb[0].mxu0
          %1050 = vmatprep.mubr.bf16.mxu0 0
          %1051 = vmatmul.mubr.bf16.gmra.mrb[0].mxu0 %v950
          %v1052 = vpop.f32.mrb[0].mxu0
          %v1053 = vadd.f32 %v934, %v1052
          %v1054 = vpop.f32.mrb[0].mxu0
          %v1055 = vpop.f32.mrb[0].mxu0
          %v1056 = vadd.f32 %v935, %v1055
          %v1057 = vpop.f32.mrb[0].mxu0
          %1058 = vdwg.mxu0
          %1059 = vst [vmem:[#allocation2] sm:$0xff] %v1037
          %1060 = vst [vmem:[#allocation2 + $0x8] sm:$0xff] %v1040
          %1061 = vst [vmem:[#allocation2 + $0x10] sm:$0xff] %v1045
          %1062 = vst [vmem:[#allocation2 + $0x18] sm:$0xff] %v1048
          %1063 = vst [vmem:[#allocation2 + $0x20] sm:$0xff] %v1053
          %1064 = vst [vmem:[#allocation2 + $0x28] sm:$0xff] %v1056
        $region124: #{_lambda_.1} parent=95 // pred_fallthru
          _
        %v1065 = vld [vmem:[#allocation2] sm:$0xff]
        %v1066 = vld [vmem:[#allocation2 + $0x8] sm:$0xff]
        %v1067 = vld [vmem:[#allocation2 + $0x10] sm:$0xff]
        %v1068 = vld [vmem:[#allocation2 + $0x18] sm:$0xff]
        %v1069 = vld [vmem:[#allocation2 + $0x20] sm:$0xff]
        %v1070 = vld [vmem:[#allocation2 + $0x28] sm:$0xff]
        %v1071 = vld [vmem:[%s871] sm:$0x1]
        %v1072 = vld [vmem:[%s874] sm:$0x1]
        %1073 = vadd.xlane.f32.xlu0 %v1065
        %v1074 = vpop.xlane.xlu0 %1073
        %1075 = vadd.xlane.f32.xlu0 %v1066
        %v1076 = vpop.xlane.xlu0 %1075
        %1077 = vadd.xlane.f32.xlu0 %v1067
        %v1078 = vpop.xlane.xlu0 %1077
        %1079 = vadd.xlane.f32.xlu0 %v1068
        %v1080 = vpop.xlane.xlu0 %1079
        %1081 = vadd.xlane.f32.xlu0 %v1069
        %v1082 = vpop.xlane.xlu0 %1081
        %1083 = vadd.xlane.f32.xlu0 %v1070
        %v1084 = vpop.xlane.xlu0 %1083
        %v1085 = vrcp.pop 128.0
        %v1086 = vmul.f32 %v1074, %v1085
        %v1087 = vmul.f32 %v1076, %v1085
        %v1088 = vmul.f32 %v1078, %v1085
        %v1089 = vmul.f32 %v1080, %v1085
        %v1090 = vmul.f32 %v1082, %v1085
        %v1091 = vmul.f32 %v1084, %v1085
        %v1092 = vsub.f32 %v1065, %v1086
        %v1093 = vsub.f32 %v1066, %v1087
        %v1094 = vsub.f32 %v1067, %v1088
        %v1095 = vsub.f32 %v1068, %v1089
        %v1096 = vsub.f32 %v1069, %v1090
        %v1097 = vsub.f32 %v1070, %v1091
        %v1098 = vmul.f32 %v1092, %v1092
        %v1099 = vmul.f32 %v1093, %v1093
        %v1100 = vmul.f32 %v1094, %v1094
        %v1101 = vmul.f32 %v1095, %v1095
        %v1102 = vmul.f32 %v1096, %v1096
        %v1103 = vmul.f32 %v1097, %v1097
        %1104 = vadd.xlane.f32.xlu0 %v1098
        %v1105 = vpop.xlane.xlu0 %1104
        %1106 = vadd.xlane.f32.xlu0 %v1099
        %v1107 = vpop.xlane.xlu0 %1106
        %1108 = vadd.xlane.f32.xlu0 %v1100
        %v1109 = vpop.xlane.xlu0 %1108
        %1110 = vadd.xlane.f32.xlu0 %v1101
        %v1111 = vpop.xlane.xlu0 %1110
        %1112 = vadd.xlane.f32.xlu0 %v1102
        %v1113 = vpop.xlane.xlu0 %1112
        %1114 = vadd.xlane.f32.xlu0 %v1103
        %v1115 = vpop.xlane.xlu0 %1114
        %v1116 = vmul.f32 %v1105, %v1085
        %v1117 = vmul.f32 %v1107, %v1085
        %v1118 = vmul.f32 %v1109, %v1085
        %v1119 = vmul.f32 %v1111, %v1085
        %v1120 = vmul.f32 %v1113, %v1085
        %v1121 = vmul.f32 %v1115, %v1085
        %v1122 = vadd.f32 %v1116, 1e-06
        %v1123 = vadd.f32 %v1117, 1e-06
        %v1124 = vadd.f32 %v1118, 1e-06
        %v1125 = vadd.f32 %v1119, 1e-06
        %v1126 = vadd.f32 %v1120, 1e-06
        %v1127 = vadd.f32 %v1121, 1e-06
        %v1128 = vrsqrt.pop %v1122
        %v1129 = vrsqrt.pop %v1123
        %v1130 = vrsqrt.pop %v1124
        %v1131 = vrsqrt.pop %v1125
        %v1132 = vrsqrt.pop %v1126
        %v1133 = vrsqrt.pop %v1127
        %v1134 = vmul.f32 %v1092, %v1128
        %v1135 = vmul.f32 %v1093, %v1129
        %v1136 = vmul.f32 %v1094, %v1130
        %v1137 = vmul.f32 %v1095, %v1131
        %v1138 = vmul.f32 %v1096, %v1132
        %v1139 = vmul.f32 %v1097, %v1133
        %v1141 = vlaneseq
        %v1142 = vshrl.u32 %v1141, 7
        %v1143 = vsub.s32 0, %v1142
        %v1144 = vrot.slane %v1071, %v1143
        %v1146 = vmul.f32 %v1134, %v1144
        %v1147 = vmul.f32 %v1135, %v1144
        %v1148 = vmul.f32 %v1136, %v1144
        %v1149 = vmul.f32 %v1137, %v1144
        %v1150 = vmul.f32 %v1138, %v1144
        %v1151 = vmul.f32 %v1139, %v1144
        %v1153 = vlaneseq
        %v1154 = vshrl.u32 %v1153, 7
        %v1155 = vsub.s32 0, %v1154
        %v1156 = vrot.slane %v1072, %v1155
        %v1158 = vadd.f32 %v1146, %v1156
        %v1159 = vadd.f32 %v1147, %v1156
        %v1160 = vadd.f32 %v1148, %v1156
        %v1161 = vadd.f32 %v1149, %v1156
        %v1162 = vadd.f32 %v1150, %v1156
        %v1163 = vadd.f32 %v1151, %v1156
        %v1164 = vld [vmem:[%s879] sm:$0xff]
        %v1165 = vld [vmem:[%s879 + $0x8] sm:$0xf]
        %v1166 = vld [vmem:[%s879 + $0xc] sm:$0xff]
        %v1167 = vld [vmem:[%s879 + $0x14] sm:$0xf]
        %v1168 = vld [vmem:[%s879 + $0x18] sm:$0xff]
        %v1169 = vld [vmem:[%s879 + $0x20] sm:$0xf]
        %v1170 = vld [vmem:[%s879 + $0x24] sm:$0xff]
        %v1171 = vld [vmem:[%s879 + $0x2c] sm:$0xf]
        %v1172 = vld [vmem:[%s879 + $0x30] sm:$0xff]
        %v1173 = vld [vmem:[%s879 + $0x38] sm:$0xf]
        %v1174 = vld [vmem:[%s879 + $0x3c] sm:$0xff]
        %v1175 = vld [vmem:[%s879 + $0x44] sm:$0xf]
        %v1176 = vld [vmem:[%s879 + $0x48] sm:$0xff]
        %v1177 = vld [vmem:[%s879 + $0x50] sm:$0xf]
        %v1178 = vld [vmem:[%s879 + $0x54] sm:$0xff]
        %v1179 = vld [vmem:[%s879 + $0x5c] sm:$0xf]
        %v1180 = vld [vmem:[%s879 + $0x60] sm:$0xff]
        %v1181 = vld [vmem:[%s879 + $0x68] sm:$0xf]
        %v1182 = vld [vmem:[%s879 + $0x6c] sm:$0xff]
        %v1183 = vld [vmem:[%s879 + $0x74] sm:$0xf]
        %v1184 = vld [vmem:[%s879 + $0x78] sm:$0xff]
        %v1185 = vld [vmem:[%s879 + $0x80] sm:$0xf]
        %v1186 = vld [vmem:[%s879 + $0x84] sm:$0xff]
        %v1187 = vld [vmem:[%s879 + $0x8c] sm:$0xf]
        %v1188 = vld [vmem:[%s879 + $0x90] sm:$0xff]
        %v1189 = vld [vmem:[%s879 + $0x98] sm:$0xf]
        %v1190 = vld [vmem:[%s879 + $0x9c] sm:$0xff]
        %v1191 = vld [vmem:[%s879 + $0xa4] sm:$0xf]
        %v1192 = vld [vmem:[%s879 + $0xa8] sm:$0xff]
        %v1193 = vld [vmem:[%s879 + $0xb0] sm:$0xf]
        %v1194 = vld [vmem:[%s879 + $0xb4] sm:$0xff]
        %v1195 = vld [vmem:[%s879 + $0xbc] sm:$0xf]
        %v1196 = vld [vmem:[%s731] sm:$0x7]
        %v1197 = vpack.c.bf16 %v1159, %v1158
        %v1198 = vpack.c.bf16 %v1161, %v1160
        %v1199 = vpack.c.bf16 %v1163, %v1162
        %v1201 = vlaneseq
        %v1202 = vshrl.u32 %v1201, 7
        %v1203 = vsub.s32 0, %v1202
        %v1204 = vrot.slane %v1196, %v1203
        %v1205 = vlaneseq
        %v1206 = vshrl.u32 %v1205, 7
        %v1207 = vsub.s32 1, %v1206
        %v1208 = vrot.slane %v1196, %v1207
        %v1209 = vlaneseq
        %v1210 = vshrl.u32 %v1209, 7
        %v1211 = vsub.s32 2, %v1210
        %v1212 = vrot.slane %v1196, %v1211
        %v1248 = vunpack.c.l.b16 %v1164
        %v1249 = vunpack.c.h.b16 %v1164
        %v1250 = vunpack.c.l.b16 %v1165
        %v1251 = vunpack.c.l.b16 %v1166
        %v1252 = vunpack.c.h.b16 %v1166
        %v1253 = vunpack.c.l.b16 %v1167
        %v1254 = vunpack.c.l.b16 %v1168
        %v1255 = vunpack.c.h.b16 %v1168
        %v1256 = vunpack.c.l.b16 %v1169
        %v1257 = vunpack.c.l.b16 %v1170
        %v1258 = vunpack.c.h.b16 %v1170
        %v1259 = vunpack.c.l.b16 %v1171
        %v1260 = vunpack.c.l.b16 %v1172
        %v1261 = vunpack.c.h.b16 %v1172
        %v1262 = vunpack.c.l.b16 %v1173
        %v1263 = vunpack.c.l.b16 %v1174
        %v1264 = vunpack.c.h.b16 %v1174
        %v1265 = vunpack.c.l.b16 %v1175
        %v1266 = vunpack.c.l.b16 %v1176
        %v1267 = vunpack.c.h.b16 %v1176
        %v1268 = vunpack.c.l.b16 %v1177
        %v1269 = vunpack.c.l.b16 %v1178
        %v1270 = vunpack.c.h.b16 %v1178
        %v1271 = vunpack.c.l.b16 %v1179
        %v1272 = vunpack.c.l.b16 %v1180
        %v1273 = vunpack.c.h.b16 %v1180
        %v1274 = vunpack.c.l.b16 %v1181
        %v1275 = vunpack.c.l.b16 %v1182
        %v1276 = vunpack.c.h.b16 %v1182
        %v1277 = vunpack.c.l.b16 %v1183
        %v1278 = vunpack.c.l.b16 %v1184
        %v1279 = vunpack.c.h.b16 %v1184
        %v1280 = vunpack.c.l.b16 %v1185
        %v1281 = vunpack.c.l.b16 %v1186
        %v1282 = vunpack.c.h.b16 %v1186
        %v1283 = vunpack.c.l.b16 %v1187
        %v1284 = vunpack.c.l.b16 %v1188
        %v1285 = vunpack.c.h.b16 %v1188
        %v1286 = vunpack.c.l.b16 %v1189
        %v1287 = vunpack.c.l.b16 %v1190
        %v1288 = vunpack.c.h.b16 %v1190
        %v1289 = vunpack.c.l.b16 %v1191
        %v1290 = vunpack.c.l.b16 %v1192
        %v1291 = vunpack.c.h.b16 %v1192
        %v1292 = vunpack.c.l.b16 %v1193
        %v1293 = vunpack.c.l.b16 %v1194
        %v1294 = vunpack.c.h.b16 %v1194
        %v1295 = vunpack.c.l.b16 %v1195
        %v1296 = vpack.c.b16 %v1251, %v1248
        %v1297 = vpack.c.b16 %v1252, %v1249
        %v1298 = vpack.c.b16 %v1253, %v1250
        %v1299 = vpack.c.b16 %v1257, %v1254
        %v1300 = vpack.c.b16 %v1258, %v1255
        %v1301 = vpack.c.b16 %v1259, %v1256
        %v1302 = vpack.c.b16 %v1263, %v1260
        %v1303 = vpack.c.b16 %v1264, %v1261
        %v1304 = vpack.c.b16 %v1265, %v1262
        %v1305 = vpack.c.b16 %v1269, %v1266
        %v1306 = vpack.c.b16 %v1270, %v1267
        %v1307 = vpack.c.b16 %v1271, %v1268
        %v1308 = vpack.c.b16 %v1275, %v1272
        %v1309 = vpack.c.b16 %v1276, %v1273
        %v1310 = vpack.c.b16 %v1277, %v1274
        %v1311 = vpack.c.b16 %v1281, %v1278
        %v1312 = vpack.c.b16 %v1282, %v1279
        %v1313 = vpack.c.b16 %v1283, %v1280
        %v1314 = vpack.c.b16 %v1287, %v1284
        %v1315 = vpack.c.b16 %v1288, %v1285
        %v1316 = vpack.c.b16 %v1289, %v1286
        %v1317 = vpack.c.b16 %v1293, %v1290
        %v1318 = vpack.c.b16 %v1294, %v1291
        %v1319 = vpack.c.b16 %v1295, %v1292
        %1344 = vmatprep.subr.bf16.mxu0 %v1297
        %1345 = vmatpush1.bf16.msra.mxu0 %v1296
        %1346 = vmatprep.subr.bf16.mxu0 %v1300
        %1347 = vmatpush1.bf16.msra.mxu0 %v1299
        %1348 = vmatprep.subr.bf16.mxu0 %v1303
        %1349 = vmatpush1.bf16.msra.mxu0 %v1302
        %1350 = vmatprep.subr.bf16.mxu0 %v1306
        %1351 = vmatpush1.bf16.msra.mxu0 %v1305
        %1352 = vmatprep.subr.bf16.mxu0 %v1309
        %1353 = vmatpush1.bf16.msra.mxu0 %v1308
        %1354 = vmatprep.subr.bf16.mxu0 %v1312
        %1355 = vmatpush1.bf16.msra.mxu0 %v1311
        %1356 = vmatprep.subr.bf16.mxu0 %v1315
        %1357 = vmatpush1.bf16.msra.mxu0 %v1314
        %1358 = vmatprep.subr.bf16.mxu0 %v1318
        %1359 = vmatpush1.bf16.msra.mxu0 %v1317
        %1360 = vmatprep.subr.bf16.mxu0 0
        %1361 = vmatpush1.bf16.msra.mxu0 0
        %1362 = vmatprep.subr.bf16.mxu0 0
        %1363 = vmatpush1.bf16.msra.mxu0 0
        %1364 = vmatprep.subr.bf16.mxu0 0
        %1365 = vmatpush1.bf16.msra.mxu0 0
        %1366 = vmatprep.subr.bf16.mxu0 0
        %1367 = vmatpush1.bf16.msra.mxu0 0
        %1368 = vmatprep.subr.bf16.mxu0 0
        %1369 = vmatpush1.bf16.msra.mxu0 0
        %1370 = vmatprep.subr.bf16.mxu0 0
        %1371 = vmatpush1.bf16.msra.mxu0 0
        %1372 = vmatprep.subr.bf16.mxu0 0
        %1373 = vmatpush1.bf16.msra.mxu0 0
        %1374 = vmatprep.subr.bf16.mxu0 0
        %1375 = vmatpush1.bf16.msra.mxu0 0
        %1376 = vmatprep.mubr.bf16.mxu0 0
        %1377 = vmatmul.mubr.bf16.gmra.mrb[0].mxu0 %v1197
        %v1378 = vpop.f32.mrb[0].mxu0
        %v1379 = vadd.f32 %v1204, %v1378
        %v1380 = vpop.f32.mrb[0].mxu0
        %v1381 = vadd.f32 %v1208, %v1380
        %v1382 = vpop.f32.mrb[0].mxu0
        %v1383 = vadd.f32 %v1204, %v1382
        %v1384 = vpop.f32.mrb[0].mxu0
        %v1385 = vadd.f32 %v1208, %v1384
        %1386 = vmatprep.mubr.bf16.mxu0 0
        %1387 = vmatmul.mubr.bf16.gmra.mrb[0].mxu0 %v1198
        %v1388 = vpop.f32.mrb[0].mxu0
        %v1389 = vadd.f32 %v1204, %v1388
        %v1390 = vpop.f32.mrb[0].mxu0
        %v1391 = vadd.f32 %v1208, %v1390
        %v1392 = vpop.f32.mrb[0].mxu0
        %v1393 = vadd.f32 %v1204, %v1392
        %v1394 = vpop.f32.mrb[0].mxu0
        %v1395 = vadd.f32 %v1208, %v1394
        %1396 = vmatprep.mubr.bf16.mxu0 0
        %1397 = vmatmul.mubr.bf16.gmra.mrb[0].mxu0 %v1199
        %v1398 = vpop.f32.mrb[0].mxu0
        %v1399 = vadd.f32 %v1204, %v1398
        %v1400 = vpop.f32.mrb[0].mxu0
        %v1401 = vadd.f32 %v1208, %v1400
        %v1402 = vpop.f32.mrb[0].mxu0
        %v1403 = vadd.f32 %v1204, %v1402
        %v1404 = vpop.f32.mrb[0].mxu0
        %v1405 = vadd.f32 %v1208, %v1404
        %1406 = vdwg.mxu0
        %1407 = vmatprep.subr.bf16.mxu0 0
        %1408 = vmatpush1.bf16.msra.mxu0 %v1298
        %1409 = vmatprep.subr.bf16.mxu0 0
        %1410 = vmatpush1.bf16.msra.mxu0 %v1301
        %1411 = vmatprep.subr.bf16.mxu0 0
        %1412 = vmatpush1.bf16.msra.mxu0 %v1304
        %1413 = vmatprep.subr.bf16.mxu0 0
        %1414 = vmatpush1.bf16.msra.mxu0 %v1307
        %1415 = vmatprep.subr.bf16.mxu0 0
        %1416 = vmatpush1.bf16.msra.mxu0 %v1310
        %1417 = vmatprep.subr.bf16.mxu0 0
        %1418 = vmatpush1.bf16.msra.mxu0 %v1313
        %1419 = vmatprep.subr.bf16.mxu0 0
        %1420 = vmatpush1.bf16.msra.mxu0 %v1316
        %1421 = vmatprep.subr.bf16.mxu0 0
        %1422 = vmatpush1.bf16.msra.mxu0 %v1319
        %1423 = vmatprep.subr.bf16.mxu0 0
        %1424 = vmatpush1.bf16.msra.mxu0 0
        %1425 = vmatprep.subr.bf16.mxu0 0
        %1426 = vmatpush1.bf16.msra.mxu0 0
        %1427 = vmatprep.subr.bf16.mxu0 0
        %1428 = vmatpush1.bf16.msra.mxu0 0
        %1429 = vmatprep.subr.bf16.mxu0 0
        %1430 = vmatpush1.bf16.msra.mxu0 0
        %1431 = vmatprep.subr.bf16.mxu0 0
        %1432 = vmatpush1.bf16.msra.mxu0 0
        %1433 = vmatprep.subr.bf16.mxu0 0
        %1434 = vmatpush1.bf16.msra.mxu0 0
        %1435 = vmatprep.subr.bf16.mxu0 0
        %1436 = vmatpush1.bf16.msra.mxu0 0
        %1437 = vmatprep.subr.bf16.mxu0 0
        %1438 = vmatpush1.bf16.msra.mxu0 0
        %1439 = vmatprep.mubr.bf16.mxu0 0
        %1440 = vmatmul.mubr.bf16.gmra.mrb[0].mxu0 %v1197
        %v1441 = vpop.f32.mrb[0].mxu0
        %v1442 = vadd.f32 %v1212, %v1441
        %v1443 = vpop.f32.mrb[0].mxu0
        %v1444 = vpop.f32.mrb[0].mxu0
        %v1445 = vadd.f32 %v1212, %v1444
        %v1446 = vpop.f32.mrb[0].mxu0
        %1447 = vmatprep.mubr.bf16.mxu0 0
        %1448 = vmatmul.mubr.bf16.gmra.mrb[0].mxu0 %v1198
        %v1449 = vpop.f32.mrb[0].mxu0
        %v1450 = vadd.f32 %v1212, %v1449
        %v1451 = vpop.f32.mrb[0].mxu0
        %v1452 = vpop.f32.mrb[0].mxu0
        %v1453 = vadd.f32 %v1212, %v1452
        %v1454 = vpop.f32.mrb[0].mxu0
        %1455 = vmatprep.mubr.bf16.mxu0 0
        %1456 = vmatmul.mubr.bf16.gmra.mrb[0].mxu0 %v1199
        %v1457 = vpop.f32.mrb[0].mxu0
        %v1458 = vadd.f32 %v1212, %v1457
        %v1459 = vpop.f32.mrb[0].mxu0
        %v1460 = vpop.f32.mrb[0].mxu0
        %v1461 = vadd.f32 %v1212, %v1460
        %v1462 = vpop.f32.mrb[0].mxu0
        %1463 = vdwg.mxu0
        %v1464 = vlaneseq
        %v1465 = vand.u32 %v1464, 127
        %vm1466 = vcmp.lt.s32.totalorder %v1465, 17
        %v1467 = vpack.c.bf16 %v1383, %v1379
        %v1468 = vpack.c.bf16 %v1389, %v1389
        %v1469 = vpack.c.bf16 %v1385, %v1381
        %v1470 = vpack.c.bf16 %v1391, %v1391
        %v1471 = vpack.c.bf16 %v1445, %v1442
        %v1472 = vpack.c.bf16 %v1450, %v1450
        %vm1473 = vcmask 261120
        %v1475 = vsel %vm1473, %v1467, 0
        %v1478 = vsel %vm1473, %v1468, 0
        %v1481 = vsel %vm1473, %v1469, 0
        %v1484 = vsel %vm1473, %v1470, 0
        %1486 = vmatprep.subr.bf16.mxu0 0
        %1487 = vmatpush1.bf16.xpose.msra.mxu0 %v1481
        %1488 = vmatprep.subr.bf16.mxu0 0
        %1489 = vmatpush1.bf16.xpose.msra.mxu0 %v1484
        %1490 = vmatprep.subr.bf16.mxu0 0
        %1491 = vmatpush1.bf16.xpose.msra.mxu0 0
        %1492 = vmatprep.subr.bf16.mxu0 0
        %1493 = vmatpush1.bf16.xpose.msra.mxu0 0
        %1494 = vmatprep.subr.bf16.mxu0 0
        %1495 = vmatpush1.bf16.xpose.msra.mxu0 0
        %1496 = vmatprep.subr.bf16.mxu0 0
        %1497 = vmatpush1.bf16.xpose.msra.mxu0 0
        %1498 = vmatprep.subr.bf16.mxu0 0
        %1499 = vmatpush1.bf16.xpose.msra.mxu0 0
        %1500 = vmatprep.subr.bf16.mxu0 0
        %1501 = vmatpush1.bf16.xpose.msra.mxu0 0
        %1502 = vmatprep.subr.bf16.mxu0 0
        %1503 = vmatpush1.bf16.xpose.msra.mxu0 0
        %1504 = vmatprep.subr.bf16.mxu0 0
        %1505 = vmatpush1.bf16.xpose.msra.mxu0 0
        %1506 = vmatprep.subr.bf16.mxu0 0
        %1507 = vmatpush1.bf16.xpose.msra.mxu0 0
        %1508 = vmatprep.subr.bf16.mxu0 0
        %1509 = vmatpush1.bf16.xpose.msra.mxu0 0
        %1510 = vmatprep.subr.bf16.mxu0 0
        %1511 = vmatpush1.bf16.xpose.msra.mxu0 0
        %1512 = vmatprep.subr.bf16.mxu0 0
        %1513 = vmatpush1.bf16.xpose.msra.mxu0 0
        %1514 = vmatprep.subr.bf16.mxu0 0
        %1515 = vmatpush1.bf16.xpose.msra.mxu0 0
        %1516 = vmatprep.subr.bf16.mxu0 0
        %1517 = vmatpush1.bf16.xpose.msra.mxu0 0
        %1518 = vmatprep.mubr.bf16.mxu0 0
        %1519 = vmatmul.mubr.bf16.gmra.mrb[0].mxu0 %v1475
        %v1520 = vpop.f32.mrb[0].mxu0
        %v1521 = vadd.f32 0.0, %v1520
        %v1522 = vpop.f32.mrb[0].mxu0
        %v1523 = vpop.f32.mrb[0].mxu0
        %v1524 = vadd.f32 0.0, %v1523
        %v1525 = vpop.f32.mrb[0].mxu0
        %1526 = vmatprep.mubr.bf16.mxu0 0
        %1527 = vmatmul.mubr.bf16.gmra.mrb[0].mxu0 %v1478
        %v1528 = vpop.f32.mrb[0].mxu0
        %v1529 = vadd.f32 0.0, %v1528
        %v1530 = vpop.f32.mrb[0].mxu0
        %v1531 = vpop.f32.mrb[0].mxu0
        %v1532 = vpop.f32.mrb[0].mxu0
        %1533 = vdwg.mxu0
        %v1534 = vsel %vm1466, %v1521, -1e+30
        %v1535 = vsel %vm1466, %v1524, -1e+30
        %v1536 = vsel %vm1466, %v1529, -1e+30
        %vm1537 = vcmask 195584
        %v1538 = vsel %vm1537, %v1534, -inf
        %1539 = vmax.xlane.f32.xlu0 %v1538
        %v1540 = vpop.xlane.xlu0 %1539
        %v1541 = vsel %vm1537, %v1535, -inf
        %1542 = vmax.xlane.f32.xlu0 %v1541
        %v1543 = vpop.xlane.xlu0 %1542
        %v1544 = vsel %vm1537, %v1536, -inf
        %1545 = vmax.xlane.f32.xlu0 %v1544
        %v1546 = vpop.xlane.xlu0 %1545
        %v1547 = vsub.f32 %v1534, %v1540
        %v1548 = vsub.f32 %v1535, %v1543
        %v1549 = vsub.f32 %v1536, %v1546
        %v1550 = vmul.f32 %v1547, 1.442695
        %v1551 = vpow.pop %v1550
        %v1552 = vmul.f32 %v1548, 1.442695
        %v1553 = vpow.pop %v1552
        %v1554 = vmul.f32 %v1549, 1.442695
        %v1555 = vpow.pop %v1554
        %v1556 = vsel %vm1537, %v1551, 0.0
        %1557 = vadd.xlane.f32.xlu0 %v1556
        %v1558 = vpop.xlane.xlu0 %1557
        %v1559 = vsel %vm1537, %v1553, 0.0
        %1560 = vadd.xlane.f32.xlu0 %v1559
        %v1561 = vpop.xlane.xlu0 %1560
        %v1562 = vsel %vm1537, %v1555, 0.0
        %1563 = vadd.xlane.f32.xlu0 %v1562
        %v1564 = vpop.xlane.xlu0 %1563
        %v1565 = vrcp.pop %v1558
        %v1566 = vrcp.pop %v1561
        %v1567 = vrcp.pop %v1564
        %v1568 = vmul.f32 %v1551, %v1565
        %v1569 = vmul.f32 %v1553, %v1566
        %v1570 = vmul.f32 %v1555, %v1567
        %v1571 = vpack.c.bf16 %v1569, %v1568
        %v1572 = vpack.c.bf16 %v1570, %v1570
        %v1574 = vsel %vm1537, %v1571, 0
        %v1577 = vsel %vm1537, %v1572, 0
        %vm1579 = vcmask 1043456
        %v1581 = vsel %vm1579, %v1472, 0
        %1583 = vmatprep.subr.bf16.mxu0 0
        %1584 = vmatpush1.bf16.msra.mxu0 %v1471
        %1585 = vmatprep.subr.bf16.mxu0 0
        %1586 = vmatpush1.bf16.msra.mxu0 %v1581
        %1587 = vmatprep.subr.bf16.mxu0 0
        %1588 = vmatpush1.bf16.msra.mxu0 0
        %1589 = vmatprep.subr.bf16.mxu0 0
        %1590 = vmatpush1.bf16.msra.mxu0 0
        %1591 = vmatprep.subr.bf16.mxu0 0
        %1592 = vmatpush1.bf16.msra.mxu0 0
        %1593 = vmatprep.subr.bf16.mxu0 0
        %1594 = vmatpush1.bf16.msra.mxu0 0
        %1595 = vmatprep.subr.bf16.mxu0 0
        %1596 = vmatpush1.bf16.msra.mxu0 0
        %1597 = vmatprep.subr.bf16.mxu0 0
        %1598 = vmatpush1.bf16.msra.mxu0 0
        %1599 = vmatprep.subr.bf16.mxu0 0
        %1600 = vmatpush1.bf16.msra.mxu0 0
        %1601 = vmatprep.subr.bf16.mxu0 0
        %1602 = vmatpush1.bf16.msra.mxu0 0
        %1603 = vmatprep.subr.bf16.mxu0 0
        %1604 = vmatpush1.bf16.msra.mxu0 0
        %1605 = vmatprep.subr.bf16.mxu0 0
        %1606 = vmatpush1.bf16.msra.mxu0 0
        %1607 = vmatprep.subr.bf16.mxu0 0
        %1608 = vmatpush1.bf16.msra.mxu0 0
        %1609 = vmatprep.subr.bf16.mxu0 0
        %1610 = vmatpush1.bf16.msra.mxu0 0
        %1611 = vmatprep.subr.bf16.mxu0 0
        %1612 = vmatpush1.bf16.msra.mxu0 0
        %1613 = vmatprep.subr.bf16.mxu0 0
        %1614 = vmatpush1.bf16.msra.mxu0 0
        %1615 = vmatprep.mubr.bf16.mxu0 0
        %1616 = vmatmul.mubr.bf16.gmra.mrb[0].mxu0 %v1574
        %v1617 = vpop.f32.mrb[0].mxu0
        %v1618 = vadd.f32 0.0, %v1617
        %v1619 = vpop.f32.mrb[0].mxu0
        %v1620 = vpop.f32.mrb[0].mxu0
        %v1621 = vadd.f32 0.0, %v1620
        %v1622 = vpop.f32.mrb[0].mxu0
        %1623 = vmatprep.mubr.bf16.mxu0 0
        %1624 = vmatmul.mubr.bf16.gmra.mrb[0].mxu0 %v1577
        %v1625 = vpop.f32.mrb[0].mxu0
        %v1626 = vadd.f32 0.0, %v1625
        %v1627 = vpop.f32.mrb[0].mxu0
        %v1628 = vpop.f32.mrb[0].mxu0
        %v1629 = vpop.f32.mrb[0].mxu0
        %1630 = vdwg.mxu0
        %1631 = vst.msk [vmem:[#allocation3] sm:$0xff] %vm1473, %v1618
        %1632 = vst.msk [vmem:[#allocation3 + $0x8] sm:$0xff] %vm1473, %v1621
        %1633 = vst.msk [vmem:[#allocation3 + $0x10] sm:$0xff] %vm1473, %v1626
        %1636 = vrot.lane.b32.xlu0 %v1467, 96
        %v1637 = vpop.permute.xlu0 %1636
        %1638 = vrot.lane.b32.xlu0 %v1468, 96
        %v1639 = vpop.permute.xlu0 %1638
        %1642 = vrot.lane.b32.xlu0 %v1469, 96
        %v1643 = vpop.permute.xlu0 %1642
        %1644 = vrot.lane.b32.xlu0 %v1470, 96
        %v1645 = vpop.permute.xlu0 %1644
        %v1647 = vsel %vm1473, %v1637, 0
        %v1650 = vsel %vm1473, %v1639, 0
        %v1653 = vsel %vm1473, %v1643, 0
        %v1656 = vsel %vm1473, %v1645, 0
        %1658 = vmatprep.subr.bf16.mxu0 0
        %1659 = vmatpush1.bf16.xpose.msra.mxu0 %v1653
        %1660 = vmatprep.subr.bf16.mxu0 0
        %1661 = vmatpush1.bf16.xpose.msra.mxu0 %v1656
        %1662 = vmatprep.subr.bf16.mxu0 0
        %1663 = vmatpush1.bf16.xpose.msra.mxu0 0
        %1664 = vmatprep.subr.bf16.mxu0 0
        %1665 = vmatpush1.bf16.xpose.msra.mxu0 0
        %1666 = vmatprep.subr.bf16.mxu0 0
        %1667 = vmatpush1.bf16.xpose.msra.mxu0 0
        %1668 = vmatprep.subr.bf16.mxu0 0
        %1669 = vmatpush1.bf16.xpose.msra.mxu0 0
        %1670 = vmatprep.subr.bf16.mxu0 0
        %1671 = vmatpush1.bf16.xpose.msra.mxu0 0
        %1672 = vmatprep.subr.bf16.mxu0 0
        %1673 = vmatpush1.bf16.xpose.msra.mxu0 0
        %1674 = vmatprep.subr.bf16.mxu0 0
        %1675 = vmatpush1.bf16.xpose.msra.mxu0 0
        %1676 = vmatprep.subr.bf16.mxu0 0
        %1677 = vmatpush1.bf16.xpose.msra.mxu0 0
        %1678 = vmatprep.subr.bf16.mxu0 0
        %1679 = vmatpush1.bf16.xpose.msra.mxu0 0
        %1680 = vmatprep.subr.bf16.mxu0 0
        %1681 = vmatpush1.bf16.xpose.msra.mxu0 0
        %1682 = vmatprep.subr.bf16.mxu0 0
        %1683 = vmatpush1.bf16.xpose.msra.mxu0 0
        %1684 = vmatprep.subr.bf16.mxu0 0
        %1685 = vmatpush1.bf16.xpose.msra.mxu0 0
        %1686 = vmatprep.subr.bf16.mxu0 0
        %1687 = vmatpush1.bf16.xpose.msra.mxu0 0
        %1688 = vmatprep.subr.bf16.mxu0 0
        %1689 = vmatpush1.bf16.xpose.msra.mxu0 0
        %1690 = vmatprep.mubr.bf16.mxu0 0
        %1691 = vmatmul.mubr.bf16.gmra.mrb[0].mxu0 %v1647
        %v1692 = vpop.f32.mrb[0].mxu0
        %v1693 = vadd.f32 0.0, %v1692
        %v1694 = vpop.f32.mrb[0].mxu0
        %v1695 = vpop.f32.mrb[0].mxu0
        %v1696 = vadd.f32 0.0, %v1695
        %v1697 = vpop.f32.mrb[0].mxu0
        %1698 = vmatprep.mubr.bf16.mxu0 0
        %1699 = vmatmul.mubr.bf16.gmra.mrb[0].mxu0 %v1650
        %v1700 = vpop.f32.mrb[0].mxu0
        %v1701 = vadd.f32 0.0, %v1700
        %v1702 = vpop.f32.mrb[0].mxu0
        %v1703 = vpop.f32.mrb[0].mxu0
        %v1704 = vpop.f32.mrb[0].mxu0
        %1705 = vdwg.mxu0
        %v1706 = vsel %vm1466, %v1693, -1e+30
        %v1707 = vsel %vm1466, %v1696, -1e+30
        %v1708 = vsel %vm1466, %v1701, -1e+30
        %v1709 = vsel %vm1537, %v1706, -inf
        %1710 = vmax.xlane.f32.xlu0 %v1709
        %v1711 = vpop.xlane.xlu0 %1710
        %v1712 = vsel %vm1537, %v1707, -inf
        %1713 = vmax.xlane.f32.xlu0 %v1712
        %v1714 = vpop.xlane.xlu0 %1713
        %v1715 = vsel %vm1537, %v1708, -inf
        %1716 = vmax.xlane.f32.xlu0 %v1715
        %v1717 = vpop.xlane.xlu0 %1716
        %v1718 = vsub.f32 %v1706, %v1711
        %v1719 = vsub.f32 %v1707, %v1714
        %v1720 = vsub.f32 %v1708, %v1717
        %v1721 = vmul.f32 %v1718, 1.442695
        %v1722 = vpow.pop %v1721
        %v1723 = vmul.f32 %v1719, 1.442695
        %v1724 = vpow.pop %v1723
        %v1725 = vmul.f32 %v1720, 1.442695
        %v1726 = vpow.pop %v1725
        %v1727 = vsel %vm1537, %v1722, 0.0
        %1728 = vadd.xlane.f32.xlu0 %v1727
        %v1729 = vpop.xlane.xlu0 %1728
        %v1730 = vsel %vm1537, %v1724, 0.0
        %1731 = vadd.xlane.f32.xlu0 %v1730
        %v1732 = vpop.xlane.xlu0 %1731
        %v1733 = vsel %vm1537, %v1726, 0.0
        %1734 = vadd.xlane.f32.xlu0 %v1733
        %v1735 = vpop.xlane.xlu0 %1734
        %v1736 = vrcp.pop %v1729
        %v1737 = vrcp.pop %v1732
        %v1738 = vrcp.pop %v1735
        %v1739 = vmul.f32 %v1722, %v1736
        %v1740 = vmul.f32 %v1724, %v1737
        %v1741 = vmul.f32 %v1726, %v1738
        %v1742 = vpack.c.bf16 %v1740, %v1739
        %v1743 = vpack.c.bf16 %v1741, %v1741
        %1746 = vrot.lane.b32.xlu0 %v1471, 96
        %v1747 = vpop.permute.xlu0 %1746
        %1748 = vrot.lane.b32.xlu0 %v1472, 96
        %v1749 = vpop.permute.xlu0 %1748
        %v1752 = vsel %vm1537, %v1742, 0
        %v1755 = vsel %vm1537, %v1743, 0
        %v1758 = vsel %vm1579, %v1749, 0
        %1760 = vmatprep.subr.bf16.mxu0 0
        %1761 = vmatpush1.bf16.msra.mxu0 %v1747
        %1762 = vmatprep.subr.bf16.mxu0 0
        %1763 = vmatpush1.bf16.msra.mxu0 %v1758
        %1764 = vmatprep.subr.bf16.mxu0 0
        %1765 = vmatpush1.bf16.msra.mxu0 0
        %1766 = vmatprep.subr.bf16.mxu0 0
        %1767 = vmatpush1.bf16.msra.mxu0 0
        %1768 = vmatprep.subr.bf16.mxu0 0
        %1769 = vmatpush1.bf16.msra.mxu0 0
        %1770 = vmatprep.subr.bf16.mxu0 0
        %1771 = vmatpush1.bf16.msra.mxu0 0
        %1772 = vmatprep.subr.bf16.mxu0 0
        %1773 = vmatpush1.bf16.msra.mxu0 0
        %1774 = vmatprep.subr.bf16.mxu0 0
        %1775 = vmatpush1.bf16.msra.mxu0 0
        %1776 = vmatprep.subr.bf16.mxu0 0
        %1777 = vmatpush1.bf16.msra.mxu0 0
        %1778 = vmatprep.subr.bf16.mxu0 0
        %1779 = vmatpush1.bf16.msra.mxu0 0
        %1780 = vmatprep.subr.bf16.mxu0 0
        %1781 = vmatpush1.bf16.msra.mxu0 0
        %1782 = vmatprep.subr.bf16.mxu0 0
        %1783 = vmatpush1.bf16.msra.mxu0 0
        %1784 = vmatprep.subr.bf16.mxu0 0
        %1785 = vmatpush1.bf16.msra.mxu0 0
        %1786 = vmatprep.subr.bf16.mxu0 0
        %1787 = vmatpush1.bf16.msra.mxu0 0
        %1788 = vmatprep.subr.bf16.mxu0 0
        %1789 = vmatpush1.bf16.msra.mxu0 0
        %1790 = vmatprep.subr.bf16.mxu0 0
        %1791 = vmatpush1.bf16.msra.mxu0 0
        %1792 = vmatprep.mubr.bf16.mxu0 0
        %1793 = vmatmul.mubr.bf16.gmra.mrb[0].mxu0 %v1752
        %v1794 = vpop.f32.mrb[0].mxu0
        %v1795 = vadd.f32 0.0, %v1794
        %v1796 = vpop.f32.mrb[0].mxu0
        %v1797 = vpop.f32.mrb[0].mxu0
        %v1798 = vadd.f32 0.0, %v1797
        %v1799 = vpop.f32.mrb[0].mxu0
        %1800 = vmatprep.mubr.bf16.mxu0 0
        %1801 = vmatmul.mubr.bf16.gmra.mrb[0].mxu0 %v1755
        %v1802 = vpop.f32.mrb[0].mxu0
        %v1803 = vadd.f32 0.0, %v1802
        %v1804 = vpop.f32.mrb[0].mxu0
        %v1805 = vpop.f32.mrb[0].mxu0
        %v1806 = vpop.f32.mrb[0].mxu0
        %1807 = vdwg.mxu0
        %1811 = vrot.lane.b32.xlu0 %v1795, 32
        %v1812 = vpop.permute.xlu0 %1811
        %1813 = vrot.lane.b32.xlu0 %v1798, 32
        %v1814 = vpop.permute.xlu0 %1813
        %1815 = vrot.lane.b32.xlu0 %v1803, 32
        %v1816 = vpop.permute.xlu0 %1815
        %vm1820 = vcmask 523520
        %1821 = vst.msk [vmem:[#allocation3] sm:$0xff] %vm1820, %v1812
        %1822 = vst.msk [vmem:[#allocation3 + $0x8] sm:$0xff] %vm1820, %v1814
        %1823 = vst.msk [vmem:[#allocation3 + $0x10] sm:$0xff] %vm1820, %v1816
        %1824 = vrot.lane.b32.xlu0 %v1467, 64
        %v1825 = vpop.permute.xlu0 %1824
        %1826 = vrot.lane.b32.xlu0 %v1468, 64
        %v1827 = vpop.permute.xlu0 %1826
        %1828 = vrot.lane.b32.xlu0 %v1469, 64
        %v1829 = vpop.permute.xlu0 %1828
        %1830 = vrot.lane.b32.xlu0 %v1470, 64
        %v1831 = vpop.permute.xlu0 %1830
        %v1833 = vsel %vm1473, %v1825, 0
        %v1836 = vsel %vm1473, %v1827, 0
        %v1839 = vsel %vm1473, %v1829, 0
        %v1842 = vsel %vm1473, %v1831, 0
        %1844 = vmatprep.subr.bf16.mxu0 0
        %1845 = vmatpush1.bf16.xpose.msra.mxu0 %v1839
        %1846 = vmatprep.subr.bf16.mxu0 0
        %1847 = vmatpush1.bf16.xpose.msra.mxu0 %v1842
        %1848 = vmatprep.subr.bf16.mxu0 0
        %1849 = vmatpush1.bf16.xpose.msra.mxu0 0
        %1850 = vmatprep.subr.bf16.mxu0 0
        %1851 = vmatpush1.bf16.xpose.msra.mxu0 0
        %1852 = vmatprep.subr.bf16.mxu0 0
        %1853 = vmatpush1.bf16.xpose.msra.mxu0 0
        %1854 = vmatprep.subr.bf16.mxu0 0
        %1855 = vmatpush1.bf16.xpose.msra.mxu0 0
        %1856 = vmatprep.subr.bf16.mxu0 0
        %1857 = vmatpush1.bf16.xpose.msra.mxu0 0
        %1858 = vmatprep.subr.bf16.mxu0 0
        %1859 = vmatpush1.bf16.xpose.msra.mxu0 0
        %1860 = vmatprep.subr.bf16.mxu0 0
        %1861 = vmatpush1.bf16.xpose.msra.mxu0 0
        %1862 = vmatprep.subr.bf16.mxu0 0
        %1863 = vmatpush1.bf16.xpose.msra.mxu0 0
        %1864 = vmatprep.subr.bf16.mxu0 0
        %1865 = vmatpush1.bf16.xpose.msra.mxu0 0
        %1866 = vmatprep.subr.bf16.mxu0 0
        %1867 = vmatpush1.bf16.xpose.msra.mxu0 0
        %1868 = vmatprep.subr.bf16.mxu0 0
        %1869 = vmatpush1.bf16.xpose.msra.mxu0 0
        %1870 = vmatprep.subr.bf16.mxu0 0
        %1871 = vmatpush1.bf16.xpose.msra.mxu0 0
        %1872 = vmatprep.subr.bf16.mxu0 0
        %1873 = vmatpush1.bf16.xpose.msra.mxu0 0
        %1874 = vmatprep.subr.bf16.mxu0 0
        %1875 = vmatpush1.bf16.xpose.msra.mxu0 0
        %1876 = vmatprep.mubr.bf16.mxu0 0
        %1877 = vmatmul.mubr.bf16.gmra.mrb[0].mxu0 %v1833
        %v1878 = vpop.f32.mrb[0].mxu0
        %v1879 = vadd.f32 0.0, %v1878
        %v1880 = vpop.f32.mrb[0].mxu0
        %v1881 = vpop.f32.mrb[0].mxu0
        %v1882 = vadd.f32 0.0, %v1881
        %v1883 = vpop.f32.mrb[0].mxu0
        %1884 = vmatprep.mubr.bf16.mxu0 0
        %1885 = vmatmul.mubr.bf16.gmra.mrb[0].mxu0 %v1836
        %v1886 = vpop.f32.mrb[0].mxu0
        %v1887 = vadd.f32 0.0, %v1886
        %v1888 = vpop.f32.mrb[0].mxu0
        %v1889 = vpop.f32.mrb[0].mxu0
        %v1890 = vpop.f32.mrb[0].mxu0
        %1891 = vdwg.mxu0
        %v1892 = vsel %vm1466, %v1879, -1e+30
        %v1893 = vsel %vm1466, %v1882, -1e+30
        %v1894 = vsel %vm1466, %v1887, -1e+30
        %v1895 = vsel %vm1537, %v1892, -inf
        %1896 = vmax.xlane.f32.xlu0 %v1895
        %v1897 = vpop.xlane.xlu0 %1896
        %v1898 = vsel %vm1537, %v1893, -inf
        %1899 = vmax.xlane.f32.xlu0 %v1898
        %v1900 = vpop.xlane.xlu0 %1899
        %v1901 = vsel %vm1537, %v1894, -inf
        %1902 = vmax.xlane.f32.xlu0 %v1901
        %v1903 = vpop.xlane.xlu0 %1902
        %v1904 = vsub.f32 %v1892, %v1897
        %v1905 = vsub.f32 %v1893, %v1900
        %v1906 = vsub.f32 %v1894, %v1903
        %v1907 = vmul.f32 %v1904, 1.442695
        %v1908 = vpow.pop %v1907
        %v1909 = vmul.f32 %v1905, 1.442695
        %v1910 = vpow.pop %v1909
        %v1911 = vmul.f32 %v1906, 1.442695
        %v1912 = vpow.pop %v1911
        %v1913 = vsel %vm1537, %v1908, 0.0
        %1914 = vadd.xlane.f32.xlu0 %v1913
        %v1915 = vpop.xlane.xlu0 %1914
        %v1916 = vsel %vm1537, %v1910, 0.0
        %1917 = vadd.xlane.f32.xlu0 %v1916
        %v1918 = vpop.xlane.xlu0 %1917
        %v1919 = vsel %vm1537, %v1912, 0.0
        %1920 = vadd.xlane.f32.xlu0 %v1919
        %v1921 = vpop.xlane.xlu0 %1920
        %v1922 = vrcp.pop %v1915
        %v1923 = vrcp.pop %v1918
        %v1924 = vrcp.pop %v1921
        %v1925 = vmul.f32 %v1908, %v1922
        %v1926 = vmul.f32 %v1910, %v1923
        %v1927 = vmul.f32 %v1912, %v1924
        %v1928 = vpack.c.bf16 %v1926, %v1925
        %v1929 = vpack.c.bf16 %v1927, %v1927
        %1930 = vrot.lane.b32.xlu0 %v1471, 64
        %v1931 = vpop.permute.xlu0 %1930
        %1932 = vrot.lane.b32.xlu0 %v1472, 64
        %v1933 = vpop.permute.xlu0 %1932
        %v1936 = vsel %vm1537, %v1928, 0
        %v1939 = vsel %vm1537, %v1929, 0
        %v1942 = vsel %vm1579, %v1933, 0
        %1944 = vmatprep.subr.bf16.mxu0 0
        %1945 = vmatpush1.bf16.msra.mxu0 %v1931
        %1946 = vmatprep.subr.bf16.mxu0 0
        %1947 = vmatpush1.bf16.msra.mxu0 %v1942
        %1948 = vmatprep.subr.bf16.mxu0 0
        %1949 = vmatpush1.bf16.msra.mxu0 0
        %1950 = vmatprep.subr.bf16.mxu0 0
        %1951 = vmatpush1.bf16.msra.mxu0 0
        %1952 = vmatprep.subr.bf16.mxu0 0
        %1953 = vmatpush1.bf16.msra.mxu0 0
        %1954 = vmatprep.subr.bf16.mxu0 0
        %1955 = vmatpush1.bf16.msra.mxu0 0
        %1956 = vmatprep.subr.bf16.mxu0 0
        %1957 = vmatpush1.bf16.msra.mxu0 0
        %1958 = vmatprep.subr.bf16.mxu0 0
        %1959 = vmatpush1.bf16.msra.mxu0 0
        %1960 = vmatprep.subr.bf16.mxu0 0
        %1961 = vmatpush1.bf16.msra.mxu0 0
        %1962 = vmatprep.subr.bf16.mxu0 0
        %1963 = vmatpush1.bf16.msra.mxu0 0
        %1964 = vmatprep.subr.bf16.mxu0 0
        %1965 = vmatpush1.bf16.msra.mxu0 0
        %1966 = vmatprep.subr.bf16.mxu0 0
        %1967 = vmatpush1.bf16.msra.mxu0 0
        %1968 = vmatprep.subr.bf16.mxu0 0
        %1969 = vmatpush1.bf16.msra.mxu0 0
        %1970 = vmatprep.subr.bf16.mxu0 0
        %1971 = vmatpush1.bf16.msra.mxu0 0
        %1972 = vmatprep.subr.bf16.mxu0 0
        %1973 = vmatpush1.bf16.msra.mxu0 0
        %1974 = vmatprep.subr.bf16.mxu0 0
        %1975 = vmatpush1.bf16.msra.mxu0 0
        %1976 = vmatprep.mubr.bf16.mxu0 0
        %1977 = vmatmul.mubr.bf16.gmra.mrb[0].mxu0 %v1936
        %v1978 = vpop.f32.mrb[0].mxu0
        %v1979 = vadd.f32 0.0, %v1978
        %v1980 = vpop.f32.mrb[0].mxu0
        %v1981 = vpop.f32.mrb[0].mxu0
        %v1982 = vadd.f32 0.0, %v1981
        %v1983 = vpop.f32.mrb[0].mxu0
        %1984 = vmatprep.mubr.bf16.mxu0 0
        %1985 = vmatmul.mubr.bf16.gmra.mrb[0].mxu0 %v1939
        %v1986 = vpop.f32.mrb[0].mxu0
        %v1987 = vadd.f32 0.0, %v1986
        %v1988 = vpop.f32.mrb[0].mxu0
        %v1989 = vpop.f32.mrb[0].mxu0
        %v1990 = vpop.f32.mrb[0].mxu0
        %1991 = vdwg.mxu0
        %1995 = vrot.lane.b32.xlu0 %v1979, 64
        %v1996 = vpop.permute.xlu0 %1995
        %1997 = vrot.lane.b32.xlu0 %v1982, 64
        %v1998 = vpop.permute.xlu0 %1997
        %1999 = vrot.lane.b32.xlu0 %v1987, 64
        %v2000 = vpop.permute.xlu0 %1999
        %vm2004 = vcmask 785920
        %2005 = vst.msk [vmem:[#allocation3] sm:$0xff] %vm2004, %v1996
        %2006 = vst.msk [vmem:[#allocation3 + $0x8] sm:$0xff] %vm2004, %v1998
        %2007 = vst.msk [vmem:[#allocation3 + $0x10] sm:$0xff] %vm2004, %v2000
        %2008 = vrot.lane.b32.xlu0 %v1467, 32
        %v2009 = vpop.permute.xlu0 %2008
        %2010 = vrot.lane.b32.xlu0 %v1468, 32
        %v2011 = vpop.permute.xlu0 %2010
        %2012 = vrot.lane.b32.xlu0 %v1469, 32
        %v2013 = vpop.permute.xlu0 %2012
        %2014 = vrot.lane.b32.xlu0 %v1470, 32
        %v2015 = vpop.permute.xlu0 %2014
        %v2017 = vsel %vm1473, %v2009, 0
        %v2020 = vsel %vm1473, %v2011, 0
        %v2023 = vsel %vm1473, %v2013, 0
        %v2026 = vsel %vm1473, %v2015, 0
        %2028 = vmatprep.subr.bf16.mxu0 0
        %2029 = vmatpush1.bf16.xpose.msra.mxu0 %v2023
        %2030 = vmatprep.subr.bf16.mxu0 0
        %2031 = vmatpush1.bf16.xpose.msra.mxu0 %v2026
        %2032 = vmatprep.subr.bf16.mxu0 0
        %2033 = vmatpush1.bf16.xpose.msra.mxu0 0
        %2034 = vmatprep.subr.bf16.mxu0 0
        %2035 = vmatpush1.bf16.xpose.msra.mxu0 0
        %2036 = vmatprep.subr.bf16.mxu0 0
        %2037 = vmatpush1.bf16.xpose.msra.mxu0 0
        %2038 = vmatprep.subr.bf16.mxu0 0
        %2039 = vmatpush1.bf16.xpose.msra.mxu0 0
        %2040 = vmatprep.subr.bf16.mxu0 0
        %2041 = vmatpush1.bf16.xpose.msra.mxu0 0
        %2042 = vmatprep.subr.bf16.mxu0 0
        %2043 = vmatpush1.bf16.xpose.msra.mxu0 0
        %2044 = vmatprep.subr.bf16.mxu0 0
        %2045 = vmatpush1.bf16.xpose.msra.mxu0 0
        %2046 = vmatprep.subr.bf16.mxu0 0
        %2047 = vmatpush1.bf16.xpose.msra.mxu0 0
        %2048 = vmatprep.subr.bf16.mxu0 0
        %2049 = vmatpush1.bf16.xpose.msra.mxu0 0
        %2050 = vmatprep.subr.bf16.mxu0 0
        %2051 = vmatpush1.bf16.xpose.msra.mxu0 0
        %2052 = vmatprep.subr.bf16.mxu0 0
        %2053 = vmatpush1.bf16.xpose.msra.mxu0 0
        %2054 = vmatprep.subr.bf16.mxu0 0
        %2055 = vmatpush1.bf16.xpose.msra.mxu0 0
        %2056 = vmatprep.subr.bf16.mxu0 0
        %2057 = vmatpush1.bf16.xpose.msra.mxu0 0
        %2058 = vmatprep.subr.bf16.mxu0 0
        %2059 = vmatpush1.bf16.xpose.msra.mxu0 0
        %2060 = vmatprep.mubr.bf16.mxu0 0
        %2061 = vmatmul.mubr.bf16.gmra.mrb[0].mxu0 %v2017
        %v2062 = vpop.f32.mrb[0].mxu0
        %v2063 = vadd.f32 0.0, %v2062
        %v2064 = vpop.f32.mrb[0].mxu0
        %v2065 = vpop.f32.mrb[0].mxu0
        %v2066 = vadd.f32 0.0, %v2065
        %v2067 = vpop.f32.mrb[0].mxu0
        %2068 = vmatprep.mubr.bf16.mxu0 0
        %2069 = vmatmul.mubr.bf16.gmra.mrb[0].mxu0 %v2020
        %v2070 = vpop.f32.mrb[0].mxu0
        %v2071 = vadd.f32 0.0, %v2070
        %v2072 = vpop.f32.mrb[0].mxu0
        %v2073 = vpop.f32.mrb[0].mxu0
        %v2074 = vpop.f32.mrb[0].mxu0
        %2075 = vdwg.mxu0
        %v2076 = vsel %vm1466, %v2063, -1e+30
        %v2077 = vsel %vm1466, %v2066, -1e+30
        %v2078 = vsel %vm1466, %v2071, -1e+30
        %v2079 = vsel %vm1537, %v2076, -inf
        %2080 = vmax.xlane.f32.xlu0 %v2079
        %v2081 = vpop.xlane.xlu0 %2080
        %v2082 = vsel %vm1537, %v2077, -inf
        %2083 = vmax.xlane.f32.xlu0 %v2082
        %v2084 = vpop.xlane.xlu0 %2083
        %v2085 = vsel %vm1537, %v2078, -inf
        %2086 = vmax.xlane.f32.xlu0 %v2085
        %v2087 = vpop.xlane.xlu0 %2086
        %v2088 = vsub.f32 %v2076, %v2081
        %v2089 = vsub.f32 %v2077, %v2084
        %v2090 = vsub.f32 %v2078, %v2087
        %v2091 = vmul.f32 %v2088, 1.442695
        %v2092 = vpow.pop %v2091
        %v2093 = vmul.f32 %v2089, 1.442695
        %v2094 = vpow.pop %v2093
        %v2095 = vmul.f32 %v2090, 1.442695
        %v2096 = vpow.pop %v2095
        %v2097 = vsel %vm1537, %v2092, 0.0
        %2098 = vadd.xlane.f32.xlu0 %v2097
        %v2099 = vpop.xlane.xlu0 %2098
        %v2100 = vsel %vm1537, %v2094, 0.0
        %2101 = vadd.xlane.f32.xlu0 %v2100
        %v2102 = vpop.xlane.xlu0 %2101
        %v2103 = vsel %vm1537, %v2096, 0.0
        %2104 = vadd.xlane.f32.xlu0 %v2103
        %v2105 = vpop.xlane.xlu0 %2104
        %v2106 = vrcp.pop %v2099
        %v2107 = vrcp.pop %v2102
        %v2108 = vrcp.pop %v2105
        %v2109 = vmul.f32 %v2092, %v2106
        %v2110 = vmul.f32 %v2094, %v2107
        %v2111 = vmul.f32 %v2096, %v2108
        %v2112 = vpack.c.bf16 %v2110, %v2109
        %v2113 = vpack.c.bf16 %v2111, %v2111
        %2114 = vrot.lane.b32.xlu0 %v1471, 32
        %v2115 = vpop.permute.xlu0 %2114
        %2116 = vrot.lane.b32.xlu0 %v1472, 32
        %v2117 = vpop.permute.xlu0 %2116
        %v2120 = vsel %vm1537, %v2112, 0
        %v2123 = vsel %vm1537, %v2113, 0
        %v2126 = vsel %vm1579, %v2117, 0
        %2128 = vmatprep.subr.bf16.mxu0 0
        %2129 = vmatpush1.bf16.msra.mxu0 %v2115
        %2130 = vmatprep.subr.bf16.mxu0 0
        %2131 = vmatpush1.bf16.msra.mxu0 %v2126
        %2132 = vmatprep.subr.bf16.mxu0 0
        %2133 = vmatpush1.bf16.msra.mxu0 0
        %2134 = vmatprep.subr.bf16.mxu0 0
        %2135 = vmatpush1.bf16.msra.mxu0 0
        %2136 = vmatprep.subr.bf16.mxu0 0
        %2137 = vmatpush1.bf16.msra.mxu0 0
        %2138 = vmatprep.subr.bf16.mxu0 0
        %2139 = vmatpush1.bf16.msra.mxu0 0
        %2140 = vmatprep.subr.bf16.mxu0 0
        %2141 = vmatpush1.bf16.msra.mxu0 0
        %2142 = vmatprep.subr.bf16.mxu0 0
        %2143 = vmatpush1.bf16.msra.mxu0 0
        %2144 = vmatprep.subr.bf16.mxu0 0
        %2145 = vmatpush1.bf16.msra.mxu0 0
        %2146 = vmatprep.subr.bf16.mxu0 0
        %2147 = vmatpush1.bf16.msra.mxu0 0
        %2148 = vmatprep.subr.bf16.mxu0 0
        %2149 = vmatpush1.bf16.msra.mxu0 0
        %2150 = vmatprep.subr.bf16.mxu0 0
        %2151 = vmatpush1.bf16.msra.mxu0 0
        %2152 = vmatprep.subr.bf16.mxu0 0
        %2153 = vmatpush1.bf16.msra.mxu0 0
        %2154 = vmatprep.subr.bf16.mxu0 0
        %2155 = vmatpush1.bf16.msra.mxu0 0
        %2156 = vmatprep.subr.bf16.mxu0 0
        %2157 = vmatpush1.bf16.msra.mxu0 0
        %2158 = vmatprep.subr.bf16.mxu0 0
        %2159 = vmatpush1.bf16.msra.mxu0 0
        %2160 = vmatprep.mubr.bf16.mxu0 0
        %2161 = vmatmul.mubr.bf16.gmra.mrb[0].mxu0 %v2120
        %v2162 = vpop.f32.mrb[0].mxu0
        %v2163 = vadd.f32 0.0, %v2162
        %v2164 = vpop.f32.mrb[0].mxu0
        %v2165 = vpop.f32.mrb[0].mxu0
        %v2166 = vadd.f32 0.0, %v2165
        %v2167 = vpop.f32.mrb[0].mxu0
        %2168 = vmatprep.mubr.bf16.mxu0 0
        %2169 = vmatmul.mubr.bf16.gmra.mrb[0].mxu0 %v2123
        %v2170 = vpop.f32.mrb[0].mxu0
        %v2171 = vadd.f32 0.0, %v2170
        %v2172 = vpop.f32.mrb[0].mxu0
        %v2173 = vpop.f32.mrb[0].mxu0
        %v2174 = vpop.f32.mrb[0].mxu0
        %2175 = vdwg.mxu0
        %2179 = vrot.lane.b32.xlu0 %v2163, 96
        %v2180 = vpop.permute.xlu0 %2179
        %2181 = vrot.lane.b32.xlu0 %v2166, 96
        %v2182 = vpop.permute.xlu0 %2181
        %2183 = vrot.lane.b32.xlu0 %v2171, 96
        %v2184 = vpop.permute.xlu0 %2183
        %vm2188 = vcmask 1048320
        %2189 = vst.msk [vmem:[#allocation3] sm:$0xff] %vm2188, %v2180
        %2190 = vst.msk [vmem:[#allocation3 + $0x8] sm:$0xff] %vm2188, %v2182
        %2191 = vst.msk [vmem:[#allocation3 + $0x10] sm:$0xff] %vm2188, %v2184
        %v2192 = vpack.c.bf16 %v1399, %v1393
        %v2193 = vpack.c.bf16 %v1403, %v1403
        %v2194 = vpack.c.bf16 %v1401, %v1395
        %v2195 = vpack.c.bf16 %v1405, %v1405
        %v2196 = vpack.c.bf16 %v1458, %v1453
        %v2197 = vpack.c.bf16 %v1461, %v1461
        %v2199 = vsel %vm1473, %v2192, 0
        %v2202 = vsel %vm1473, %v2193, 0
        %v2205 = vsel %vm1473, %v2194, 0
        %v2208 = vsel %vm1473, %v2195, 0
        %2210 = vmatprep.subr.bf16.mxu0 0
        %2211 = vmatpush1.bf16.xpose.msra.mxu0 %v2205
        %2212 = vmatprep.subr.bf16.mxu0 0
        %2213 = vmatpush1.bf16.xpose.msra.mxu0 %v2208
        %2214 = vmatprep.subr.bf16.mxu0 0
        %2215 = vmatpush1.bf16.xpose.msra.mxu0 0
        %2216 = vmatprep.subr.bf16.mxu0 0
        %2217 = vmatpush1.bf16.xpose.msra.mxu0 0
        %2218 = vmatprep.subr.bf16.mxu0 0
        %2219 = vmatpush1.bf16.xpose.msra.mxu0 0
        %2220 = vmatprep.subr.bf16.mxu0 0
        %2221 = vmatpush1.bf16.xpose.msra.mxu0 0
        %2222 = vmatprep.subr.bf16.mxu0 0
        %2223 = vmatpush1.bf16.xpose.msra.mxu0 0
        %2224 = vmatprep.subr.bf16.mxu0 0
        %2225 = vmatpush1.bf16.xpose.msra.mxu0 0
        %2226 = vmatprep.subr.bf16.mxu0 0
        %2227 = vmatpush1.bf16.xpose.msra.mxu0 0
        %2228 = vmatprep.subr.bf16.mxu0 0
        %2229 = vmatpush1.bf16.xpose.msra.mxu0 0
        %2230 = vmatprep.subr.bf16.mxu0 0
        %2231 = vmatpush1.bf16.xpose.msra.mxu0 0
        %2232 = vmatprep.subr.bf16.mxu0 0
        %2233 = vmatpush1.bf16.xpose.msra.mxu0 0
        %2234 = vmatprep.subr.bf16.mxu0 0
        %2235 = vmatpush1.bf16.xpose.msra.mxu0 0
        %2236 = vmatprep.subr.bf16.mxu0 0
        %2237 = vmatpush1.bf16.xpose.msra.mxu0 0
        %2238 = vmatprep.subr.bf16.mxu0 0
        %2239 = vmatpush1.bf16.xpose.msra.mxu0 0
        %2240 = vmatprep.subr.bf16.mxu0 0
        %2241 = vmatpush1.bf16.xpose.msra.mxu0 0
        %2242 = vmatprep.mubr.bf16.mxu0 0
        %2243 = vmatmul.mubr.bf16.gmra.mrb[0].mxu0 %v2199
        %v2244 = vpop.f32.mrb[0].mxu0
        %v2245 = vadd.f32 0.0, %v2244
        %v2246 = vpop.f32.mrb[0].mxu0
        %v2247 = vpop.f32.mrb[0].mxu0
        %v2248 = vadd.f32 0.0, %v2247
        %v2249 = vpop.f32.mrb[0].mxu0
        %2250 = vmatprep.mubr.bf16.mxu0 0
        %2251 = vmatmul.mubr.bf16.gmra.mrb[0].mxu0 %v2202
        %v2252 = vpop.f32.mrb[0].mxu0
        %v2253 = vadd.f32 0.0, %v2252
        %v2254 = vpop.f32.mrb[0].mxu0
        %v2255 = vpop.f32.mrb[0].mxu0
        %v2256 = vpop.f32.mrb[0].mxu0
        %2257 = vdwg.mxu0
        %v2258 = vsel %vm1466, %v2245, -1e+30
        %v2259 = vsel %vm1466, %v2248, -1e+30
        %v2260 = vsel %vm1466, %v2253, -1e+30
        %v2261 = vsel %vm1537, %v2258, -inf
        %2262 = vmax.xlane.f32.xlu0 %v2261
        %v2263 = vpop.xlane.xlu0 %2262
        %v2264 = vsel %vm1537, %v2259, -inf
        %2265 = vmax.xlane.f32.xlu0 %v2264
        %v2266 = vpop.xlane.xlu0 %2265
        %v2267 = vsel %vm1537, %v2260, -inf
        %2268 = vmax.xlane.f32.xlu0 %v2267
        %v2269 = vpop.xlane.xlu0 %2268
        %v2270 = vsub.f32 %v2258, %v2263
        %v2271 = vsub.f32 %v2259, %v2266
        %v2272 = vsub.f32 %v2260, %v2269
        %v2273 = vmul.f32 %v2270, 1.442695
        %v2274 = vpow.pop %v2273
        %v2275 = vmul.f32 %v2271, 1.442695
        %v2276 = vpow.pop %v2275
        %v2277 = vmul.f32 %v2272, 1.442695
        %v2278 = vpow.pop %v2277
        %v2279 = vsel %vm1537, %v2274, 0.0
        %2280 = vadd.xlane.f32.xlu0 %v2279
        %v2281 = vpop.xlane.xlu0 %2280
        %v2282 = vsel %vm1537, %v2276, 0.0
        %2283 = vadd.xlane.f32.xlu0 %v2282
        %v2284 = vpop.xlane.xlu0 %2283
        %v2285 = vsel %vm1537, %v2278, 0.0
        %2286 = vadd.xlane.f32.xlu0 %v2285
        %v2287 = vpop.xlane.xlu0 %2286
        %v2288 = vrcp.pop %v2281
        %v2289 = vrcp.pop %v2284
        %v2290 = vrcp.pop %v2287
        %v2291 = vmul.f32 %v2274, %v2288
        %v2292 = vmul.f32 %v2276, %v2289
        %v2293 = vmul.f32 %v2278, %v2290
        %v2294 = vpack.c.bf16 %v2292, %v2291
        %v2295 = vpack.c.bf16 %v2293, %v2293
        %v2297 = vsel %vm1537, %v2294, 0
        %v2300 = vsel %vm1537, %v2295, 0
        %v2303 = vsel %vm1579, %v2197, 0
        %2305 = vmatprep.subr.bf16.mxu0 0
        %2306 = vmatpush1.bf16.msra.mxu0 %v2196
        %2307 = vmatprep.subr.bf16.mxu0 0
        %2308 = vmatpush1.bf16.msra.mxu0 %v2303
        %2309 = vmatprep.subr.bf16.mxu0 0
        %2310 = vmatpush1.bf16.msra.mxu0 0
        %2311 = vmatprep.subr.bf16.mxu0 0
        %2312 = vmatpush1.bf16.msra.mxu0 0
        %2313 = vmatprep.subr.bf16.mxu0 0
        %2314 = vmatpush1.bf16.msra.mxu0 0
        %2315 = vmatprep.subr.bf16.mxu0 0
        %2316 = vmatpush1.bf16.msra.mxu0 0
        %2317 = vmatprep.subr.bf16.mxu0 0
        %2318 = vmatpush1.bf16.msra.mxu0 0
        %2319 = vmatprep.subr.bf16.mxu0 0
        %2320 = vmatpush1.bf16.msra.mxu0 0
        %2321 = vmatprep.subr.bf16.mxu0 0
        %2322 = vmatpush1.bf16.msra.mxu0 0
        %2323 = vmatprep.subr.bf16.mxu0 0
        %2324 = vmatpush1.bf16.msra.mxu0 0
        %2325 = vmatprep.subr.bf16.mxu0 0
        %2326 = vmatpush1.bf16.msra.mxu0 0
        %2327 = vmatprep.subr.bf16.mxu0 0
        %2328 = vmatpush1.bf16.msra.mxu0 0
        %2329 = vmatprep.subr.bf16.mxu0 0
        %2330 = vmatpush1.bf16.msra.mxu0 0
        %2331 = vmatprep.subr.bf16.mxu0 0
        %2332 = vmatpush1.bf16.msra.mxu0 0
        %2333 = vmatprep.subr.bf16.mxu0 0
        %2334 = vmatpush1.bf16.msra.mxu0 0
        %2335 = vmatprep.subr.bf16.mxu0 0
        %2336 = vmatpush1.bf16.msra.mxu0 0
        %2337 = vmatprep.mubr.bf16.mxu0 0
        %2338 = vmatmul.mubr.bf16.gmra.mrb[0].mxu0 %v2297
        %v2339 = vpop.f32.mrb[0].mxu0
        %v2340 = vadd.f32 0.0, %v2339
        %v2341 = vpop.f32.mrb[0].mxu0
        %v2342 = vpop.f32.mrb[0].mxu0
        %v2343 = vadd.f32 0.0, %v2342
        %v2344 = vpop.f32.mrb[0].mxu0
        %2345 = vmatprep.mubr.bf16.mxu0 0
        %2346 = vmatmul.mubr.bf16.gmra.mrb[0].mxu0 %v2300
        %v2347 = vpop.f32.mrb[0].mxu0
        %v2348 = vadd.f32 0.0, %v2347
        %v2349 = vpop.f32.mrb[0].mxu0
        %v2350 = vpop.f32.mrb[0].mxu0
        %v2351 = vpop.f32.mrb[0].mxu0
        %2352 = vdwg.mxu0
        %2353 = vst.msk [vmem:[#allocation3 + $0x18] sm:$0xff] %vm1473, %v2340
        %2354 = vst.msk [vmem:[#allocation3 + $0x20] sm:$0xff] %vm1473, %v2343
        %2355 = vst.msk [vmem:[#allocation3 + $0x28] sm:$0xff] %vm1473, %v2348
        %2358 = vrot.lane.b32.xlu0 %v2192, 96
        %v2359 = vpop.permute.xlu0 %2358
        %2360 = vrot.lane.b32.xlu0 %v2193, 96
        %v2361 = vpop.permute.xlu0 %2360
        %2364 = vrot.lane.b32.xlu0 %v2194, 96
        %v2365 = vpop.permute.xlu0 %2364
        %2366 = vrot.lane.b32.xlu0 %v2195, 96
        %v2367 = vpop.permute.xlu0 %2366
        %v2369 = vsel %vm1473, %v2359, 0
        %v2372 = vsel %vm1473, %v2361, 0
        %v2375 = vsel %vm1473, %v2365, 0
        %v2378 = vsel %vm1473, %v2367, 0
        %2380 = vmatprep.subr.bf16.mxu0 0
        %2381 = vmatpush1.bf16.xpose.msra.mxu0 %v2375
        %2382 = vmatprep.subr.bf16.mxu0 0
        %2383 = vmatpush1.bf16.xpose.msra.mxu0 %v2378
        %2384 = vmatprep.subr.bf16.mxu0 0
        %2385 = vmatpush1.bf16.xpose.msra.mxu0 0
        %2386 = vmatprep.subr.bf16.mxu0 0
        %2387 = vmatpush1.bf16.xpose.msra.mxu0 0
        %2388 = vmatprep.subr.bf16.mxu0 0
        %2389 = vmatpush1.bf16.xpose.msra.mxu0 0
        %2390 = vmatprep.subr.bf16.mxu0 0
        %2391 = vmatpush1.bf16.xpose.msra.mxu0 0
        %2392 = vmatprep.subr.bf16.mxu0 0
        %2393 = vmatpush1.bf16.xpose.msra.mxu0 0
        %2394 = vmatprep.subr.bf16.mxu0 0
        %2395 = vmatpush1.bf16.xpose.msra.mxu0 0
        %2396 = vmatprep.subr.bf16.mxu0 0
        %2397 = vmatpush1.bf16.xpose.msra.mxu0 0
        %2398 = vmatprep.subr.bf16.mxu0 0
        %2399 = vmatpush1.bf16.xpose.msra.mxu0 0
        %2400 = vmatprep.subr.bf16.mxu0 0
        %2401 = vmatpush1.bf16.xpose.msra.mxu0 0
        %2402 = vmatprep.subr.bf16.mxu0 0
        %2403 = vmatpush1.bf16.xpose.msra.mxu0 0
        %2404 = vmatprep.subr.bf16.mxu0 0
        %2405 = vmatpush1.bf16.xpose.msra.mxu0 0
        %2406 = vmatprep.subr.bf16.mxu0 0
        %2407 = vmatpush1.bf16.xpose.msra.mxu0 0
        %2408 = vmatprep.subr.bf16.mxu0 0
        %2409 = vmatpush1.bf16.xpose.msra.mxu0 0
        %2410 = vmatprep.subr.bf16.mxu0 0
        %2411 = vmatpush1.bf16.xpose.msra.mxu0 0
        %2412 = vmatprep.mubr.bf16.mxu0 0
        %2413 = vmatmul.mubr.bf16.gmra.mrb[0].mxu0 %v2369
        %v2414 = vpop.f32.mrb[0].mxu0
        %v2415 = vadd.f32 0.0, %v2414
        %v2416 = vpop.f32.mrb[0].mxu0
        %v2417 = vpop.f32.mrb[0].mxu0
        %v2418 = vadd.f32 0.0, %v2417
        %v2419 = vpop.f32.mrb[0].mxu0
        %2420 = vmatprep.mubr.bf16.mxu0 0
        %2421 = vmatmul.mubr.bf16.gmra.mrb[0].mxu0 %v2372
        %v2422 = vpop.f32.mrb[0].mxu0
        %v2423 = vadd.f32 0.0, %v2422
        %v2424 = vpop.f32.mrb[0].mxu0
        %v2425 = vpop.f32.mrb[0].mxu0
        %v2426 = vpop.f32.mrb[0].mxu0
        %2427 = vdwg.mxu0
        %v2428 = vsel %vm1466, %v2415, -1e+30
        %v2429 = vsel %vm1466, %v2418, -1e+30
        %v2430 = vsel %vm1466, %v2423, -1e+30
        %v2431 = vsel %vm1537, %v2428, -inf
        %2432 = vmax.xlane.f32.xlu0 %v2431
        %v2433 = vpop.xlane.xlu0 %2432
        %v2434 = vsel %vm1537, %v2429, -inf
        %2435 = vmax.xlane.f32.xlu0 %v2434
        %v2436 = vpop.xlane.xlu0 %2435
        %v2437 = vsel %vm1537, %v2430, -inf
        %2438 = vmax.xlane.f32.xlu0 %v2437
        %v2439 = vpop.xlane.xlu0 %2438
        %v2440 = vsub.f32 %v2428, %v2433
        %v2441 = vsub.f32 %v2429, %v2436
        %v2442 = vsub.f32 %v2430, %v2439
        %v2443 = vmul.f32 %v2440, 1.442695
        %v2444 = vpow.pop %v2443
        %v2445 = vmul.f32 %v2441, 1.442695
        %v2446 = vpow.pop %v2445
        %v2447 = vmul.f32 %v2442, 1.442695
        %v2448 = vpow.pop %v2447
        %v2449 = vsel %vm1537, %v2444, 0.0
        %2450 = vadd.xlane.f32.xlu0 %v2449
        %v2451 = vpop.xlane.xlu0 %2450
        %v2452 = vsel %vm1537, %v2446, 0.0
        %2453 = vadd.xlane.f32.xlu0 %v2452
        %v2454 = vpop.xlane.xlu0 %2453
        %v2455 = vsel %vm1537, %v2448, 0.0
        %2456 = vadd.xlane.f32.xlu0 %v2455
        %v2457 = vpop.xlane.xlu0 %2456
        %v2458 = vrcp.pop %v2451
        %v2459 = vrcp.pop %v2454
        %v2460 = vrcp.pop %v2457
        %v2461 = vmul.f32 %v2444, %v2458
        %v2462 = vmul.f32 %v2446, %v2459
        %v2463 = vmul.f32 %v2448, %v2460
        %v2464 = vpack.c.bf16 %v2462, %v2461
        %v2465 = vpack.c.bf16 %v2463, %v2463
        %2468 = vrot.lane.b32.xlu0 %v2196, 96
        %v2469 = vpop.permute.xlu0 %2468
        %2470 = vrot.lane.b32.xlu0 %v2197, 96
        %v2471 = vpop.permute.xlu0 %2470
        %v2474 = vsel %vm1537, %v2464, 0
        %v2477 = vsel %vm1537, %v2465, 0
        %v2480 = vsel %vm1579, %v2471, 0
        %2482 = vmatprep.subr.bf16.mxu0 0
        %2483 = vmatpush1.bf16.msra.mxu0 %v2469
        %2484 = vmatprep.subr.bf16.mxu0 0
        %2485 = vmatpush1.bf16.msra.mxu0 %v2480
        %2486 = vmatprep.subr.bf16.mxu0 0
        %2487 = vmatpush1.bf16.msra.mxu0 0
        %2488 = vmatprep.subr.bf16.mxu0 0
        %2489 = vmatpush1.bf16.msra.mxu0 0
        %2490 = vmatprep.subr.bf16.mxu0 0
        %2491 = vmatpush1.bf16.msra.mxu0 0
        %2492 = vmatprep.subr.bf16.mxu0 0
        %2493 = vmatpush1.bf16.msra.mxu0 0
        %2494 = vmatprep.subr.bf16.mxu0 0
        %2495 = vmatpush1.bf16.msra.mxu0 0
        %2496 = vmatprep.subr.bf16.mxu0 0
        %2497 = vmatpush1.bf16.msra.mxu0 0
        %2498 = vmatprep.subr.bf16.mxu0 0
        %2499 = vmatpush1.bf16.msra.mxu0 0
        %2500 = vmatprep.subr.bf16.mxu0 0
        %2501 = vmatpush1.bf16.msra.mxu0 0
        %2502 = vmatprep.subr.bf16.mxu0 0
        %2503 = vmatpush1.bf16.msra.mxu0 0
        %2504 = vmatprep.subr.bf16.mxu0 0
        %2505 = vmatpush1.bf16.msra.mxu0 0
        %2506 = vmatprep.subr.bf16.mxu0 0
        %2507 = vmatpush1.bf16.msra.mxu0 0
        %2508 = vmatprep.subr.bf16.mxu0 0
        %2509 = vmatpush1.bf16.msra.mxu0 0
        %2510 = vmatprep.subr.bf16.mxu0 0
        %2511 = vmatpush1.bf16.msra.mxu0 0
        %2512 = vmatprep.subr.bf16.mxu0 0
        %2513 = vmatpush1.bf16.msra.mxu0 0
        %2514 = vmatprep.mubr.bf16.mxu0 0
        %2515 = vmatmul.mubr.bf16.gmra.mrb[0].mxu0 %v2474
        %v2516 = vpop.f32.mrb[0].mxu0
        %v2517 = vadd.f32 0.0, %v2516
        %v2518 = vpop.f32.mrb[0].mxu0
        %v2519 = vpop.f32.mrb[0].mxu0
        %v2520 = vadd.f32 0.0, %v2519
        %v2521 = vpop.f32.mrb[0].mxu0
        %2522 = vmatprep.mubr.bf16.mxu0 0
        %2523 = vmatmul.mubr.bf16.gmra.mrb[0].mxu0 %v2477
        %v2524 = vpop.f32.mrb[0].mxu0
        %v2525 = vadd.f32 0.0, %v2524
        %v2526 = vpop.f32.mrb[0].mxu0
        %v2527 = vpop.f32.mrb[0].mxu0
        %v2528 = vpop.f32.mrb[0].mxu0
        %2529 = vdwg.mxu0
        %2533 = vrot.lane.b32.xlu0 %v2517, 32
        %v2534 = vpop.permute.xlu0 %2533
        %2535 = vrot.lane.b32.xlu0 %v2520, 32
        %v2536 = vpop.permute.xlu0 %2535
        %2537 = vrot.lane.b32.xlu0 %v2525, 32
        %v2538 = vpop.permute.xlu0 %2537
        %2542 = vst.msk [vmem:[#allocation3 + $0x18] sm:$0xff] %vm1820, %v2534
        %2543 = vst.msk [vmem:[#allocation3 + $0x20] sm:$0xff] %vm1820, %v2536
        %2544 = vst.msk [vmem:[#allocation3 + $0x28] sm:$0xff] %vm1820, %v2538
        %2545 = vrot.lane.b32.xlu0 %v2192, 64
        %v2546 = vpop.permute.xlu0 %2545
        %2547 = vrot.lane.b32.xlu0 %v2193, 64
        %v2548 = vpop.permute.xlu0 %2547
        %2549 = vrot.lane.b32.xlu0 %v2194, 64
        %v2550 = vpop.permute.xlu0 %2549
        %2551 = vrot.lane.b32.xlu0 %v2195, 64
        %v2552 = vpop.permute.xlu0 %2551
        %v2554 = vsel %vm1473, %v2546, 0
        %v2557 = vsel %vm1473, %v2548, 0
        %v2560 = vsel %vm1473, %v2550, 0
        %v2563 = vsel %vm1473, %v2552, 0
        %2565 = vmatprep.subr.bf16.mxu0 0
        %2566 = vmatpush1.bf16.xpose.msra.mxu0 %v2560
        %2567 = vmatprep.subr.bf16.mxu0 0
        %2568 = vmatpush1.bf16.xpose.msra.mxu0 %v2563
        %2569 = vmatprep.subr.bf16.mxu0 0
        %2570 = vmatpush1.bf16.xpose.msra.mxu0 0
        %2571 = vmatprep.subr.bf16.mxu0 0
        %2572 = vmatpush1.bf16.xpose.msra.mxu0 0
        %2573 = vmatprep.subr.bf16.mxu0 0
        %2574 = vmatpush1.bf16.xpose.msra.mxu0 0
        %2575 = vmatprep.subr.bf16.mxu0 0
        %2576 = vmatpush1.bf16.xpose.msra.mxu0 0
        %2577 = vmatprep.subr.bf16.mxu0 0
        %2578 = vmatpush1.bf16.xpose.msra.mxu0 0
        %2579 = vmatprep.subr.bf16.mxu0 0
        %2580 = vmatpush1.bf16.xpose.msra.mxu0 0
        %2581 = vmatprep.subr.bf16.mxu0 0
        %2582 = vmatpush1.bf16.xpose.msra.mxu0 0
        %2583 = vmatprep.subr.bf16.mxu0 0
        %2584 = vmatpush1.bf16.xpose.msra.mxu0 0
        %2585 = vmatprep.subr.bf16.mxu0 0
        %2586 = vmatpush1.bf16.xpose.msra.mxu0 0
        %2587 = vmatprep.subr.bf16.mxu0 0
        %2588 = vmatpush1.bf16.xpose.msra.mxu0 0
        %2589 = vmatprep.subr.bf16.mxu0 0
        %2590 = vmatpush1.bf16.xpose.msra.mxu0 0
        %2591 = vmatprep.subr.bf16.mxu0 0
        %2592 = vmatpush1.bf16.xpose.msra.mxu0 0
        %2593 = vmatprep.subr.bf16.mxu0 0
        %2594 = vmatpush1.bf16.xpose.msra.mxu0 0
        %2595 = vmatprep.subr.bf16.mxu0 0
        %2596 = vmatpush1.bf16.xpose.msra.mxu0 0
        %2597 = vmatprep.mubr.bf16.mxu0 0
        %2598 = vmatmul.mubr.bf16.gmra.mrb[0].mxu0 %v2554
        %v2599 = vpop.f32.mrb[0].mxu0
        %v2600 = vadd.f32 0.0, %v2599
        %v2601 = vpop.f32.mrb[0].mxu0
        %v2602 = vpop.f32.mrb[0].mxu0
        %v2603 = vadd.f32 0.0, %v2602
        %v2604 = vpop.f32.mrb[0].mxu0
        %2605 = vmatprep.mubr.bf16.mxu0 0
        %2606 = vmatmul.mubr.bf16.gmra.mrb[0].mxu0 %v2557
        %v2607 = vpop.f32.mrb[0].mxu0
        %v2608 = vadd.f32 0.0, %v2607
        %v2609 = vpop.f32.mrb[0].mxu0
        %v2610 = vpop.f32.mrb[0].mxu0
        %v2611 = vpop.f32.mrb[0].mxu0
        %2612 = vdwg.mxu0
        %v2613 = vsel %vm1466, %v2600, -1e+30
        %v2614 = vsel %vm1466, %v2603, -1e+30
        %v2615 = vsel %vm1466, %v2608, -1e+30
        %v2616 = vsel %vm1537, %v2613, -inf
        %2617 = vmax.xlane.f32.xlu0 %v2616
        %v2618 = vpop.xlane.xlu0 %2617
        %v2619 = vsel %vm1537, %v2614, -inf
        %2620 = vmax.xlane.f32.xlu0 %v2619
        %v2621 = vpop.xlane.xlu0 %2620
        %v2622 = vsel %vm1537, %v2615, -inf
        %2623 = vmax.xlane.f32.xlu0 %v2622
        %v2624 = vpop.xlane.xlu0 %2623
        %v2625 = vsub.f32 %v2613, %v2618
        %v2626 = vsub.f32 %v2614, %v2621
        %v2627 = vsub.f32 %v2615, %v2624
        %v2628 = vmul.f32 %v2625, 1.442695
        %v2629 = vpow.pop %v2628
        %v2630 = vmul.f32 %v2626, 1.442695
        %v2631 = vpow.pop %v2630
        %v2632 = vmul.f32 %v2627, 1.442695
        %v2633 = vpow.pop %v2632
        %v2634 = vsel %vm1537, %v2629, 0.0
        %2635 = vadd.xlane.f32.xlu0 %v2634
        %v2636 = vpop.xlane.xlu0 %2635
        %v2637 = vsel %vm1537, %v2631, 0.0
        %2638 = vadd.xlane.f32.xlu0 %v2637
        %v2639 = vpop.xlane.xlu0 %2638
        %v2640 = vsel %vm1537, %v2633, 0.0
        %2641 = vadd.xlane.f32.xlu0 %v2640
        %v2642 = vpop.xlane.xlu0 %2641
        %v2643 = vrcp.pop %v2636
        %v2644 = vrcp.pop %v2639
        %v2645 = vrcp.pop %v2642
        %v2646 = vmul.f32 %v2629, %v2643
        %v2647 = vmul.f32 %v2631, %v2644
        %v2648 = vmul.f32 %v2633, %v2645
        %v2649 = vpack.c.bf16 %v2647, %v2646
        %v2650 = vpack.c.bf16 %v2648, %v2648
        %2651 = vrot.lane.b32.xlu0 %v2196, 64
        %v2652 = vpop.permute.xlu0 %2651
        %2653 = vrot.lane.b32.xlu0 %v2197, 64
        %v2654 = vpop.permute.xlu0 %2653
        %v2657 = vsel %vm1537, %v2649, 0
        %v2660 = vsel %vm1537, %v2650, 0
        %v2663 = vsel %vm1579, %v2654, 0
        %2665 = vmatprep.subr.bf16.mxu0 0
        %2666 = vmatpush1.bf16.msra.mxu0 %v2652
        %2667 = vmatprep.subr.bf16.mxu0 0
        %2668 = vmatpush1.bf16.msra.mxu0 %v2663
        %2669 = vmatprep.subr.bf16.mxu0 0
        %2670 = vmatpush1.bf16.msra.mxu0 0
        %2671 = vmatprep.subr.bf16.mxu0 0
        %2672 = vmatpush1.bf16.msra.mxu0 0
        %2673 = vmatprep.subr.bf16.mxu0 0
        %2674 = vmatpush1.bf16.msra.mxu0 0
        %2675 = vmatprep.subr.bf16.mxu0 0
        %2676 = vmatpush1.bf16.msra.mxu0 0
        %2677 = vmatprep.subr.bf16.mxu0 0
        %2678 = vmatpush1.bf16.msra.mxu0 0
        %2679 = vmatprep.subr.bf16.mxu0 0
        %2680 = vmatpush1.bf16.msra.mxu0 0
        %2681 = vmatprep.subr.bf16.mxu0 0
        %2682 = vmatpush1.bf16.msra.mxu0 0
        %2683 = vmatprep.subr.bf16.mxu0 0
        %2684 = vmatpush1.bf16.msra.mxu0 0
        %2685 = vmatprep.subr.bf16.mxu0 0
        %2686 = vmatpush1.bf16.msra.mxu0 0
        %2687 = vmatprep.subr.bf16.mxu0 0
        %2688 = vmatpush1.bf16.msra.mxu0 0
        %2689 = vmatprep.subr.bf16.mxu0 0
        %2690 = vmatpush1.bf16.msra.mxu0 0
        %2691 = vmatprep.subr.bf16.mxu0 0
        %2692 = vmatpush1.bf16.msra.mxu0 0
        %2693 = vmatprep.subr.bf16.mxu0 0
        %2694 = vmatpush1.bf16.msra.mxu0 0
        %2695 = vmatprep.subr.bf16.mxu0 0
        %2696 = vmatpush1.bf16.msra.mxu0 0
        %2697 = vmatprep.mubr.bf16.mxu0 0
        %2698 = vmatmul.mubr.bf16.gmra.mrb[0].mxu0 %v2657
        %v2699 = vpop.f32.mrb[0].mxu0
        %v2700 = vadd.f32 0.0, %v2699
        %v2701 = vpop.f32.mrb[0].mxu0
        %v2702 = vpop.f32.mrb[0].mxu0
        %v2703 = vadd.f32 0.0, %v2702
        %v2704 = vpop.f32.mrb[0].mxu0
        %2705 = vmatprep.mubr.bf16.mxu0 0
        %2706 = vmatmul.mubr.bf16.gmra.mrb[0].mxu0 %v2660
        %v2707 = vpop.f32.mrb[0].mxu0
        %v2708 = vadd.f32 0.0, %v2707
        %v2709 = vpop.f32.mrb[0].mxu0
        %v2710 = vpop.f32.mrb[0].mxu0
        %v2711 = vpop.f32.mrb[0].mxu0
        %2712 = vdwg.mxu0
        %2716 = vrot.lane.b32.xlu0 %v2700, 64
        %v2717 = vpop.permute.xlu0 %2716
        %2718 = vrot.lane.b32.xlu0 %v2703, 64
        %v2719 = vpop.permute.xlu0 %2718
        %2720 = vrot.lane.b32.xlu0 %v2708, 64
        %v2721 = vpop.permute.xlu0 %2720
        %2725 = vst.msk [vmem:[#allocation3 + $0x18] sm:$0xff] %vm2004, %v2717
        %2726 = vst.msk [vmem:[#allocation3 + $0x20] sm:$0xff] %vm2004, %v2719
        %2727 = vst.msk [vmem:[#allocation3 + $0x28] sm:$0xff] %vm2004, %v2721
        %2728 = vrot.lane.b32.xlu0 %v2192, 32
        %v2729 = vpop.permute.xlu0 %2728
        %2730 = vrot.lane.b32.xlu0 %v2193, 32
        %v2731 = vpop.permute.xlu0 %2730
        %2732 = vrot.lane.b32.xlu0 %v2194, 32
        %v2733 = vpop.permute.xlu0 %2732
        %2734 = vrot.lane.b32.xlu0 %v2195, 32
        %v2735 = vpop.permute.xlu0 %2734
        %v2737 = vsel %vm1473, %v2729, 0
        %v2740 = vsel %vm1473, %v2731, 0
        %v2743 = vsel %vm1473, %v2733, 0
        %v2746 = vsel %vm1473, %v2735, 0
        %2748 = vmatprep.subr.bf16.mxu0 0
        %2749 = vmatpush1.bf16.xpose.msra.mxu0 %v2743
        %2750 = vmatprep.subr.bf16.mxu0 0
        %2751 = vmatpush1.bf16.xpose.msra.mxu0 %v2746
        %2752 = vmatprep.subr.bf16.mxu0 0
        %2753 = vmatpush1.bf16.xpose.msra.mxu0 0
        %2754 = vmatprep.subr.bf16.mxu0 0
        %2755 = vmatpush1.bf16.xpose.msra.mxu0 0
        %2756 = vmatprep.subr.bf16.mxu0 0
        %2757 = vmatpush1.bf16.xpose.msra.mxu0 0
        %2758 = vmatprep.subr.bf16.mxu0 0
        %2759 = vmatpush1.bf16.xpose.msra.mxu0 0
        %2760 = vmatprep.subr.bf16.mxu0 0
        %2761 = vmatpush1.bf16.xpose.msra.mxu0 0
        %2762 = vmatprep.subr.bf16.mxu0 0
        %2763 = vmatpush1.bf16.xpose.msra.mxu0 0
        %2764 = vmatprep.subr.bf16.mxu0 0
        %2765 = vmatpush1.bf16.xpose.msra.mxu0 0
        %2766 = vmatprep.subr.bf16.mxu0 0
        %2767 = vmatpush1.bf16.xpose.msra.mxu0 0
        %2768 = vmatprep.subr.bf16.mxu0 0
        %2769 = vmatpush1.bf16.xpose.msra.mxu0 0
        %2770 = vmatprep.subr.bf16.mxu0 0
        %2771 = vmatpush1.bf16.xpose.msra.mxu0 0
        %2772 = vmatprep.subr.bf16.mxu0 0
        %2773 = vmatpush1.bf16.xpose.msra.mxu0 0
        %2774 = vmatprep.subr.bf16.mxu0 0
        %2775 = vmatpush1.bf16.xpose.msra.mxu0 0
        %2776 = vmatprep.subr.bf16.mxu0 0
        %2777 = vmatpush1.bf16.xpose.msra.mxu0 0
        %2778 = vmatprep.subr.bf16.mxu0 0
        %2779 = vmatpush1.bf16.xpose.msra.mxu0 0
        %2780 = vmatprep.mubr.bf16.mxu0 0
        %2781 = vmatmul.mubr.bf16.gmra.mrb[0].mxu0 %v2737
        %v2782 = vpop.f32.mrb[0].mxu0
        %v2783 = vadd.f32 0.0, %v2782
        %v2784 = vpop.f32.mrb[0].mxu0
        %v2785 = vpop.f32.mrb[0].mxu0
        %v2786 = vadd.f32 0.0, %v2785
        %v2787 = vpop.f32.mrb[0].mxu0
        %2788 = vmatprep.mubr.bf16.mxu0 0
        %2789 = vmatmul.mubr.bf16.gmra.mrb[0].mxu0 %v2740
        %v2790 = vpop.f32.mrb[0].mxu0
        %v2791 = vadd.f32 0.0, %v2790
        %v2792 = vpop.f32.mrb[0].mxu0
        %v2793 = vpop.f32.mrb[0].mxu0
        %v2794 = vpop.f32.mrb[0].mxu0
        %2795 = vdwg.mxu0
        %v2796 = vsel %vm1466, %v2783, -1e+30
        %v2797 = vsel %vm1466, %v2786, -1e+30
        %v2798 = vsel %vm1466, %v2791, -1e+30
        %v2799 = vsel %vm1537, %v2796, -inf
        %2800 = vmax.xlane.f32.xlu0 %v2799
        %v2801 = vpop.xlane.xlu0 %2800
        %v2802 = vsel %vm1537, %v2797, -inf
        %2803 = vmax.xlane.f32.xlu0 %v2802
        %v2804 = vpop.xlane.xlu0 %2803
        %v2805 = vsel %vm1537, %v2798, -inf
        %2806 = vmax.xlane.f32.xlu0 %v2805
        %v2807 = vpop.xlane.xlu0 %2806
        %v2808 = vsub.f32 %v2796, %v2801
        %v2809 = vsub.f32 %v2797, %v2804
        %v2810 = vsub.f32 %v2798, %v2807
        %v2811 = vmul.f32 %v2808, 1.442695
        %v2812 = vpow.pop %v2811
        %v2813 = vmul.f32 %v2809, 1.442695
        %v2814 = vpow.pop %v2813
        %v2815 = vmul.f32 %v2810, 1.442695
        %v2816 = vpow.pop %v2815
        %v2817 = vsel %vm1537, %v2812, 0.0
        %2818 = vadd.xlane.f32.xlu0 %v2817
        %v2819 = vpop.xlane.xlu0 %2818
        %v2820 = vsel %vm1537, %v2814, 0.0
        %2821 = vadd.xlane.f32.xlu0 %v2820
        %v2822 = vpop.xlane.xlu0 %2821
        %v2823 = vsel %vm1537, %v2816, 0.0
        %2824 = vadd.xlane.f32.xlu0 %v2823
        %v2825 = vpop.xlane.xlu0 %2824
        %v2826 = vrcp.pop %v2819
        %v2827 = vrcp.pop %v2822
        %v2828 = vrcp.pop %v2825
        %v2829 = vmul.f32 %v2812, %v2826
        %v2830 = vmul.f32 %v2814, %v2827
        %v2831 = vmul.f32 %v2816, %v2828
        %v2832 = vpack.c.bf16 %v2830, %v2829
        %v2833 = vpack.c.bf16 %v2831, %v2831
        %2834 = vrot.lane.b32.xlu0 %v2196, 32
        %v2835 = vpop.permute.xlu0 %2834
        %2836 = vrot.lane.b32.xlu0 %v2197, 32
        %v2837 = vpop.permute.xlu0 %2836
        %v2840 = vsel %vm1537, %v2832, 0
        %v2843 = vsel %vm1537, %v2833, 0
        %v2846 = vsel %vm1579, %v2837, 0
        %2848 = vmatprep.subr.bf16.mxu0 0
        %2849 = vmatpush1.bf16.msra.mxu0 %v2835
        %2850 = vmatprep.subr.bf16.mxu0 0
        %2851 = vmatpush1.bf16.msra.mxu0 %v2846
        %2852 = vmatprep.subr.bf16.mxu0 0
        %2853 = vmatpush1.bf16.msra.mxu0 0
        %2854 = vmatprep.subr.bf16.mxu0 0
        %2855 = vmatpush1.bf16.msra.mxu0 0
        %2856 = vmatprep.subr.bf16.mxu0 0
        %2857 = vmatpush1.bf16.msra.mxu0 0
        %2858 = vmatprep.subr.bf16.mxu0 0
        %2859 = vmatpush1.bf16.msra.mxu0 0
        %2860 = vmatprep.subr.bf16.mxu0 0
        %2861 = vmatpush1.bf16.msra.mxu0 0
        %2862 = vmatprep.subr.bf16.mxu0 0
        %2863 = vmatpush1.bf16.msra.mxu0 0
        %2864 = vmatprep.subr.bf16.mxu0 0
        %2865 = vmatpush1.bf16.msra.mxu0 0
        %2866 = vmatprep.subr.bf16.mxu0 0
        %2867 = vmatpush1.bf16.msra.mxu0 0
        %2868 = vmatprep.subr.bf16.mxu0 0
        %2869 = vmatpush1.bf16.msra.mxu0 0
        %2870 = vmatprep.subr.bf16.mxu0 0
        %2871 = vmatpush1.bf16.msra.mxu0 0
        %2872 = vmatprep.subr.bf16.mxu0 0
        %2873 = vmatpush1.bf16.msra.mxu0 0
        %2874 = vmatprep.subr.bf16.mxu0 0
        %2875 = vmatpush1.bf16.msra.mxu0 0
        %2876 = vmatprep.subr.bf16.mxu0 0
        %2877 = vmatpush1.bf16.msra.mxu0 0
        %2878 = vmatprep.subr.bf16.mxu0 0
        %2879 = vmatpush1.bf16.msra.mxu0 0
        %2880 = vmatprep.mubr.bf16.mxu0 0
        %2881 = vmatmul.mubr.bf16.gmra.mrb[0].mxu0 %v2840
        %v2882 = vpop.f32.mrb[0].mxu0
        %v2883 = vadd.f32 0.0, %v2882
        %v2884 = vpop.f32.mrb[0].mxu0
        %v2885 = vpop.f32.mrb[0].mxu0
        %v2886 = vadd.f32 0.0, %v2885
        %v2887 = vpop.f32.mrb[0].mxu0
        %2888 = vmatprep.mubr.bf16.mxu0 0
        %2889 = vmatmul.mubr.bf16.gmra.mrb[0].mxu0 %v2843
        %v2890 = vpop.f32.mrb[0].mxu0
        %v2891 = vadd.f32 0.0, %v2890
        %v2892 = vpop.f32.mrb[0].mxu0
        %v2893 = vpop.f32.mrb[0].mxu0
        %v2894 = vpop.f32.mrb[0].mxu0
        %2895 = vdwg.mxu0
        %2899 = vrot.lane.b32.xlu0 %v2883, 96
        %v2900 = vpop.permute.xlu0 %2899
        %2901 = vrot.lane.b32.xlu0 %v2886, 96
        %v2902 = vpop.permute.xlu0 %2901
        %2903 = vrot.lane.b32.xlu0 %v2891, 96
        %v2904 = vpop.permute.xlu0 %2903
        %2908 = vst.msk [vmem:[#allocation3 + $0x18] sm:$0xff] %vm2188, %v2900
        %2909 = vst.msk [vmem:[#allocation3 + $0x20] sm:$0xff] %vm2188, %v2902
        %2910 = vst.msk [vmem:[#allocation3 + $0x28] sm:$0xff] %vm2188, %v2904
        %v2911 = vld [vmem:[#allocation3] sm:$0xff]
        %v2912 = vld [vmem:[#allocation3 + $0x8] sm:$0xff]
        %v2913 = vld [vmem:[#allocation3 + $0x10] sm:$0xff]
        %v2914 = vld [vmem:[#allocation3 + $0x18] sm:$0xff]
        %v2915 = vld [vmem:[#allocation3 + $0x20] sm:$0xff]
        %v2916 = vld [vmem:[#allocation3 + $0x28] sm:$0xff]
        %v2917 = vld [vmem:[%s884] sm:$0xf]
        %v2918 = vld [vmem:[%s884 + $0x4] sm:$0xf]
        %v2919 = vld [vmem:[%s884 + $0x8] sm:$0xf]
        %v2920 = vld [vmem:[%s884 + $0xc] sm:$0xf]
        %v2921 = vld [vmem:[%s884 + $0x10] sm:$0xf]
        %v2922 = vld [vmem:[%s884 + $0x14] sm:$0xf]
        %v2923 = vld [vmem:[%s884 + $0x18] sm:$0xf]
        %v2924 = vld [vmem:[%s884 + $0x1c] sm:$0xf]
        %v2925 = vld [vmem:[%s884 + $0x20] sm:$0xf]
        %v2926 = vld [vmem:[%s884 + $0x24] sm:$0xf]
        %v2927 = vld [vmem:[%s884 + $0x28] sm:$0xf]
        %v2928 = vld [vmem:[%s884 + $0x2c] sm:$0xf]
        %v2929 = vld [vmem:[%s884 + $0x30] sm:$0xf]
        %v2930 = vld [vmem:[%s884 + $0x34] sm:$0xf]
        %v2931 = vld [vmem:[%s884 + $0x38] sm:$0xf]
        %v2932 = vld [vmem:[%s884 + $0x3c] sm:$0xf]
        %v2933 = vld [vmem:[%s739] sm:$0x1]
        %v2934 = vpack.c.bf16 %v2912, %v2911
        %v2935 = vpack.c.bf16 %v2914, %v2913
        %v2936 = vpack.c.bf16 %v2916, %v2915
        %v2938 = vlaneseq
        %v2939 = vshrl.u32 %v2938, 7
        %v2940 = vsub.s32 0, %v2939
        %v2941 = vrot.slane %v2933, %v2940
        %v2959 = vunpack.c.l.b16 %v2917
        %v2960 = vunpack.c.l.b16 %v2918
        %v2961 = vunpack.c.l.b16 %v2919
        %v2962 = vunpack.c.l.b16 %v2920
        %v2963 = vunpack.c.l.b16 %v2921
        %v2964 = vunpack.c.l.b16 %v2922
        %v2965 = vunpack.c.l.b16 %v2923
        %v2966 = vunpack.c.l.b16 %v2924
        %v2967 = vunpack.c.l.b16 %v2925
        %v2968 = vunpack.c.l.b16 %v2926
        %v2969 = vunpack.c.l.b16 %v2927
        %v2970 = vunpack.c.l.b16 %v2928
        %v2971 = vunpack.c.l.b16 %v2929
        %v2972 = vunpack.c.l.b16 %v2930
        %v2973 = vunpack.c.l.b16 %v2931
        %v2974 = vunpack.c.l.b16 %v2932
        %v2975 = vpack.c.b16 %v2960, %v2959
        %v2976 = vpack.c.b16 %v2962, %v2961
        %v2977 = vpack.c.b16 %v2964, %v2963
        %v2978 = vpack.c.b16 %v2966, %v2965
        %v2979 = vpack.c.b16 %v2968, %v2967
        %v2980 = vpack.c.b16 %v2970, %v2969
        %v2981 = vpack.c.b16 %v2972, %v2971
        %v2982 = vpack.c.b16 %v2974, %v2973
        %2991 = vmatprep.subr.bf16.mxu0 0
        %2992 = vmatpush1.bf16.msra.mxu0 %v2975
        %2993 = vmatprep.subr.bf16.mxu0 0
        %2994 = vmatpush1.bf16.msra.mxu0 %v2976
        %2995 = vmatprep.subr.bf16.mxu0 0
        %2996 = vmatpush1.bf16.msra.mxu0 %v2977
        %2997 = vmatprep.subr.bf16.mxu0 0
        %2998 = vmatpush1.bf16.msra.mxu0 %v2978
        %2999 = vmatprep.subr.bf16.mxu0 0
        %3000 = vmatpush1.bf16.msra.mxu0 %v2979
        %3001 = vmatprep.subr.bf16.mxu0 0
        %3002 = vmatpush1.bf16.msra.mxu0 %v2980
        %3003 = vmatprep.subr.bf16.mxu0 0
        %3004 = vmatpush1.bf16.msra.mxu0 %v2981
        %3005 = vmatprep.subr.bf16.mxu0 0
        %3006 = vmatpush1.bf16.msra.mxu0 %v2982
        %3007 = vmatprep.subr.bf16.mxu0 0
        %3008 = vmatpush1.bf16.msra.mxu0 0
        %3009 = vmatprep.subr.bf16.mxu0 0
        %3010 = vmatpush1.bf16.msra.mxu0 0
        %3011 = vmatprep.subr.bf16.mxu0 0
        %3012 = vmatpush1.bf16.msra.mxu0 0
        %3013 = vmatprep.subr.bf16.mxu0 0
        %3014 = vmatpush1.bf16.msra.mxu0 0
        %3015 = vmatprep.subr.bf16.mxu0 0
        %3016 = vmatpush1.bf16.msra.mxu0 0
        %3017 = vmatprep.subr.bf16.mxu0 0
        %3018 = vmatpush1.bf16.msra.mxu0 0
        %3019 = vmatprep.subr.bf16.mxu0 0
        %3020 = vmatpush1.bf16.msra.mxu0 0
        %3021 = vmatprep.subr.bf16.mxu0 0
        %3022 = vmatpush1.bf16.msra.mxu0 0
        %3023 = vmatprep.mubr.bf16.mxu0 0
        %3024 = vmatmul.mubr.bf16.gmra.mrb[0].mxu0 %v2934
        %v3025 = vpop.f32.mrb[0].mxu0
        %v3026 = vadd.f32 %v2941, %v3025
        %v3027 = vpop.f32.mrb[0].mxu0
        %v3028 = vpop.f32.mrb[0].mxu0
        %v3029 = vadd.f32 %v2941, %v3028
        %v3030 = vpop.f32.mrb[0].mxu0
        %3031 = vmatprep.mubr.bf16.mxu0 0
        %3032 = vmatmul.mubr.bf16.gmra.mrb[0].mxu0 %v2935
        %v3033 = vpop.f32.mrb[0].mxu0
        %v3034 = vadd.f32 %v2941, %v3033
        %v3035 = vpop.f32.mrb[0].mxu0
        %v3036 = vpop.f32.mrb[0].mxu0
        %v3037 = vadd.f32 %v2941, %v3036
        %v3038 = vpop.f32.mrb[0].mxu0
        %3039 = vmatprep.mubr.bf16.mxu0 0
        %3040 = vmatmul.mubr.bf16.gmra.mrb[0].mxu0 %v2936
        %v3041 = vpop.f32.mrb[0].mxu0
        %v3042 = vadd.f32 %v2941, %v3041
        %v3043 = vpop.f32.mrb[0].mxu0
        %v3044 = vpop.f32.mrb[0].mxu0
        %v3045 = vadd.f32 %v2941, %v3044
        %v3046 = vpop.f32.mrb[0].mxu0
        %3047 = vdwg.mxu0
        %v3048 = vld [vmem:[%s887] sm:$0x1]
        %v3050 = vlaneseq
        %v3051 = vshrl.u32 %v3050, 7
        %v3052 = vsub.s32 0, %v3051
        %v3053 = vrot.slane %v3048, %v3052
        %v3055 = vmul.f32 %v3053, %v3026
        %v3056 = vmul.f32 %v3053, %v3029
        %v3057 = vmul.f32 %v3053, %v3034
        %v3058 = vmul.f32 %v3053, %v3037
        %v3059 = vmul.f32 %v3053, %v3042
        %v3060 = vmul.f32 %v3053, %v3045
        %v3061 = vadd.f32 %v1065, %v3055
        %v3062 = vadd.f32 %v1066, %v3056
        %v3063 = vadd.f32 %v1067, %v3057
        %v3064 = vadd.f32 %v1068, %v3058
        %v3065 = vadd.f32 %v1069, %v3059
        %v3066 = vadd.f32 %v1070, %v3060
        %v3067 = vld [vmem:[%s890] sm:$0x1]
        %v3068 = vld [vmem:[%s893] sm:$0x1]
        %3069 = vadd.xlane.f32.xlu0 %v3061
        %v3070 = vpop.xlane.xlu0 %3069
        %3071 = vadd.xlane.f32.xlu0 %v3062
        %v3072 = vpop.xlane.xlu0 %3071
        %3073 = vadd.xlane.f32.xlu0 %v3063
        %v3074 = vpop.xlane.xlu0 %3073
        %3075 = vadd.xlane.f32.xlu0 %v3064
        %v3076 = vpop.xlane.xlu0 %3075
        %3077 = vadd.xlane.f32.xlu0 %v3065
        %v3078 = vpop.xlane.xlu0 %3077
        %3079 = vadd.xlane.f32.xlu0 %v3066
        %v3080 = vpop.xlane.xlu0 %3079
        %v3081 = vmul.f32 %v3070, %v1085
        %v3082 = vmul.f32 %v3072, %v1085
        %v3083 = vmul.f32 %v3074, %v1085
        %v3084 = vmul.f32 %v3076, %v1085
        %v3085 = vmul.f32 %v3078, %v1085
        %v3086 = vmul.f32 %v3080, %v1085
        %v3087 = vsub.f32 %v3061, %v3081
        %v3088 = vsub.f32 %v3062, %v3082
        %v3089 = vsub.f32 %v3063, %v3083
        %v3090 = vsub.f32 %v3064, %v3084
        %v3091 = vsub.f32 %v3065, %v3085
        %v3092 = vsub.f32 %v3066, %v3086
        %v3093 = vmul.f32 %v3087, %v3087
        %v3094 = vmul.f32 %v3088, %v3088
        %v3095 = vmul.f32 %v3089, %v3089
        %v3096 = vmul.f32 %v3090, %v3090
        %v3097 = vmul.f32 %v3091, %v3091
        %v3098 = vmul.f32 %v3092, %v3092
        %3099 = vadd.xlane.f32.xlu0 %v3093
        %v3100 = vpop.xlane.xlu0 %3099
        %3101 = vadd.xlane.f32.xlu0 %v3094
        %v3102 = vpop.xlane.xlu0 %3101
        %3103 = vadd.xlane.f32.xlu0 %v3095
        %v3104 = vpop.xlane.xlu0 %3103
        %3105 = vadd.xlane.f32.xlu0 %v3096
        %v3106 = vpop.xlane.xlu0 %3105
        %3107 = vadd.xlane.f32.xlu0 %v3097
        %v3108 = vpop.xlane.xlu0 %3107
        %3109 = vadd.xlane.f32.xlu0 %v3098
        %v3110 = vpop.xlane.xlu0 %3109
        %v3111 = vmul.f32 %v3100, %v1085
        %v3112 = vmul.f32 %v3102, %v1085
        %v3113 = vmul.f32 %v3104, %v1085
        %v3114 = vmul.f32 %v3106, %v1085
        %v3115 = vmul.f32 %v3108, %v1085
        %v3116 = vmul.f32 %v3110, %v1085
        %v3117 = vadd.f32 %v3111, 1e-06
        %v3118 = vadd.f32 %v3112, 1e-06
        %v3119 = vadd.f32 %v3113, 1e-06
        %v3120 = vadd.f32 %v3114, 1e-06
        %v3121 = vadd.f32 %v3115, 1e-06
        %v3122 = vadd.f32 %v3116, 1e-06
        %v3123 = vrsqrt.pop %v3117
        %v3124 = vrsqrt.pop %v3118
        %v3125 = vrsqrt.pop %v3119
        %v3126 = vrsqrt.pop %v3120
        %v3127 = vrsqrt.pop %v3121
        %v3128 = vrsqrt.pop %v3122
        %v3129 = vmul.f32 %v3087, %v3123
        %v3130 = vmul.f32 %v3088, %v3124
        %v3131 = vmul.f32 %v3089, %v3125
        %v3132 = vmul.f32 %v3090, %v3126
        %v3133 = vmul.f32 %v3091, %v3127
        %v3134 = vmul.f32 %v3092, %v3128
        %v3136 = vlaneseq
        %v3137 = vshrl.u32 %v3136, 7
        %v3138 = vsub.s32 0, %v3137
        %v3139 = vrot.slane %v3067, %v3138
        %v3141 = vmul.f32 %v3129, %v3139
        %v3142 = vmul.f32 %v3130, %v3139
        %v3143 = vmul.f32 %v3131, %v3139
        %v3144 = vmul.f32 %v3132, %v3139
        %v3145 = vmul.f32 %v3133, %v3139
        %v3146 = vmul.f32 %v3134, %v3139
        %v3148 = vlaneseq
        %v3149 = vshrl.u32 %v3148, 7
        %v3150 = vsub.s32 0, %v3149
        %v3151 = vrot.slane %v3068, %v3150
        %v3153 = vadd.f32 %v3141, %v3151
        %v3154 = vadd.f32 %v3142, %v3151
        %v3155 = vadd.f32 %v3143, %v3151
        %v3156 = vadd.f32 %v3144, %v3151
        %v3157 = vadd.f32 %v3145, %v3151
        %v3158 = vadd.f32 %v3146, %v3151
        %v3159 = vld [vmem:[%s898] sm:$0xff]
        %v3160 = vld [vmem:[%s898 + $0x8] sm:$0xff]
        %v3161 = vld [vmem:[%s898 + $0x10] sm:$0xff]
        %v3162 = vld [vmem:[%s898 + $0x18] sm:$0xff]
        %v3163 = vld [vmem:[%s898 + $0x20] sm:$0xff]
        %v3164 = vld [vmem:[%s898 + $0x28] sm:$0xff]
        %v3165 = vld [vmem:[%s898 + $0x30] sm:$0xff]
        %v3166 = vld [vmem:[%s898 + $0x38] sm:$0xff]
        %v3167 = vld [vmem:[%s898 + $0x40] sm:$0xff]
        %v3168 = vld [vmem:[%s898 + $0x48] sm:$0xff]
        %v3169 = vld [vmem:[%s898 + $0x50] sm:$0xff]
        %v3170 = vld [vmem:[%s898 + $0x58] sm:$0xff]
        %v3171 = vld [vmem:[%s898 + $0x60] sm:$0xff]
        %v3172 = vld [vmem:[%s898 + $0x68] sm:$0xff]
        %v3173 = vld [vmem:[%s898 + $0x70] sm:$0xff]
        %v3174 = vld [vmem:[%s898 + $0x78] sm:$0xff]
        %v3175 = vld [vmem:[%s898 + $0x80] sm:$0xff]
        %v3176 = vld [vmem:[%s898 + $0x88] sm:$0xff]
        %v3177 = vld [vmem:[%s898 + $0x90] sm:$0xff]
        %v3178 = vld [vmem:[%s898 + $0x98] sm:$0xff]
        %v3179 = vld [vmem:[%s898 + $0xa0] sm:$0xff]
        %v3180 = vld [vmem:[%s898 + $0xa8] sm:$0xff]
        %v3181 = vld [vmem:[%s898 + $0xb0] sm:$0xff]
        %v3182 = vld [vmem:[%s898 + $0xb8] sm:$0xff]
        %v3183 = vld [vmem:[%s898 + $0xc0] sm:$0xff]
        %v3184 = vld [vmem:[%s898 + $0xc8] sm:$0xff]
        %v3185 = vld [vmem:[%s898 + $0xd0] sm:$0xff]
        %v3186 = vld [vmem:[%s898 + $0xd8] sm:$0xff]
        %v3187 = vld [vmem:[%s898 + $0xe0] sm:$0xff]
        %v3188 = vld [vmem:[%s898 + $0xe8] sm:$0xff]
        %v3189 = vld [vmem:[%s898 + $0xf0] sm:$0xff]
        %v3190 = vld [vmem:[%s898 + $0xf8] sm:$0xff]
        %v3191 = vld [vmem:[%s902] sm:$0xf]
        %v3192 = vpack.c.bf16 %v3154, %v3153
        %v3193 = vpack.c.bf16 %v3156, %v3155
        %v3194 = vpack.c.bf16 %v3158, %v3157
        %v3196 = vlaneseq
        %v3197 = vshrl.u32 %v3196, 7
        %v3198 = vsub.s32 0, %v3197
        %v3199 = vrot.slane %v3191, %v3198
        %v3200 = vlaneseq
        %v3201 = vshrl.u32 %v3200, 7
        %v3202 = vsub.s32 1, %v3201
        %v3203 = vrot.slane %v3191, %v3202
        %v3204 = vlaneseq
        %v3205 = vshrl.u32 %v3204, 7
        %v3206 = vsub.s32 2, %v3205
        %v3207 = vrot.slane %v3191, %v3206
        %v3208 = vlaneseq
        %v3209 = vshrl.u32 %v3208, 7
        %v3210 = vsub.s32 3, %v3209
        %v3211 = vrot.slane %v3191, %v3210
        %v3248 = vunpack.c.l.b16 %v3159
        %v3249 = vunpack.c.h.b16 %v3159
        %v3250 = vunpack.c.l.b16 %v3160
        %v3251 = vunpack.c.h.b16 %v3160
        %v3252 = vunpack.c.l.b16 %v3161
        %v3253 = vunpack.c.h.b16 %v3161
        %v3254 = vunpack.c.l.b16 %v3162
        %v3255 = vunpack.c.h.b16 %v3162
        %v3256 = vunpack.c.l.b16 %v3163
        %v3257 = vunpack.c.h.b16 %v3163
        %v3258 = vunpack.c.l.b16 %v3164
        %v3259 = vunpack.c.h.b16 %v3164
        %v3260 = vunpack.c.l.b16 %v3165
        %v3261 = vunpack.c.h.b16 %v3165
        %v3262 = vunpack.c.l.b16 %v3166
        %v3263 = vunpack.c.h.b16 %v3166
        %v3264 = vunpack.c.l.b16 %v3167
        %v3265 = vunpack.c.h.b16 %v3167
        %v3266 = vunpack.c.l.b16 %v3168
        %v3267 = vunpack.c.h.b16 %v3168
        %v3268 = vunpack.c.l.b16 %v3169
        %v3269 = vunpack.c.h.b16 %v3169
        %v3270 = vunpack.c.l.b16 %v3170
        %v3271 = vunpack.c.h.b16 %v3170
        %v3272 = vunpack.c.l.b16 %v3171
        %v3273 = vunpack.c.h.b16 %v3171
        %v3274 = vunpack.c.l.b16 %v3172
        %v3275 = vunpack.c.h.b16 %v3172
        %v3276 = vunpack.c.l.b16 %v3173
        %v3277 = vunpack.c.h.b16 %v3173
        %v3278 = vunpack.c.l.b16 %v3174
        %v3279 = vunpack.c.h.b16 %v3174
        %v3280 = vunpack.c.l.b16 %v3175
        %v3281 = vunpack.c.h.b16 %v3175
        %v3282 = vunpack.c.l.b16 %v3176
        %v3283 = vunpack.c.h.b16 %v3176
        %v3284 = vunpack.c.l.b16 %v3177
        %v3285 = vunpack.c.h.b16 %v3177
        %v3286 = vunpack.c.l.b16 %v3178
        %v3287 = vunpack.c.h.b16 %v3178
        %v3288 = vunpack.c.l.b16 %v3179
        %v3289 = vunpack.c.h.b16 %v3179
        %v3290 = vunpack.c.l.b16 %v3180
        %v3291 = vunpack.c.h.b16 %v3180
        %v3292 = vunpack.c.l.b16 %v3181
        %v3293 = vunpack.c.h.b16 %v3181
        %v3294 = vunpack.c.l.b16 %v3182
        %v3295 = vunpack.c.h.b16 %v3182
        %v3296 = vunpack.c.l.b16 %v3183
        %v3297 = vunpack.c.h.b16 %v3183
        %v3298 = vunpack.c.l.b16 %v3184
        %v3299 = vunpack.c.h.b16 %v3184
        %v3300 = vunpack.c.l.b16 %v3185
        %v3301 = vunpack.c.h.b16 %v3185
        %v3302 = vunpack.c.l.b16 %v3186
        %v3303 = vunpack.c.h.b16 %v3186
        %v3304 = vunpack.c.l.b16 %v3187
        %v3305 = vunpack.c.h.b16 %v3187
        %v3306 = vunpack.c.l.b16 %v3188
        %v3307 = vunpack.c.h.b16 %v3188
        %v3308 = vunpack.c.l.b16 %v3189
        %v3309 = vunpack.c.h.b16 %v3189
        %v3310 = vunpack.c.l.b16 %v3190
        %v3311 = vunpack.c.h.b16 %v3190
        %v3312 = vpack.c.b16 %v3252, %v3248
        %v3313 = vpack.c.b16 %v3253, %v3249
        %v3314 = vpack.c.b16 %v3254, %v3250
        %v3315 = vpack.c.b16 %v3255, %v3251
        %v3316 = vpack.c.b16 %v3260, %v3256
        %v3317 = vpack.c.b16 %v3261, %v3257
        %v3318 = vpack.c.b16 %v3262, %v3258
        %v3319 = vpack.c.b16 %v3263, %v3259
        %v3320 = vpack.c.b16 %v3268, %v3264
        %v3321 = vpack.c.b16 %v3269, %v3265
        %v3322 = vpack.c.b16 %v3270, %v3266
        %v3323 = vpack.c.b16 %v3271, %v3267
        %v3324 = vpack.c.b16 %v3276, %v3272
        %v3325 = vpack.c.b16 %v3277, %v3273
        %v3326 = vpack.c.b16 %v3278, %v3274
        %v3327 = vpack.c.b16 %v3279, %v3275
        %v3328 = vpack.c.b16 %v3284, %v3280
        %v3329 = vpack.c.b16 %v3285, %v3281
        %v3330 = vpack.c.b16 %v3286, %v3282
        %v3331 = vpack.c.b16 %v3287, %v3283
        %v3332 = vpack.c.b16 %v3292, %v3288
        %v3333 = vpack.c.b16 %v3293, %v3289
        %v3334 = vpack.c.b16 %v3294, %v3290
        %v3335 = vpack.c.b16 %v3295, %v3291
        %v3336 = vpack.c.b16 %v3300, %v3296
        %v3337 = vpack.c.b16 %v3301, %v3297
        %v3338 = vpack.c.b16 %v3302, %v3298
        %v3339 = vpack.c.b16 %v3303, %v3299
        %v3340 = vpack.c.b16 %v3308, %v3304
        %v3341 = vpack.c.b16 %v3309, %v3305
        %v3342 = vpack.c.b16 %v3310, %v3306
        %v3343 = vpack.c.b16 %v3311, %v3307
        %3376 = vmatprep.subr.bf16.mxu0 %v3313
        %3377 = vmatpush1.bf16.msra.mxu0 %v3312
        %3378 = vmatprep.subr.bf16.mxu0 %v3317
        %3379 = vmatpush1.bf16.msra.mxu0 %v3316
        %3380 = vmatprep.subr.bf16.mxu0 %v3321
        %3381 = vmatpush1.bf16.msra.mxu0 %v3320
        %3382 = vmatprep.subr.bf16.mxu0 %v3325
        %3383 = vmatpush1.bf16.msra.mxu0 %v3324
        %3384 = vmatprep.subr.bf16.mxu0 %v3329
        %3385 = vmatpush1.bf16.msra.mxu0 %v3328
        %3386 = vmatprep.subr.bf16.mxu0 %v3333
        %3387 = vmatpush1.bf16.msra.mxu0 %v3332
        %3388 = vmatprep.subr.bf16.mxu0 %v3337
        %3389 = vmatpush1.bf16.msra.mxu0 %v3336
        %3390 = vmatprep.subr.bf16.mxu0 %v3341
        %3391 = vmatpush1.bf16.msra.mxu0 %v3340
        %3392 = vmatprep.subr.bf16.mxu0 0
        %3393 = vmatpush1.bf16.msra.mxu0 0
        %3394 = vmatprep.subr.bf16.mxu0 0
        %3395 = vmatpush1.bf16.msra.mxu0 0
        %3396 = vmatprep.subr.bf16.mxu0 0
        %3397 = vmatpush1.bf16.msra.mxu0 0
        %3398 = vmatprep.subr.bf16.mxu0 0
        %3399 = vmatpush1.bf16.msra.mxu0 0
        %3400 = vmatprep.subr.bf16.mxu0 0
        %3401 = vmatpush1.bf16.msra.mxu0 0
        %3402 = vmatprep.subr.bf16.mxu0 0
        %3403 = vmatpush1.bf16.msra.mxu0 0
        %3404 = vmatprep.subr.bf16.mxu0 0
        %3405 = vmatpush1.bf16.msra.mxu0 0
        %3406 = vmatprep.subr.bf16.mxu0 0
        %3407 = vmatpush1.bf16.msra.mxu0 0
        %3408 = vmatprep.mubr.bf16.mxu0 0
        %3409 = vmatmul.mubr.bf16.gmra.mrb[0].mxu0 %v3192
        %v3410 = vpop.f32.mrb[0].mxu0
        %v3411 = vadd.f32 %v3199, %v3410
        %v3412 = vpop.f32.mrb[0].mxu0
        %v3413 = vadd.f32 %v3203, %v3412
        %v3414 = vpop.f32.mrb[0].mxu0
        %v3415 = vadd.f32 %v3199, %v3414
        %v3416 = vpop.f32.mrb[0].mxu0
        %v3417 = vadd.f32 %v3203, %v3416
        %3418 = vmatprep.mubr.bf16.mxu0 0
        %3419 = vmatmul.mubr.bf16.gmra.mrb[0].mxu0 %v3193
        %v3420 = vpop.f32.mrb[0].mxu0
        %v3421 = vadd.f32 %v3199, %v3420
        %v3422 = vpop.f32.mrb[0].mxu0
        %v3423 = vadd.f32 %v3203, %v3422
        %v3424 = vpop.f32.mrb[0].mxu0
        %v3425 = vadd.f32 %v3199, %v3424
        %v3426 = vpop.f32.mrb[0].mxu0
        %v3427 = vadd.f32 %v3203, %v3426
        %3428 = vmatprep.mubr.bf16.mxu0 0
        %3429 = vmatmul.mubr.bf16.gmra.mrb[0].mxu0 %v3194
        %v3430 = vpop.f32.mrb[0].mxu0
        %v3431 = vadd.f32 %v3199, %v3430
        %v3432 = vpop.f32.mrb[0].mxu0
        %v3433 = vadd.f32 %v3203, %v3432
        %v3434 = vpop.f32.mrb[0].mxu0
        %v3435 = vadd.f32 %v3199, %v3434
        %v3436 = vpop.f32.mrb[0].mxu0
        %v3437 = vadd.f32 %v3203, %v3436
        %3438 = vdwg.mxu0
        %3439 = vmatprep.subr.bf16.mxu0 %v3315
        %3440 = vmatpush1.bf16.msra.mxu0 %v3314
        %3441 = vmatprep.subr.bf16.mxu0 %v3319
        %3442 = vmatpush1.bf16.msra.mxu0 %v3318
        %3443 = vmatprep.subr.bf16.mxu0 %v3323
        %3444 = vmatpush1.bf16.msra.mxu0 %v3322
        %3445 = vmatprep.subr.bf16.mxu0 %v3327
        %3446 = vmatpush1.bf16.msra.mxu0 %v3326
        %3447 = vmatprep.subr.bf16.mxu0 %v3331
        %3448 = vmatpush1.bf16.msra.mxu0 %v3330
        %3449 = vmatprep.subr.bf16.mxu0 %v3335
        %3450 = vmatpush1.bf16.msra.mxu0 %v3334
        %3451 = vmatprep.subr.bf16.mxu0 %v3339
        %3452 = vmatpush1.bf16.msra.mxu0 %v3338
        %3453 = vmatprep.subr.bf16.mxu0 %v3343
        %3454 = vmatpush1.bf16.msra.mxu0 %v3342
        %3455 = vmatprep.subr.bf16.mxu0 0
        %3456 = vmatpush1.bf16.msra.mxu0 0
        %3457 = vmatprep.subr.bf16.mxu0 0
        %3458 = vmatpush1.bf16.msra.mxu0 0
        %3459 = vmatprep.subr.bf16.mxu0 0
        %3460 = vmatpush1.bf16.msra.mxu0 0
        %3461 = vmatprep.subr.bf16.mxu0 0
        %3462 = vmatpush1.bf16.msra.mxu0 0
        %3463 = vmatprep.subr.bf16.mxu0 0
        %3464 = vmatpush1.bf16.msra.mxu0 0
        %3465 = vmatprep.subr.bf16.mxu0 0
        %3466 = vmatpush1.bf16.msra.mxu0 0
        %3467 = vmatprep.subr.bf16.mxu0 0
        %3468 = vmatpush1.bf16.msra.mxu0 0
        %3469 = vmatprep.subr.bf16.mxu0 0
        %3470 = vmatpush1.bf16.msra.mxu0 0
        %3471 = vmatprep.mubr.bf16.mxu0 0
        %3472 = vmatmul.mubr.bf16.gmra.mrb[0].mxu0 %v3192
        %v3473 = vpop.f32.mrb[0].mxu0
        %v3474 = vadd.f32 %v3207, %v3473
        %v3475 = vpop.f32.mrb[0].mxu0
        %v3476 = vadd.f32 %v3211, %v3475
        %v3477 = vpop.f32.mrb[0].mxu0
        %v3478 = vadd.f32 %v3207, %v3477
        %v3479 = vpop.f32.mrb[0].mxu0
        %v3480 = vadd.f32 %v3211, %v3479
        %3481 = vmatprep.mubr.bf16.mxu0 0
        %3482 = vmatmul.mubr.bf16.gmra.mrb[0].mxu0 %v3193
        %v3483 = vpop.f32.mrb[0].mxu0
        %v3484 = vadd.f32 %v3207, %v3483
        %v3485 = vpop.f32.mrb[0].mxu0
        %v3486 = vadd.f32 %v3211, %v3485
        %v3487 = vpop.f32.mrb[0].mxu0
        %v3488 = vadd.f32 %v3207, %v3487
        %v3489 = vpop.f32.mrb[0].mxu0
        %v3490 = vadd.f32 %v3211, %v3489
        %3491 = vmatprep.mubr.bf16.mxu0 0
        %3492 = vmatmul.mubr.bf16.gmra.mrb[0].mxu0 %v3194
        %v3493 = vpop.f32.mrb[0].mxu0
        %v3494 = vadd.f32 %v3207, %v3493
        %v3495 = vpop.f32.mrb[0].mxu0
        %v3496 = vadd.f32 %v3211, %v3495
        %v3497 = vpop.f32.mrb[0].mxu0
        %v3498 = vadd.f32 %v3207, %v3497
        %v3499 = vpop.f32.mrb[0].mxu0
        %v3500 = vadd.f32 %v3211, %v3499
        %3501 = vdwg.mxu0
        %v3502 = vsub.f32 0.0, %v3411
        %v3503 = vsub.f32 0.0, %v3413
        %v3504 = vsub.f32 0.0, %v3415
        %v3505 = vsub.f32 0.0, %v3417
        %v3506 = vsub.f32 0.0, %v3421
        %v3507 = vsub.f32 0.0, %v3423
        %v3508 = vsub.f32 0.0, %v3425
        %v3509 = vsub.f32 0.0, %v3427
        %v3510 = vsub.f32 0.0, %v3431
        %v3511 = vsub.f32 0.0, %v3433
        %v3512 = vsub.f32 0.0, %v3435
        %v3513 = vsub.f32 0.0, %v3437
        %v3514 = vmul.f32 %v3502, 1.442695
        %v3515 = vpow.pop %v3514
        %v3516 = vmul.f32 %v3503, 1.442695
        %v3517 = vpow.pop %v3516
        %v3518 = vmul.f32 %v3504, 1.442695
        %v3519 = vpow.pop %v3518
        %v3520 = vmul.f32 %v3505, 1.442695
        %v3521 = vpow.pop %v3520
        %v3522 = vmul.f32 %v3506, 1.442695
        %v3523 = vpow.pop %v3522
        %v3524 = vmul.f32 %v3507, 1.442695
        %v3525 = vpow.pop %v3524
        %v3526 = vmul.f32 %v3508, 1.442695
        %v3527 = vpow.pop %v3526
        %v3528 = vmul.f32 %v3509, 1.442695
        %v3529 = vpow.pop %v3528
        %v3530 = vmul.f32 %v3510, 1.442695
        %v3531 = vpow.pop %v3530
        %v3532 = vmul.f32 %v3511, 1.442695
        %v3533 = vpow.pop %v3532
        %v3534 = vmul.f32 %v3512, 1.442695
        %v3535 = vpow.pop %v3534
        %v3536 = vmul.f32 %v3513, 1.442695
        %v3537 = vpow.pop %v3536
        %v3538 = vadd.f32 %v3515, 1.0
        %v3539 = vadd.f32 %v3517, 1.0
        %v3540 = vadd.f32 %v3519, 1.0
        %v3541 = vadd.f32 %v3521, 1.0
        %v3542 = vadd.f32 %v3523, 1.0
        %v3543 = vadd.f32 %v3525, 1.0
        %v3544 = vadd.f32 %v3527, 1.0
        %v3545 = vadd.f32 %v3529, 1.0
        %v3546 = vadd.f32 %v3531, 1.0
        %v3547 = vadd.f32 %v3533, 1.0
        %v3548 = vadd.f32 %v3535, 1.0
        %v3549 = vadd.f32 %v3537, 1.0
        %v3550 = vrcp.pop %v3538
        %v3551 = vmul.f32 %v3411, %v3550
        %v3552 = vrcp.pop %v3539
        %v3553 = vmul.f32 %v3413, %v3552
        %v3554 = vrcp.pop %v3540
        %v3555 = vmul.f32 %v3415, %v3554
        %v3556 = vrcp.pop %v3541
        %v3557 = vmul.f32 %v3417, %v3556
        %v3558 = vrcp.pop %v3542
        %v3559 = vmul.f32 %v3421, %v3558
        %v3560 = vrcp.pop %v3543
        %v3561 = vmul.f32 %v3423, %v3560
        %v3562 = vrcp.pop %v3544
        %v3563 = vmul.f32 %v3425, %v3562
        %v3564 = vrcp.pop %v3545
        %v3565 = vmul.f32 %v3427, %v3564
        %v3566 = vrcp.pop %v3546
        %v3567 = vmul.f32 %v3431, %v3566
        %v3568 = vrcp.pop %v3547
        %v3569 = vmul.f32 %v3433, %v3568
        %v3570 = vrcp.pop %v3548
        %v3571 = vmul.f32 %v3435, %v3570
        %v3572 = vrcp.pop %v3549
        %v3573 = vmul.f32 %v3437, %v3572
        %v3574 = vmul.f32 %v3551, %v3474
        %v3575 = vmul.f32 %v3553, %v3476
        %v3576 = vmul.f32 %v3555, %v3478
        %v3577 = vmul.f32 %v3557, %v3480
        %v3578 = vmul.f32 %v3559, %v3484
        %v3579 = vmul.f32 %v3561, %v3486
        %v3580 = vmul.f32 %v3563, %v3488
        %v3581 = vmul.f32 %v3565, %v3490
        %v3582 = vmul.f32 %v3567, %v3494
        %v3583 = vmul.f32 %v3569, %v3496
        %v3584 = vmul.f32 %v3571, %v3498
        %v3585 = vmul.f32 %v3573, %v3500
        %v3586 = vld [vmem:[%s748] sm:$0xf]
        %v3587 = vld [vmem:[%s748 + $0x4] sm:$0xf]
        %v3588 = vld [vmem:[%s748 + $0x8] sm:$0xf]
        %v3589 = vld [vmem:[%s748 + $0xc] sm:$0xf]
        %v3590 = vld [vmem:[%s748 + $0x10] sm:$0xf]
        %v3591 = vld [vmem:[%s748 + $0x14] sm:$0xf]
        %v3592 = vld [vmem:[%s748 + $0x18] sm:$0xf]
        %v3593 = vld [vmem:[%s748 + $0x1c] sm:$0xf]
        %v3594 = vld [vmem:[%s748 + $0x20] sm:$0xf]
        %v3595 = vld [vmem:[%s748 + $0x24] sm:$0xf]
        %v3596 = vld [vmem:[%s748 + $0x28] sm:$0xf]
        %v3597 = vld [vmem:[%s748 + $0x2c] sm:$0xf]
        %v3598 = vld [vmem:[%s748 + $0x30] sm:$0xf]
        %v3599 = vld [vmem:[%s748 + $0x34] sm:$0xf]
        %v3600 = vld [vmem:[%s748 + $0x38] sm:$0xf]
        %v3601 = vld [vmem:[%s748 + $0x3c] sm:$0xf]
        %v3602 = vld [vmem:[%s748 + $0x40] sm:$0xf]
        %v3603 = vld [vmem:[%s748 + $0x44] sm:$0xf]
        %v3604 = vld [vmem:[%s748 + $0x48] sm:$0xf]
        %v3605 = vld [vmem:[%s748 + $0x4c] sm:$0xf]
        %v3606 = vld [vmem:[%s748 + $0x50] sm:$0xf]
        %v3607 = vld [vmem:[%s748 + $0x54] sm:$0xf]
        %v3608 = vld [vmem:[%s748 + $0x58] sm:$0xf]
        %v3609 = vld [vmem:[%s748 + $0x5c] sm:$0xf]
        %v3610 = vld [vmem:[%s748 + $0x60] sm:$0xf]
        %v3611 = vld [vmem:[%s748 + $0x64] sm:$0xf]
        %v3612 = vld [vmem:[%s748 + $0x68] sm:$0xf]
        %v3613 = vld [vmem:[%s748 + $0x6c] sm:$0xf]
        %v3614 = vld [vmem:[%s748 + $0x70] sm:$0xf]
        %v3615 = vld [vmem:[%s748 + $0x74] sm:$0xf]
        %v3616 = vld [vmem:[%s748 + $0x78] sm:$0xf]
        %v3617 = vld [vmem:[%s748 + $0x7c] sm:$0xf]
        %v3618 = vld [vmem:[%s756] sm:$0x1]
        %v3619 = vpack.c.bf16 %v3576, %v3574
        %v3620 = vpack.c.bf16 %v3577, %v3575
        %v3621 = vpack.c.bf16 %v3580, %v3578
        %v3622 = vpack.c.bf16 %v3581, %v3579
        %v3623 = vpack.c.bf16 %v3584, %v3582
        %v3624 = vpack.c.bf16 %v3585, %v3583
        %v3626 = vlaneseq
        %v3627 = vshrl.u32 %v3626, 7
        %v3628 = vsub.s32 0, %v3627
        %v3629 = vrot.slane %v3618, %v3628
        %v3663 = vunpack.c.l.b16 %v3586
        %v3664 = vunpack.c.l.b16 %v3587
        %v3665 = vunpack.c.l.b16 %v3588
        %v3666 = vunpack.c.l.b16 %v3589
        %v3667 = vunpack.c.l.b16 %v3590
        %v3668 = vunpack.c.l.b16 %v3591
        %v3669 = vunpack.c.l.b16 %v3592
        %v3670 = vunpack.c.l.b16 %v3593
        %v3671 = vunpack.c.l.b16 %v3594
        %v3672 = vunpack.c.l.b16 %v3595
        %v3673 = vunpack.c.l.b16 %v3596
        %v3674 = vunpack.c.l.b16 %v3597
        %v3675 = vunpack.c.l.b16 %v3598
        %v3676 = vunpack.c.l.b16 %v3599
        %v3677 = vunpack.c.l.b16 %v3600
        %v3678 = vunpack.c.l.b16 %v3601
        %v3679 = vunpack.c.l.b16 %v3602
        %v3680 = vunpack.c.l.b16 %v3603
        %v3681 = vunpack.c.l.b16 %v3604
        %v3682 = vunpack.c.l.b16 %v3605
        %v3683 = vunpack.c.l.b16 %v3606
        %v3684 = vunpack.c.l.b16 %v3607
        %v3685 = vunpack.c.l.b16 %v3608
        %v3686 = vunpack.c.l.b16 %v3609
        %v3687 = vunpack.c.l.b16 %v3610
        %v3688 = vunpack.c.l.b16 %v3611
        %v3689 = vunpack.c.l.b16 %v3612
        %v3690 = vunpack.c.l.b16 %v3613
        %v3691 = vunpack.c.l.b16 %v3614
        %v3692 = vunpack.c.l.b16 %v3615
        %v3693 = vunpack.c.l.b16 %v3616
        %v3694 = vunpack.c.l.b16 %v3617
        %v3695 = vpack.c.b16 %v3664, %v3663
        %v3696 = vpack.c.b16 %v3666, %v3665
        %v3697 = vpack.c.b16 %v3668, %v3667
        %v3698 = vpack.c.b16 %v3670, %v3669
        %v3699 = vpack.c.b16 %v3672, %v3671
        %v3700 = vpack.c.b16 %v3674, %v3673
        %v3701 = vpack.c.b16 %v3676, %v3675
        %v3702 = vpack.c.b16 %v3678, %v3677
        %v3703 = vpack.c.b16 %v3680, %v3679
        %v3704 = vpack.c.b16 %v3682, %v3681
        %v3705 = vpack.c.b16 %v3684, %v3683
        %v3706 = vpack.c.b16 %v3686, %v3685
        %v3707 = vpack.c.b16 %v3688, %v3687
        %v3708 = vpack.c.b16 %v3690, %v3689
        %v3709 = vpack.c.b16 %v3692, %v3691
        %v3710 = vpack.c.b16 %v3694, %v3693
        %3727 = vmatprep.subr.bf16.mxu0 0
        %3728 = vmatpush1.bf16.msra.mxu0 %v3695
        %3729 = vmatprep.subr.bf16.mxu0 0
        %3730 = vmatpush1.bf16.msra.mxu0 %v3696
        %3731 = vmatprep.subr.bf16.mxu0 0
        %3732 = vmatpush1.bf16.msra.mxu0 %v3697
        %3733 = vmatprep.subr.bf16.mxu0 0
        %3734 = vmatpush1.bf16.msra.mxu0 %v3698
        %3735 = vmatprep.subr.bf16.mxu0 0
        %3736 = vmatpush1.bf16.msra.mxu0 %v3699
        %3737 = vmatprep.subr.bf16.mxu0 0
        %3738 = vmatpush1.bf16.msra.mxu0 %v3700
        %3739 = vmatprep.subr.bf16.mxu0 0
        %3740 = vmatpush1.bf16.msra.mxu0 %v3701
        %3741 = vmatprep.subr.bf16.mxu0 0
        %3742 = vmatpush1.bf16.msra.mxu0 %v3702
        %3743 = vmatprep.subr.bf16.mxu0 0
        %3744 = vmatpush1.bf16.msra.mxu0 %v3703
        %3745 = vmatprep.subr.bf16.mxu0 0
        %3746 = vmatpush1.bf16.msra.mxu0 %v3704
        %3747 = vmatprep.subr.bf16.mxu0 0
        %3748 = vmatpush1.bf16.msra.mxu0 %v3705
        %3749 = vmatprep.subr.bf16.mxu0 0
        %3750 = vmatpush1.bf16.msra.mxu0 %v3706
        %3751 = vmatprep.subr.bf16.mxu0 0
        %3752 = vmatpush1.bf16.msra.mxu0 %v3707
        %3753 = vmatprep.subr.bf16.mxu0 0
        %3754 = vmatpush1.bf16.msra.mxu0 %v3708
        %3755 = vmatprep.subr.bf16.mxu0 0
        %3756 = vmatpush1.bf16.msra.mxu0 %v3709
        %3757 = vmatprep.subr.bf16.mxu0 0
        %3758 = vmatpush1.bf16.msra.mxu0 %v3710
        %3759 = vmatprep.mubr.bf16.mxu0 %v3620
        %3760 = vmatmul.mubr.bf16.gmra.mrb[0].mxu0 %v3619
        %v3761 = vpop.f32.mrb[0].mxu0
        %v3762 = vadd.f32 %v3629, %v3761
        %v3763 = vpop.f32.mrb[0].mxu0
        %v3764 = vpop.f32.mrb[0].mxu0
        %v3765 = vadd.f32 %v3629, %v3764
        %v3766 = vpop.f32.mrb[0].mxu0
        %3767 = vmatprep.mubr.bf16.mxu0 %v3622
        %3768 = vmatmul.mubr.bf16.gmra.mrb[0].mxu0 %v3621
        %v3769 = vpop.f32.mrb[0].mxu0
        %v3770 = vadd.f32 %v3629, %v3769
        %v3771 = vpop.f32.mrb[0].mxu0
        %v3772 = vpop.f32.mrb[0].mxu0
        %v3773 = vadd.f32 %v3629, %v3772
        %v3774 = vpop.f32.mrb[0].mxu0
        %3775 = vmatprep.mubr.bf16.mxu0 %v3624
        %3776 = vmatmul.mubr.bf16.gmra.mrb[0].mxu0 %v3623
        %v3777 = vpop.f32.mrb[0].mxu0
        %v3778 = vadd.f32 %v3629, %v3777
        %v3779 = vpop.f32.mrb[0].mxu0
        %v3780 = vpop.f32.mrb[0].mxu0
        %v3781 = vadd.f32 %v3629, %v3780
        %v3782 = vpop.f32.mrb[0].mxu0
        %3783 = vdwg.mxu0
        %v3784 = vld [vmem:[%s764] sm:$0x1]
        %v3786 = vlaneseq
        %v3787 = vshrl.u32 %v3786, 7
        %v3788 = vsub.s32 0, %v3787
        %v3789 = vrot.slane %v3784, %v3788
        %v3791 = vmul.f32 %v3789, %v3762
        %v3792 = vmul.f32 %v3789, %v3765
        %v3793 = vmul.f32 %v3789, %v3770
        %v3794 = vmul.f32 %v3789, %v3773
        %v3795 = vmul.f32 %v3789, %v3778
        %v3796 = vmul.f32 %v3789, %v3781
        %v3797 = vadd.f32 %v3061, %v3791
        %v3798 = vadd.f32 %v3062, %v3792
        %v3799 = vadd.f32 %v3063, %v3793
        %v3800 = vadd.f32 %v3064, %v3794
        %v3801 = vadd.f32 %v3065, %v3795
        %v3802 = vadd.f32 %v3066, %v3796
        %3803 = vst [vmem:[#allocation2] sm:$0xff] %v3797
        %3804 = vst [vmem:[#allocation2 + $0x8] sm:$0xff] %v3798
        %3805 = vst [vmem:[#allocation2 + $0x10] sm:$0xff] %v3799
        %3806 = vst [vmem:[#allocation2 + $0x18] sm:$0xff] %v3800
        %3807 = vst [vmem:[#allocation2 + $0x20] sm:$0xff] %v3801
        %3808 = vst [vmem:[#allocation2 + $0x28] sm:$0xff] %v3802
        %p3809 = scmp.eq.s32.totalorder %s41, 1
        // Predicated region
        $region125: #{_lambda_.1} parent=95 // pred_check
          %p3810 = pneg %p3809
        $region126: #{_lambda_.1} parent=95 // pred_check_branch
          %3812 = sbr.rel (%p3810) target = $region128
        $region127: #{_lambda_.1} parent=95 // pred_region
          %v3813 = vld [vmem:[%s17] sm:$0x1]
          %v3814 = vld [vmem:[#allocation13] sm:$0x1]
          %vm3815 = vcmask 1040384
          %v3816 = vsel %vm3815, %v3797, 0.0
          %3817 = vadd.xlane.f32.xlu0 %v3816
          %v3818 = vpop.xlane.xlu0 %3817
          %v3819 = vmul.f32 %v3818, %v1085
          %v3820 = vsub.f32 %v3797, %v3819
          %v3821 = vmul.f32 %v3820, %v3820
          %v3822 = vsel %vm3815, %v3821, 0.0
          %3823 = vadd.xlane.f32.xlu0 %v3822
          %v3824 = vpop.xlane.xlu0 %3823
          %v3825 = vmul.f32 %v3824, %v1085
          %v3826 = vadd.f32 %v3825, 1e-06
          %v3827 = vrsqrt.pop %v3826
          %v3828 = vmul.f32 %v3820, %v3827
          %v3829 = vmul.f32 %v3828, %v3813
          %v3830 = vadd.f32 %v3829, %v3814
          %3831 = vst [vmem:[#allocation15] sm:$0x1] %v3830
          %v3832 = vsel %vm3815, %v3800, 0.0
          %3833 = vadd.xlane.f32.xlu0 %v3832
          %v3834 = vpop.xlane.xlu0 %3833
          %v3835 = vmul.f32 %v3834, %v1085
          %v3836 = vsub.f32 %v3800, %v3835
          %v3837 = vmul.f32 %v3836, %v3836
          %v3838 = vsel %vm3815, %v3837, 0.0
          %3839 = vadd.xlane.f32.xlu0 %v3838
          %v3840 = vpop.xlane.xlu0 %3839
          %v3841 = vmul.f32 %v3840, %v1085
          %v3842 = vadd.f32 %v3841, 1e-06
          %v3843 = vrsqrt.pop %v3842
          %v3844 = vmul.f32 %v3836, %v3843
          %v3845 = vmul.f32 %v3844, %v3813
          %v3846 = vadd.f32 %v3845, %v3814
          %3847 = vst [vmem:[#allocation15 + $0x1] sm:$0x1] %v3846
        $region128: #{_lambda_.1} parent=95 // pred_fallthru
          _
        // Predicated region
        $region129: #{_lambda_.1} parent=95 // pred_check
          %p3848 = pneg %p523
        $region130: #{_lambda_.1} parent=95 // pred_check_branch
          %3850 = sbr.rel (%p3848) target = $region132
        $region131: #{_lambda_.1} parent=95 // pred_region
          %s3852 = ssub.s32 32, 32
          %3853 = vsyncadd [#allocation6], %s3852
          %s3855 = sshll.u32 [#allocation15], 4
          %s3856 = int_to_ptr.vmem [resolvable:$true] %s3855
          %3858 = dma.vmem_to_hbm [thread:$0]  %s3856, 32, %s19, [#allocation6]
        $region132: #{_lambda_.1} parent=95 // pred_fallthru
          _
        // Predicated region
        $region133: #{_lambda_.1} parent=95 // pred_check
          %p3859 = pneg %p523
        $region134: #{_lambda_.1} parent=95 // pred_check_branch
          %3861 = sbr.rel (%p3859) target = $region136
        $region135: #{_lambda_.1} parent=95 // pred_region
          %3862 = dma.done [#allocation6], 32
        $region136: #{_lambda_.1} parent=95 // pred_fallthru
          _
      $region96: #{_lambda_.1} parent=5 // pred_fallthru
        _
      %p3863 = scmp.le.s32.totalorder 2, %s36
      // Predicated region
      $region137: #{_lambda_.1} parent=5 // pred_check
        %p3864 = pneg %p3863
      $region138: #{_lambda_.1} parent=5 // pred_check_branch
        %3866 = sbr.rel (%p3864) target = $region140
      $region139: #{_lambda_.1} parent=5 // pred_region
        %s3867 = ssub.s32 %s36, 2
      $region140: #{_lambda_.1} parent=5 // pred_fallthru
        _
    $region6: #{_lambda_.1} parent=1 // loop_footer
      %s40 = sadd.s32 1, %s36
    $region7: #{_lambda_.1} parent=1 // loop_footer_branch
      %35 = sbr.rel target = $region3
    $region8: #{_lambda_.1} parent=1 // loop_exit
      _
    %3868 = vsyncpa [#allocation5], 1
    %s3869 = scalar_lea.sflag [#allocation5], 1
    %3870 = vsyncpa %s3869, 1
    %3871 = vsyncpa [#allocation8], 1
    %s3872 = scalar_lea.sflag [#allocation8], 1
    %3873 = vsyncpa %s3872, 1
    %3874 = vsyncpa [#allocation11], 1
    %s3875 = scalar_lea.sflag [#allocation11], 1
    %3876 = vsyncpa %s3875, 1
    %3877 = vsyncpa [#allocation14], 1
    %3878 = vsyncpa [#allocation6], 1
    %s3879 = scalar_lea.sflag [#allocation6], 1
    %3880 = vsyncpa %s3879, 1

</llo_original>
